<compile_context>
chip_gen: v6e
topology: v6e:2x2x1
jax: 0.10.0
libtpu: 0.0.40
codegen_flags: <defaults>
</compile_context>

<pallas_src>
import jax
import jax.numpy as jnp
from jax import lax
from jax.experimental import pallas as pl
from jax.experimental.pallas import tpu as pltpu


_EPS = 1e-5      # torch BatchNorm1d default eps
_ALPHA = 0.2     # LeakyReLU negative slope


def _round_up(x, m):
    return (x + m - 1) // m * m


# ------------------------------ Pallas kernel -------------------------------

def _code_disc_kernel(x_ref,
                      w1_ref, g1_ref, be1_ref,
                      w2_ref, g2_ref, be2_ref,
                      w3_ref, b3_ref,
                      o_ref):
    """One fused segment: Linear -> BN -> LeakyReLU (x2) -> Linear(U, 1).

    x_ref: (B, Cpad) f32 view of one segment along the leading grid axis.
    w1/w2: bf16 (MXU-native).  BN stats / affine / activation and the final
    Cout=1 projection are f32 on the VPU/XLU.
    Pre-BN linear biases are omitted: they cancel exactly under training-mode BN.
    """
    b = x_ref.shape[0]
    inv_b = 1.0 / b

    def bn_lrelu(h, gamma, beta):
        # One-pass biased batch statistics over the batch axis.
        s = jnp.sum(h, axis=0, keepdims=True)                       # (1, U)
        ss = jnp.sum(h * h, axis=0, keepdims=True)                  # (1, U)
        mean = s * inv_b
        var = jnp.maximum(ss * inv_b - mean * mean, 0.0)
        scale = gamma * lax.rsqrt(var + _EPS)                       # (1, U)
        shift = beta - mean * scale
        y = h * scale + shift
        return jnp.where(y >= 0.0, y, _ALPHA * y)

    x = x_ref[...]                                                  # (B, Cpad) f32

    # Layer 1: bf16 operands on the MXU, f32 accumulation.
    h1 = jnp.dot(x.astype(jnp.bfloat16), w1_ref[...],
                 preferred_element_type=jnp.float32)
    h1 = bn_lrelu(h1, g1_ref[...], be1_ref[...])

    # Layer 2.
    h2 = jnp.dot(h1.astype(jnp.bfloat16), w2_ref[...],
                 preferred_element_type=jnp.float32)
    h2 = bn_lrelu(h2, g2_ref[...], be2_ref[...])

    # Layer 3: Linear(num_units, 1) as a VPU broadcast-multiply + lane reduction
    # (an N=1 MXU matmul would run at <2% of peak).
    out = jnp.sum(h2 * w3_ref[...], axis=-1, keepdims=True) + b3_ref[...]
    o_ref[...] = out.astype(o_ref.dtype)


# --------------------------------- wrapper -----------------------------------

def code_discriminator_forward(params, x):
    """Fused forward.

    x: (B, code_size) f32                      -> (B, 1) f32
       or (S, B, code_size) f32 (S independent sub-batches, e.g. real / fake /
       GP-interpolate codes of one alpha-WGAN step)  -> (S, B, 1) f32.
    BN batch statistics are computed per sub-batch (same as calling the torch
    module once per sub-batch).
    """
    squeeze = x.ndim == 2
    if squeeze:
        x = x[None]
    s, b, c = x.shape
    c_pad, u_pad = params["w1"].shape

    if c < c_pad:                                # zero-pad code_size to lane width
        x = jnp.pad(x, ((0, 0), (0, 0), (0, c_pad - c)))

    seg_map = lambda si: (si, 0, 0)              # per-segment blocks
    rep_map = lambda si: (0, 0)                  # weights: same block every step

    weight_bytes = ((params["w1"].size + params["w2"].size) * 2 +
                    (params["g1"].size + params["be1"].size +
                     params["g2"].size + params["be2"].size +
                     params["w3"].size + params["b3"].size) * 4)
    cost = pl.CostEstimate(
        flops=2 * s * b * (c_pad * u_pad + u_pad * u_pad + u_pad),
        transcendentals=2 * s * u_pad,           # rsqrt per BN column
        bytes_accessed=weight_bytes + x.size * 4 + s * b * 4,
    )

    out = pl.pallas_call(
        _code_disc_kernel,
        out_shape=jax.ShapeDtypeStruct((s, b, 1), jnp.float32),
        grid=(s,),
        in_specs=[
            pl.BlockSpec((pl.Squeezed(), b, c_pad), seg_map),   # x (one segment)
            pl.BlockSpec((c_pad, u_pad), rep_map),              # w1 (bf16)
            pl.BlockSpec((1, u_pad), rep_map),                  # gamma1
            pl.BlockSpec((1, u_pad), rep_map),                  # beta1
            pl.BlockSpec((u_pad, u_pad), rep_map),              # w2 (bf16)
            pl.BlockSpec((1, u_pad), rep_map),                  # gamma2
            pl.BlockSpec((1, u_pad), rep_map),                  # beta2
            pl.BlockSpec((1, u_pad), rep_map),                  # w3
            pl.BlockSpec((1, 1), rep_map),                      # b3
        ],
        out_specs=pl.BlockSpec((pl.Squeezed(), b, 1), seg_map),
        compiler_params=pltpu.CompilerParams(
            dimension_semantics=("parallel",)),                 # v7x: both TCs
        cost_estimate=cost,
    )(x,
      params["w1"], params["g1"], params["be1"],
      params["w2"], params["g2"], params["be2"],
      params["w3"], params["b3"])

    return out[0] if squeeze else out


# --------------------------- params / references ------------------------------

def init_logical_params(key, code_size=100, num_units=750):
    """Plain f32 params matching the torch module layout (weights as (in, out))."""
    ks = jax.random.split(key, 6)

    def w(k, shape, scale=0.05):
        return (scale * jax.random.normal(k, shape)).astype(jnp.float32)

    return {
        "w1": w(ks[0], (code_size, num_units)),
        "b1": w(ks[1], (1, num_units)),
        "w2": w(ks[2], (num_units, num_units)),
        "b2": w(ks[3], (1, num_units)),
        "w3": w(ks[4], (1, num_units)),
        "b3": w(ks[5], (1, 1)),
        "g1": jnp.ones((1, num_units), jnp.float32),
        "be1": jnp.zeros((1, num_units), jnp.float32),
        "g2": jnp.ones((1, num_units), jnp.float32),
        "be2": jnp.zeros((1, num_units), jnp.float32),
    }


def prepare_kernel_params(p, lane=128):
    """Zero-pad to lane-dense shapes and cast matmul weights to bf16.

    Padded BN columns get gamma=beta=0 (pad value), so padded activations are
    exactly zero and never influence the logical output.  b1/b2 are dropped:
    they cancel exactly under training-mode BatchNorm.
    """
    code_size, num_units = p["w1"].shape
    c_pad = _round_up(code_size, lane)
    u_pad = _round_up(num_units, lane)

    def pad2(a, rows, cols, dtype=jnp.float32):
        return jnp.pad(a, ((0, rows - a.shape[0]),
                           (0, cols - a.shape[1]))).astype(dtype)

    return {
        "w1": pad2(p["w1"], c_pad, u_pad, jnp.bfloat16),
        "w2": pad2(p["w2"], u_pad, u_pad, jnp.bfloat16),
        "w3": pad2(p["w3"], 1, u_pad),
        "b3": p["b3"].astype(jnp.float32),
        "g1": pad2(p["g1"], 1, u_pad),
        "be1": pad2(p["be1"], 1, u_pad),
        "g2": pad2(p["g2"], 1, u_pad),
        "be2": pad2(p["be2"], 1, u_pad),
    }


def reference_forward_f32(p, x):
    """Exact torch-module semantics: f32, with biases, two-pass biased variance."""
    def bn_lrelu(h, g, b):
        mean = jnp.mean(h, axis=0, keepdims=True)
        var = jnp.mean(jnp.square(h - mean), axis=0, keepdims=True)
        y = (h - mean) / jnp.sqrt(var + _EPS) * g + b
        return jnp.where(y >= 0.0, y, _ALPHA * y)

    h1 = bn_lrelu(x @ p["w1"] + p["b1"], p["g1"], p["be1"])
    h2 = bn_lrelu(h1 @ p["w2"] + p["b2"], p["g2"], p["be2"])
    return jnp.sum(h2 * p["w3"], axis=-1, keepdims=True) + p["b3"]


def reference_mirror(kp, x):
    """Pure-JAX mirror of the kernel numerics (bf16 matmul operands, one-pass var)."""
    c_pad = kp["w1"].shape[0]
    b = x.shape[0]
    x = jnp.pad(x, ((0, 0), (0, c_pad - x.shape[-1])))

    def bn_lrelu(h, g, be):
        mean = jnp.sum(h, axis=0, keepdims=True) / b
        var = jnp.maximum(jnp.sum(h * h, axis=0, keepdims=True) / b - mean * mean, 0.0)
        scale = g * lax.rsqrt(var + _EPS)
        y = h * scale + (be - mean * scale)
        return jnp.where(y >= 0.0, y, _ALPHA * y)

    h1 = jnp.dot(x.astype(jnp.bfloat16), kp["w1"], preferred_element_type=jnp.float32)
    h1 = bn_lrelu(h1, kp["g1"], kp["be1"])
    h2 = jnp.dot(h1.astype(jnp.bfloat16), kp["w2"], preferred_element_type=jnp.float32)
    h2 = bn_lrelu(h2, kp["g2"], kp["be2"])
    return jnp.sum(h2 * kp["w3"], axis=-1, keepdims=True) + kp["b3"]


# ---------------------------------- main -------------------------------------

if __name__ == "__main__":
    CODE_SIZE, NUM_UNITS = 100, 750     # module defaults
    SEGMENTS, BATCH = 2, 16             # e.g. real- & fake-code batches fused in one call

    key = jax.random.PRNGKey(0)
    pkey, xkey = jax.random.split(key)
    logical = init_logical_params(pkey, CODE_SIZE, NUM_UNITS)
    kparams = prepare_kernel_params(logical)
    x = jax.random.normal(xkey, (SEGMENTS, BATCH, CODE_SIZE), dtype=jnp.float32)

    fwd = jax.jit(code_discriminator_forward)
    out = jax.block_until_ready(fwd(kparams, x))

    assert out.shape == (SEGMENTS, BATCH, 1), out.shape
    assert bool(jnp.all(jnp.isfinite(out)))

    # Tight check vs a pure-JAX mirror of the kernel's exact numerics.
    mirror = jnp.stack([reference_mirror(kparams, x[s]) for s in range(SEGMENTS)])
    assert bool(jnp.allclose(out, mirror, atol=2e-3, rtol=2e-3)), (
        float(jnp.max(jnp.abs(out - mirror))))

    # Loose check vs exact f32 torch-module semantics (difference is only the
    # bf16 weight / activation quantization of the two matmuls).
    ref = jnp.stack([reference_forward_f32(logical, x[s]) for s in range(SEGMENTS)])
    assert bool(jnp.allclose(out, ref, atol=6e-2, rtol=6e-2)), (
        float(jnp.max(jnp.abs(out - ref))))

    # Single sub-batch (2-D input) path.
    out2 = jax.block_until_ready(fwd(kparams, x[0]))
    assert out2.shape == (BATCH, 1), out2.shape
    assert bool(jnp.allclose(out2, out[0], atol=1e-5, rtol=1e-5))

    print("KERNEL_OK")
</pallas_src>

<mosaic_0001>
module attributes {stable_mosaic.version = 11 : i64} {
  func.func @_code_disc_kernel(%arg0: i32, %arg1: memref<1x16x128xf32, #tpu.memory_space<vmem>>, %arg2: memref<128x768xbf16, #tpu.memory_space<vmem>>, %arg3: memref<1x768xf32, #tpu.memory_space<vmem>>, %arg4: memref<1x768xf32, #tpu.memory_space<vmem>>, %arg5: memref<768x768xbf16, #tpu.memory_space<vmem>>, %arg6: memref<1x768xf32, #tpu.memory_space<vmem>>, %arg7: memref<1x768xf32, #tpu.memory_space<vmem>>, %arg8: memref<1x768xf32, #tpu.memory_space<vmem>>, %arg9: memref<1x1xf32, #tpu.memory_space<vmem>>, %arg10: memref<1x16x1xf32, #tpu.memory_space<vmem>>) attributes {dimension_semantics = [#tpu.dimension_semantics<parallel>], iteration_bounds = array<i64: 2>, scalar_prefetch = 0 : i64, scratch_operands = 0 : i64, tpu.core_type = #tpu.core_type<tc>, window_params = [{transform_indices = @transform_0, window_bounds = array<i64: 1, 16, 128>}, {pipeline_mode = #tpu.pipeline_mode<synchronous>, transform_indices = @transform_1, window_bounds = array<i64: 128, 768>}, {pipeline_mode = #tpu.pipeline_mode<synchronous>, transform_indices = @transform_2, window_bounds = array<i64: 1, 768>}, {pipeline_mode = #tpu.pipeline_mode<synchronous>, transform_indices = @transform_3, window_bounds = array<i64: 1, 768>}, {pipeline_mode = #tpu.pipeline_mode<synchronous>, transform_indices = @transform_4, window_bounds = array<i64: 768, 768>}, {pipeline_mode = #tpu.pipeline_mode<synchronous>, transform_indices = @transform_5, window_bounds = array<i64: 1, 768>}, {pipeline_mode = #tpu.pipeline_mode<synchronous>, transform_indices = @transform_6, window_bounds = array<i64: 1, 768>}, {pipeline_mode = #tpu.pipeline_mode<synchronous>, transform_indices = @transform_7, window_bounds = array<i64: 1, 768>}, {pipeline_mode = #tpu.pipeline_mode<synchronous>, transform_indices = @transform_8, window_bounds = array<i64: 1, 1>}, {transform_indices = @transform_9, window_bounds = array<i64: 1, 16, 1>}]} {
    %c0 = arith.constant 0 : index
    %c0_0 = arith.constant 0 : index
    %c0_1 = arith.constant 0 : index
    %0 = vector.load %arg1[%c0, %c0_0, %c0_1] : memref<1x16x128xf32, #tpu.memory_space<vmem>>, vector<1x16x128xf32>
    %1 = vector.shape_cast %0 : vector<1x16x128xf32> to vector<16x128xf32>
    %2 = arith.truncf %1 : vector<16x128xf32> to vector<16x128xbf16>
    %c0_2 = arith.constant 0 : index
    %c0_3 = arith.constant 0 : index
    %3 = vector.load %arg2[%c0_2, %c0_3] : memref<128x768xbf16, #tpu.memory_space<vmem>>, vector<128x768xbf16>
    %cst = arith.constant dense<0.000000e+00> : vector<16x768xf32>
    %4 = tpu.matmul %2, %3, %cst {dimension_numbers = #tpu.dot_dimension_numbers<[1], [0], [0], [1], [0, 0, 1, 1], [], []>} : vector<16x128xbf16>, vector<128x768xbf16>, vector<16x768xf32> -> vector<16x768xf32>
    %c0_4 = arith.constant 0 : index
    %c0_5 = arith.constant 0 : index
    %5 = vector.load %arg3[%c0_4, %c0_5] : memref<1x768xf32, #tpu.memory_space<vmem>>, vector<1x768xf32>
    %c0_6 = arith.constant 0 : index
    %c0_7 = arith.constant 0 : index
    %6 = vector.load %arg4[%c0_6, %c0_7] : memref<1x768xf32, #tpu.memory_space<vmem>>, vector<1x768xf32>
    %cst_8 = arith.constant dense<0.000000e+00> : vector<768xf32>
    %7 = vector.multi_reduction <add>, %4, %cst_8 [0] : vector<16x768xf32> to vector<768xf32>
    %8 = vector.shape_cast %7 : vector<768xf32> to vector<1x768xf32>
    %9 = arith.mulf %4, %4 : vector<16x768xf32>
    %cst_9 = arith.constant dense<0.000000e+00> : vector<768xf32>
    %10 = vector.multi_reduction <add>, %9, %cst_9 [0] : vector<16x768xf32> to vector<768xf32>
    %11 = vector.shape_cast %10 : vector<768xf32> to vector<1x768xf32>
    %cst_10 = arith.constant 6.250000e-02 : f32
    %12 = vector.broadcast %cst_10 : f32 to vector<1x768xf32>
    %13 = arith.mulf %8, %12 : vector<1x768xf32>
    %cst_11 = arith.constant 6.250000e-02 : f32
    %14 = vector.broadcast %cst_11 : f32 to vector<1x768xf32>
    %15 = arith.mulf %11, %14 : vector<1x768xf32>
    %16 = arith.mulf %13, %13 : vector<1x768xf32>
    %17 = arith.subf %15, %16 : vector<1x768xf32>
    %cst_12 = arith.constant 0.000000e+00 : f32
    %18 = vector.broadcast %cst_12 : f32 to vector<1x768xf32>
    %19 = arith.maximumf %17, %18 : vector<1x768xf32>
    %cst_13 = arith.constant 9.99999974E-6 : f32
    %20 = vector.broadcast %cst_13 : f32 to vector<1x768xf32>
    %21 = arith.addf %19, %20 : vector<1x768xf32>
    %22 = math.rsqrt %21 : vector<1x768xf32>
    %23 = arith.mulf %5, %22 : vector<1x768xf32>
    %24 = arith.mulf %13, %23 : vector<1x768xf32>
    %25 = arith.subf %6, %24 : vector<1x768xf32>
    %26 = vector.broadcast %23 : vector<1x768xf32> to vector<16x768xf32>
    %27 = arith.mulf %4, %26 : vector<16x768xf32>
    %28 = vector.broadcast %25 : vector<1x768xf32> to vector<16x768xf32>
    %29 = arith.addf %27, %28 : vector<16x768xf32>
    %cst_14 = arith.constant 0.000000e+00 : f32
    %30 = vector.broadcast %cst_14 : f32 to vector<16x768xf32>
    %31 = arith.cmpf oge, %29, %30 : vector<16x768xf32>
    %cst_15 = arith.constant 2.000000e-01 : f32
    %32 = vector.broadcast %cst_15 : f32 to vector<16x768xf32>
    %33 = arith.mulf %32, %29 : vector<16x768xf32>
    %34 = arith.select %31, %29, %33 : vector<16x768xi1>, vector<16x768xf32>
    %35 = arith.truncf %34 : vector<16x768xf32> to vector<16x768xbf16>
    %c0_16 = arith.constant 0 : index
    %c0_17 = arith.constant 0 : index
    %36 = vector.load %arg5[%c0_16, %c0_17] : memref<768x768xbf16, #tpu.memory_space<vmem>>, vector<768x768xbf16>
    %cst_18 = arith.constant dense<0.000000e+00> : vector<16x768xf32>
    %37 = tpu.matmul %35, %36, %cst_18 {dimension_numbers = #tpu.dot_dimension_numbers<[1], [0], [0], [1], [0, 0, 1, 1], [], []>} : vector<16x768xbf16>, vector<768x768xbf16>, vector<16x768xf32> -> vector<16x768xf32>
    %c0_19 = arith.constant 0 : index
    %c0_20 = arith.constant 0 : index
    %38 = vector.load %arg6[%c0_19, %c0_20] : memref<1x768xf32, #tpu.memory_space<vmem>>, vector<1x768xf32>
    %c0_21 = arith.constant 0 : index
    %c0_22 = arith.constant 0 : index
    %39 = vector.load %arg7[%c0_21, %c0_22] : memref<1x768xf32, #tpu.memory_space<vmem>>, vector<1x768xf32>
    %cst_23 = arith.constant dense<0.000000e+00> : vector<768xf32>
    %40 = vector.multi_reduction <add>, %37, %cst_23 [0] : vector<16x768xf32> to vector<768xf32>
    %41 = vector.shape_cast %40 : vector<768xf32> to vector<1x768xf32>
    %42 = arith.mulf %37, %37 : vector<16x768xf32>
    %cst_24 = arith.constant dense<0.000000e+00> : vector<768xf32>
    %43 = vector.multi_reduction <add>, %42, %cst_24 [0] : vector<16x768xf32> to vector<768xf32>
    %44 = vector.shape_cast %43 : vector<768xf32> to vector<1x768xf32>
    %cst_25 = arith.constant 6.250000e-02 : f32
    %45 = vector.broadcast %cst_25 : f32 to vector<1x768xf32>
    %46 = arith.mulf %41, %45 : vector<1x768xf32>
    %cst_26 = arith.constant 6.250000e-02 : f32
    %47 = vector.broadcast %cst_26 : f32 to vector<1x768xf32>
    %48 = arith.mulf %44, %47 : vector<1x768xf32>
    %49 = arith.mulf %46, %46 : vector<1x768xf32>
    %50 = arith.subf %48, %49 : vector<1x768xf32>
    %cst_27 = arith.constant 0.000000e+00 : f32
    %51 = vector.broadcast %cst_27 : f32 to vector<1x768xf32>
    %52 = arith.maximumf %50, %51 : vector<1x768xf32>
    %cst_28 = arith.constant 9.99999974E-6 : f32
    %53 = vector.broadcast %cst_28 : f32 to vector<1x768xf32>
    %54 = arith.addf %52, %53 : vector<1x768xf32>
    %55 = math.rsqrt %54 : vector<1x768xf32>
    %56 = arith.mulf %38, %55 : vector<1x768xf32>
    %57 = arith.mulf %46, %56 : vector<1x768xf32>
    %58 = arith.subf %39, %57 : vector<1x768xf32>
    %59 = vector.broadcast %56 : vector<1x768xf32> to vector<16x768xf32>
    %60 = arith.mulf %37, %59 : vector<16x768xf32>
    %61 = vector.broadcast %58 : vector<1x768xf32> to vector<16x768xf32>
    %62 = arith.addf %60, %61 : vector<16x768xf32>
    %cst_29 = arith.constant 0.000000e+00 : f32
    %63 = vector.broadcast %cst_29 : f32 to vector<16x768xf32>
    %64 = arith.cmpf oge, %62, %63 : vector<16x768xf32>
    %cst_30 = arith.constant 2.000000e-01 : f32
    %65 = vector.broadcast %cst_30 : f32 to vector<16x768xf32>
    %66 = arith.mulf %65, %62 : vector<16x768xf32>
    %67 = arith.select %64, %62, %66 : vector<16x768xi1>, vector<16x768xf32>
    %c0_31 = arith.constant 0 : index
    %c0_32 = arith.constant 0 : index
    %68 = vector.load %arg8[%c0_31, %c0_32] : memref<1x768xf32, #tpu.memory_space<vmem>>, vector<1x768xf32>
    %69 = vector.broadcast %68 : vector<1x768xf32> to vector<16x768xf32>
    %70 = arith.mulf %67, %69 : vector<16x768xf32>
    %cst_33 = arith.constant dense<0.000000e+00> : vector<16xf32>
    %71 = vector.multi_reduction <add>, %70, %cst_33 [1] : vector<16x768xf32> to vector<16xf32>
    %72 = vector.shape_cast %71 : vector<16xf32> to vector<16x1xf32>
    %c0_34 = arith.constant 0 : index
    %c0_35 = arith.constant 0 : index
    %73 = vector.load %arg9[%c0_34, %c0_35] : memref<1x1xf32, #tpu.memory_space<vmem>>, vector<1x1xf32>
    %74 = vector.broadcast %73 : vector<1x1xf32> to vector<16x1xf32>
    %75 = arith.addf %72, %74 : vector<16x1xf32>
    %c0_36 = arith.constant 0 : index
    %c0_37 = arith.constant 0 : index
    %c0_38 = arith.constant 0 : index
    %76 = vector.load %arg10[%c0_36, %c0_37, %c0_38] : memref<1x16x1xf32, #tpu.memory_space<vmem>>, vector<1x16x1xf32>
    %77 = vector.shape_cast %76 : vector<1x16x1xf32> to vector<16x1xf32>
    %78 = vector.shape_cast %75 : vector<16x1xf32> to vector<1x16x1xf32>
    tpu.vector_store %arg10[%c0_36, %c0_37, %c0_38], %78 {strides = array<i32>} : memref<1x16x1xf32, #tpu.memory_space<vmem>>, vector<1x16x1xf32>,
    return
  }
  func.func @transform_0(%arg0: i32) -> (i32, i32, i32) {
    %c0_i32 = arith.constant 0 : i32
    %c0_i32_0 = arith.constant 0 : i32
    %c0_i32_1 = arith.constant 0 : i32
    return %arg0, %c0_i32, %c0_i32_0 : i32, i32, i32
  }
  func.func @transform_1(%arg0: i32) -> (i32, i32) {
    %c0_i32 = arith.constant 0 : i32
    %c0_i32_0 = arith.constant 0 : i32
    %c0_i32_1 = arith.constant 0 : i32
    return %c0_i32, %c0_i32_0 : i32, i32
  }
  func.func @transform_2(%arg0: i32) -> (i32, i32) {
    %c0_i32 = arith.constant 0 : i32
    %c0_i32_0 = arith.constant 0 : i32
    %c0_i32_1 = arith.constant 0 : i32
    return %c0_i32, %c0_i32_0 : i32, i32
  }
  func.func @transform_3(%arg0: i32) -> (i32, i32) {
    %c0_i32 = arith.constant 0 : i32
    %c0_i32_0 = arith.constant 0 : i32
    %c0_i32_1 = arith.constant 0 : i32
    return %c0_i32, %c0_i32_0 : i32, i32
  }
  func.func @transform_4(%arg0: i32) -> (i32, i32) {
    %c0_i32 = arith.constant 0 : i32
    %c0_i32_0 = arith.constant 0 : i32
    %c0_i32_1 = arith.constant 0 : i32
    return %c0_i32, %c0_i32_0 : i32, i32
  }
  func.func @transform_5(%arg0: i32) -> (i32, i32) {
    %c0_i32 = arith.constant 0 : i32
    %c0_i32_0 = arith.constant 0 : i32
    %c0_i32_1 = arith.constant 0 : i32
    return %c0_i32, %c0_i32_0 : i32, i32
  }
  func.func @transform_6(%arg0: i32) -> (i32, i32) {
    %c0_i32 = arith.constant 0 : i32
    %c0_i32_0 = arith.constant 0 : i32
    %c0_i32_1 = arith.constant 0 : i32
    return %c0_i32, %c0_i32_0 : i32, i32
  }
  func.func @transform_7(%arg0: i32) -> (i32, i32) {
    %c0_i32 = arith.constant 0 : i32
    %c0_i32_0 = arith.constant 0 : i32
    %c0_i32_1 = arith.constant 0 : i32
    return %c0_i32, %c0_i32_0 : i32, i32
  }
  func.func @transform_8(%arg0: i32) -> (i32, i32) {
    %c0_i32 = arith.constant 0 : i32
    %c0_i32_0 = arith.constant 0 : i32
    %c0_i32_1 = arith.constant 0 : i32
    return %c0_i32, %c0_i32_0 : i32, i32
  }
  func.func @transform_9(%arg0: i32) -> (i32, i32, i32) {
    %c0_i32 = arith.constant 0 : i32
    %c0_i32_0 = arith.constant 0 : i32
    %c0_i32_1 = arith.constant 0 : i32
    return %arg0, %c0_i32, %c0_i32_0 : i32, i32, i32
  }
}

</mosaic_0001>

<llo_original>
// kernel: code_discriminator_forward.1
$region0: #{code_discriminator_forward.1}
  #allocation0 [shape = 'u32[]', space=smem, size = 0x4, offset = 0x4, fixed_abs, tag = 'smem constant byte address 0x4 - core index']
  #allocation1 [shape = 'u32[144,128]{1,0:T(1,128)}', space=vmem, size = 0x12000, scoped, tag = 'internal scratch']
  #allocation2 [shape = 'f32[1,1]{1,0:T(1,128)S(1)}', space=vmem, size = 0x200, scoped, tag = 'scoped memory for code_discriminator_forward.1']
  %s0 = inlined_call_operand.vmem [shape: f32[2,16,128], index: 0, kind: input, shape index: {}]
  %s1 = inlined_call_operand.hbm [shape: bf16[128,768], index: 1, kind: input, shape index: {}]
  %s2 = inlined_call_operand.hbm [shape: f32[1,768], index: 2, kind: input, shape index: {}]
  %s3 = inlined_call_operand.hbm [shape: f32[1,768], index: 3, kind: input, shape index: {}]
  %s4 = inlined_call_operand.hbm [shape: bf16[768,768], index: 4, kind: input, shape index: {}]
  %s5 = inlined_call_operand.hbm [shape: f32[1,768], index: 5, kind: input, shape index: {}]
  %s6 = inlined_call_operand.hbm [shape: f32[1,768], index: 6, kind: input, shape index: {}]
  %s7 = inlined_call_operand.hbm [shape: f32[1,768], index: 7, kind: input, shape index: {}]
  %s8 = inlined_call_operand.<no memory space> [shape: f32[1,1], index: 8, kind: input, shape index: {}]
  %s9 = inlined_call_operand.vmem [shape: f32[2,16,1], index: 9, kind: output, shape index: {}]
  %s10 = sld [smem:[#allocation0]]
  $region97: #{code_discriminator_forward.1} parent=0
    _
  %s12 = ssub.s32 1, %s10
  %s13 = scalar_select 0, %s12, %s10
  %v14 = vstv %s8
  %15 = vst [vmem:[#allocation2] sm:$0x1] %v14
  $region1: #{code_discriminator_forward.1} parent=0
    #allocation3 [shape = 'u8[196608]{0}', space=vmem, size = 0x30000, scoped, tag = 'input window, operand 1, single buffered']
    #allocation4 [shape = 's32[2]{0}', space=sflag, size = 0x8, scoped, tag = 'scoped memory for code_discriminator_forward.1']
    #allocation5 [shape = 'u8[3072]{0}', space=vmem, size = 0xc00, scoped, tag = 'input window, operand 2, single buffered']
    #allocation6 [shape = 's32[1]{0}', space=sflag, size = 0x4, scoped, tag = 'scoped memory for code_discriminator_forward.1']
    #allocation7 [shape = 'u8[3072]{0}', space=vmem, size = 0xc00, scoped, tag = 'input window, operand 3, single buffered']
    #allocation8 [shape = 'u8[1179648]{0}', space=vmem, size = 0x120000, scoped, tag = 'input window, operand 4, single buffered']
    #allocation9 [shape = 's32[1]{0}', space=sflag, size = 0x4, scoped, tag = 'scoped memory for code_discriminator_forward.1']
    #allocation10 [shape = 'u8[3072]{0}', space=vmem, size = 0xc00, scoped, tag = 'input window, operand 5, single buffered']
    #allocation11 [shape = 'u8[3072]{0}', space=vmem, size = 0xc00, scoped, tag = 'input window, operand 6, single buffered']
    #allocation12 [shape = 's32[1]{0}', space=sflag, size = 0x4, scoped, tag = 'scoped memory for code_discriminator_forward.1']
    #allocation13 [shape = 'u8[3072]{0}', space=vmem, size = 0xc00, scoped, tag = 'input window, operand 7, single buffered']
    %16 = vsyncpa [#allocation4], 0
    %17 = vsyncpa [#allocation6], 0
    %18 = vsyncpa [#allocation9], 0
    %19 = vsyncpa [#allocation12], 0
    loop: start=0, step=1, limit=4
    $region2: #{code_discriminator_forward.1} parent=1 // loop_pre_header
      _
    $region3: #{code_discriminator_forward.1} parent=1 // loop_header
      %s21 = sphi 0, %s25
      %p22 = scmp.ge.s32.totalorder %s21, 4
      %s31 = sphi 0, %s33
      %s34 = sphi 0, %s31
      %s35 = sphi 0, %s34
      %s51 = sphi 0, %s35
      %s55 = sphi 0, %s55
      %s57 = sphi 0, %s55
      %s58 = sphi 0, %s57
      %s72 = sphi 0, %s58
      %s76 = sphi 0, %s76
      %s78 = sphi 0, %s76
      %s79 = sphi 0, %s78
      %s93 = sphi 0, %s79
      %s97 = sphi 0, %s97
      %s99 = sphi 0, %s97
      %s100 = sphi 0, %s99
      %s114 = sphi 0, %s100
      %s118 = sphi 0, %s118
      %s120 = sphi 0, %s118
      %s121 = sphi 0, %s120
      %s135 = sphi 0, %s121
      %s139 = sphi 0, %s139
      %s141 = sphi 0, %s139
      %s142 = sphi 0, %s141
      %s156 = sphi 0, %s142
      %s160 = sphi 0, %s160
      %s162 = sphi 0, %s160
      %s163 = sphi 0, %s162
      %s177 = sphi 0, %s163
      %s181 = sphi 0, %s181
      %s183 = sphi 0, %s181
      %s184 = sphi 0, %s183
      %s198 = sphi 0, %s184
      %s202 = sphi 0, %s202
      %s204 = sphi 0, %s202
      %s205 = sphi 0, %s204
      %s219 = sphi 0, %s205
      %s225 = sphi 0, %s227
      %s228 = sphi 0, %s225
      %s229 = sphi 0, %s228
      %s245 = sphi 0, %s229
    $region4: #{code_discriminator_forward.1} parent=1 // loop_header_branch
      %24 = sbr.rel (%p22) target = $region8
    $region5: #{code_discriminator_forward.1} parent=1 // loop_body
      %s26 = ssub.s32 %s21, 1
      %s27 = ssub.s32 %s21, 2
      %s28 = sadd.s32 %s21, 1
      %s29 = ssub.s32 %s21, %s28
      %p30 = scmp.eq.s32.totalorder %s29, 0
      %s32 = sadd.s32 %s31, 1
      %s33 = scalar_select %p30, %s31, %s32
      %p36 = pneg %p30
      %p37 = scmp.eq.s32.totalorder %s21, 1
      %p38 = por %p36, %p37
      %p39 = scmp.ne.s32.totalorder %s31, %s34
      %p40 = scmp.eq.s32.totalorder %s21, 0
      %p41 = por %p39, %p40
      %p42 = scmp.ne.s32.totalorder %s31, %s34
      %p43 = scmp.eq.s32.totalorder %s26, 1
      %p44 = por %p42, %p43
      %p45 = scmp.ne.s32.totalorder %s34, %s35
      %p46 = scmp.eq.s32.totalorder %s26, 0
      %p47 = por %p45, %p46
      %p48 = scmp.ne.s32.totalorder %s34, %s35
      %p49 = scmp.eq.s32.totalorder %s27, 1
      %p50 = por %p48, %p49
      %p52 = scmp.ne.s32.totalorder %s35, %s51
      %p53 = scmp.eq.s32.totalorder %s27, 0
      %p54 = por %p52, %p53
      %s56 = sadd.s32 %s55, 1
      %p59 = scmp.eq.s32.totalorder %s21, 1
      %p60 = scmp.ne.s32.totalorder %s55, %s57
      %p61 = scmp.eq.s32.totalorder %s21, 0
      %p62 = por %p60, %p61
      %p63 = scmp.ne.s32.totalorder %s55, %s57
      %p64 = scmp.eq.s32.totalorder %s26, 1
      %p65 = por %p63, %p64
      %p66 = scmp.ne.s32.totalorder %s57, %s58
      %p67 = scmp.eq.s32.totalorder %s26, 0
      %p68 = por %p66, %p67
      %p69 = scmp.ne.s32.totalorder %s57, %s58
      %p70 = scmp.eq.s32.totalorder %s27, 1
      %p71 = por %p69, %p70
      %p73 = scmp.ne.s32.totalorder %s58, %s72
      %p74 = scmp.eq.s32.totalorder %s27, 0
      %p75 = por %p73, %p74
      %s77 = sadd.s32 %s76, 1
      %p80 = scmp.eq.s32.totalorder %s21, 1
      %p81 = scmp.ne.s32.totalorder %s76, %s78
      %p82 = scmp.eq.s32.totalorder %s21, 0
      %p83 = por %p81, %p82
      %p84 = scmp.ne.s32.totalorder %s76, %s78
      %p85 = scmp.eq.s32.totalorder %s26, 1
      %p86 = por %p84, %p85
      %p87 = scmp.ne.s32.totalorder %s78, %s79
      %p88 = scmp.eq.s32.totalorder %s26, 0
      %p89 = por %p87, %p88
      %p90 = scmp.ne.s32.totalorder %s78, %s79
      %p91 = scmp.eq.s32.totalorder %s27, 1
      %p92 = por %p90, %p91
      %p94 = scmp.ne.s32.totalorder %s79, %s93
      %p95 = scmp.eq.s32.totalorder %s27, 0
      %p96 = por %p94, %p95
      %s98 = sadd.s32 %s97, 1
      %p101 = scmp.eq.s32.totalorder %s21, 1
      %p102 = scmp.ne.s32.totalorder %s97, %s99
      %p103 = scmp.eq.s32.totalorder %s21, 0
      %p104 = por %p102, %p103
      %p105 = scmp.ne.s32.totalorder %s97, %s99
      %p106 = scmp.eq.s32.totalorder %s26, 1
      %p107 = por %p105, %p106
      %p108 = scmp.ne.s32.totalorder %s99, %s100
      %p109 = scmp.eq.s32.totalorder %s26, 0
      %p110 = por %p108, %p109
      %p111 = scmp.ne.s32.totalorder %s99, %s100
      %p112 = scmp.eq.s32.totalorder %s27, 1
      %p113 = por %p111, %p112
      %p115 = scmp.ne.s32.totalorder %s100, %s114
      %p116 = scmp.eq.s32.totalorder %s27, 0
      %p117 = por %p115, %p116
      %s119 = sadd.s32 %s118, 1
      %p122 = scmp.eq.s32.totalorder %s21, 1
      %p123 = scmp.ne.s32.totalorder %s118, %s120
      %p124 = scmp.eq.s32.totalorder %s21, 0
      %p125 = por %p123, %p124
      %p126 = scmp.ne.s32.totalorder %s118, %s120
      %p127 = scmp.eq.s32.totalorder %s26, 1
      %p128 = por %p126, %p127
      %p129 = scmp.ne.s32.totalorder %s120, %s121
      %p130 = scmp.eq.s32.totalorder %s26, 0
      %p131 = por %p129, %p130
      %p132 = scmp.ne.s32.totalorder %s120, %s121
      %p133 = scmp.eq.s32.totalorder %s27, 1
      %p134 = por %p132, %p133
      %p136 = scmp.ne.s32.totalorder %s121, %s135
      %p137 = scmp.eq.s32.totalorder %s27, 0
      %p138 = por %p136, %p137
      %s140 = sadd.s32 %s139, 1
      %p143 = scmp.eq.s32.totalorder %s21, 1
      %p144 = scmp.ne.s32.totalorder %s139, %s141
      %p145 = scmp.eq.s32.totalorder %s21, 0
      %p146 = por %p144, %p145
      %p147 = scmp.ne.s32.totalorder %s139, %s141
      %p148 = scmp.eq.s32.totalorder %s26, 1
      %p149 = por %p147, %p148
      %p150 = scmp.ne.s32.totalorder %s141, %s142
      %p151 = scmp.eq.s32.totalorder %s26, 0
      %p152 = por %p150, %p151
      %p153 = scmp.ne.s32.totalorder %s141, %s142
      %p154 = scmp.eq.s32.totalorder %s27, 1
      %p155 = por %p153, %p154
      %p157 = scmp.ne.s32.totalorder %s142, %s156
      %p158 = scmp.eq.s32.totalorder %s27, 0
      %p159 = por %p157, %p158
      %s161 = sadd.s32 %s160, 1
      %p164 = scmp.eq.s32.totalorder %s21, 1
      %p165 = scmp.ne.s32.totalorder %s160, %s162
      %p166 = scmp.eq.s32.totalorder %s21, 0
      %p167 = por %p165, %p166
      %p168 = scmp.ne.s32.totalorder %s160, %s162
      %p169 = scmp.eq.s32.totalorder %s26, 1
      %p170 = por %p168, %p169
      %p171 = scmp.ne.s32.totalorder %s162, %s163
      %p172 = scmp.eq.s32.totalorder %s26, 0
      %p173 = por %p171, %p172
      %p174 = scmp.ne.s32.totalorder %s162, %s163
      %p175 = scmp.eq.s32.totalorder %s27, 1
      %p176 = por %p174, %p175
      %p178 = scmp.ne.s32.totalorder %s163, %s177
      %p179 = scmp.eq.s32.totalorder %s27, 0
      %p180 = por %p178, %p179
      %s182 = sadd.s32 %s181, 1
      %p185 = scmp.eq.s32.totalorder %s21, 1
      %p186 = scmp.ne.s32.totalorder %s181, %s183
      %p187 = scmp.eq.s32.totalorder %s21, 0
      %p188 = por %p186, %p187
      %p189 = scmp.ne.s32.totalorder %s181, %s183
      %p190 = scmp.eq.s32.totalorder %s26, 1
      %p191 = por %p189, %p190
      %p192 = scmp.ne.s32.totalorder %s183, %s184
      %p193 = scmp.eq.s32.totalorder %s26, 0
      %p194 = por %p192, %p193
      %p195 = scmp.ne.s32.totalorder %s183, %s184
      %p196 = scmp.eq.s32.totalorder %s27, 1
      %p197 = por %p195, %p196
      %p199 = scmp.ne.s32.totalorder %s184, %s198
      %p200 = scmp.eq.s32.totalorder %s27, 0
      %p201 = por %p199, %p200
      %s203 = sadd.s32 %s202, 1
      %p206 = scmp.eq.s32.totalorder %s21, 1
      %p207 = scmp.ne.s32.totalorder %s202, %s204
      %p208 = scmp.eq.s32.totalorder %s21, 0
      %p209 = por %p207, %p208
      %p210 = scmp.ne.s32.totalorder %s202, %s204
      %p211 = scmp.eq.s32.totalorder %s26, 1
      %p212 = por %p210, %p211
      %p213 = scmp.ne.s32.totalorder %s204, %s205
      %p214 = scmp.eq.s32.totalorder %s26, 0
      %p215 = por %p213, %p214
      %p216 = scmp.ne.s32.totalorder %s204, %s205
      %p217 = scmp.eq.s32.totalorder %s27, 1
      %p218 = por %p216, %p217
      %p220 = scmp.ne.s32.totalorder %s205, %s219
      %p221 = scmp.eq.s32.totalorder %s27, 0
      %p222 = por %p220, %p221
      %s223 = ssub.s32 %s21, %s28
      %p224 = scmp.eq.s32.totalorder %s223, 0
      %s226 = sadd.s32 %s225, 1
      %s227 = scalar_select %p224, %s225, %s226
      %p230 = pneg %p224
      %p231 = scmp.eq.s32.totalorder %s21, 1
      %p232 = por %p230, %p231
      %p233 = scmp.ne.s32.totalorder %s225, %s228
      %p234 = scmp.eq.s32.totalorder %s21, 0
      %p235 = por %p233, %p234
      %p236 = scmp.ne.s32.totalorder %s225, %s228
      %p237 = scmp.eq.s32.totalorder %s26, 1
      %p238 = por %p236, %p237
      %p239 = scmp.ne.s32.totalorder %s228, %s229
      %p240 = scmp.eq.s32.totalorder %s26, 0
      %p241 = por %p239, %p240
      %p242 = scmp.ne.s32.totalorder %s228, %s229
      %p243 = scmp.eq.s32.totalorder %s27, 1
      %p244 = por %p242, %p243
      %p246 = scmp.ne.s32.totalorder %s229, %s245
      %p247 = scmp.eq.s32.totalorder %s27, 0
      %p248 = por %p246, %p247
      %p249 = scmp.le.s32.totalorder 1, %s21
      %p250 = scmp.lt.s32.totalorder %s21, 3
      %p251 = pnand %p249, %p250
      %p252 = pneg %p251
      // Predicated region
      $region9: #{code_discriminator_forward.1} parent=5 // pred_check
        _
      $region10: #{code_discriminator_forward.1} parent=5 // pred_check_branch
        %254 = sbr.rel (%p251) target = $region12
      $region11: #{code_discriminator_forward.1} parent=5 // pred_region
        %s255 = ssub.s32 %s21, 1
        // Predicated region
        $region13: #{code_discriminator_forward.1} parent=11 // pred_check
          %p256 = pneg %p68
        $region14: #{code_discriminator_forward.1} parent=11 // pred_check_branch
          %258 = sbr.rel (%p256) target = $region16
        $region15: #{code_discriminator_forward.1} parent=11 // pred_region
          %s260 = ssub.s32 6144, 6144
          %261 = vsyncadd [#allocation4], %s260
          %s262 = sshll.u32 [#allocation3], 4
          %s263 = int_to_ptr.vmem [resolvable:$true] %s262
          %268 = dma.hbm_to_vmem [thread:$0]  %s1, 6144, %s263, [#allocation4], 384, 384, 24
        $region16: #{code_discriminator_forward.1} parent=11 // pred_fallthru
          _
        // Predicated region
        $region17: #{code_discriminator_forward.1} parent=11 // pred_check
          %p269 = pneg %p89
        $region18: #{code_discriminator_forward.1} parent=11 // pred_check_branch
          %271 = sbr.rel (%p269) target = $region20
        $region19: #{code_discriminator_forward.1} parent=11 // pred_region
          %s273 = ssub.s32 96, 96
          %274 = vsyncadd [#allocation6], %s273
          %s276 = sshll.u32 [#allocation5], 4
          %s277 = int_to_ptr.vmem [resolvable:$true] %s276
          %279 = dma.hbm_to_vmem [thread:$0]  %s2, 96, %s277, [#allocation6]
        $region20: #{code_discriminator_forward.1} parent=11 // pred_fallthru
          _
        // Predicated region
        $region21: #{code_discriminator_forward.1} parent=11 // pred_check
          %p280 = pneg %p110
        $region22: #{code_discriminator_forward.1} parent=11 // pred_check_branch
          %282 = sbr.rel (%p280) target = $region24
        $region23: #{code_discriminator_forward.1} parent=11 // pred_region
          %s284 = ssub.s32 96, 96
          %285 = vsyncadd [#allocation6], %s284
          %s287 = sshll.u32 [#allocation7], 4
          %s288 = int_to_ptr.vmem [resolvable:$true] %s287
          %290 = dma.hbm_to_vmem [thread:$0]  %s3, 96, %s288, [#allocation6]
        $region24: #{code_discriminator_forward.1} parent=11 // pred_fallthru
          _
        // Predicated region
        $region25: #{code_discriminator_forward.1} parent=11 // pred_check
          %p291 = pneg %p131
        $region26: #{code_discriminator_forward.1} parent=11 // pred_check_branch
          %293 = sbr.rel (%p291) target = $region28
        $region27: #{code_discriminator_forward.1} parent=11 // pred_region
          %s295 = ssub.s32 36864, 36864
          %296 = vsyncadd [#allocation9], %s295
          %s297 = sshll.u32 [#allocation8], 4
          %s298 = int_to_ptr.vmem [resolvable:$true] %s297
          %303 = dma.hbm_to_vmem [thread:$0]  %s4, 36864, %s298, [#allocation9], 384, 384, 24
        $region28: #{code_discriminator_forward.1} parent=11 // pred_fallthru
          _
        // Predicated region
        $region29: #{code_discriminator_forward.1} parent=11 // pred_check
          %p304 = pneg %p152
        $region30: #{code_discriminator_forward.1} parent=11 // pred_check_branch
          %306 = sbr.rel (%p304) target = $region32
        $region31: #{code_discriminator_forward.1} parent=11 // pred_region
          %s308 = ssub.s32 96, 96
          %309 = vsyncadd [#allocation9], %s308
          %s311 = sshll.u32 [#allocation10], 4
          %s312 = int_to_ptr.vmem [resolvable:$true] %s311
          %314 = dma.hbm_to_vmem [thread:$0]  %s5, 96, %s312, [#allocation9]
        $region32: #{code_discriminator_forward.1} parent=11 // pred_fallthru
          _
        // Predicated region
        $region33: #{code_discriminator_forward.1} parent=11 // pred_check
          %p315 = pneg %p173
        $region34: #{code_discriminator_forward.1} parent=11 // pred_check_branch
          %317 = sbr.rel (%p315) target = $region36
        $region35: #{code_discriminator_forward.1} parent=11 // pred_region
          %s319 = ssub.s32 96, 96
          %320 = vsyncadd [#allocation12], %s319
          %s322 = sshll.u32 [#allocation11], 4
          %s323 = int_to_ptr.vmem [resolvable:$true] %s322
          %325 = dma.hbm_to_vmem [thread:$0]  %s6, 96, %s323, [#allocation12]
        $region36: #{code_discriminator_forward.1} parent=11 // pred_fallthru
          _
        // Predicated region
        $region37: #{code_discriminator_forward.1} parent=11 // pred_check
          %p326 = pneg %p194
        $region38: #{code_discriminator_forward.1} parent=11 // pred_check_branch
          %328 = sbr.rel (%p326) target = $region40
        $region39: #{code_discriminator_forward.1} parent=11 // pred_region
          %s330 = ssub.s32 96, 96
          %331 = vsyncadd [#allocation12], %s330
          %s333 = sshll.u32 [#allocation13], 4
          %s334 = int_to_ptr.vmem [resolvable:$true] %s333
          %336 = dma.hbm_to_vmem [thread:$0]  %s7, 96, %s334, [#allocation12]
        $region40: #{code_discriminator_forward.1} parent=11 // pred_fallthru
          _
        // Predicated region
        $region41: #{code_discriminator_forward.1} parent=11 // pred_check
          %p337 = pneg %p215
        $region42: #{code_discriminator_forward.1} parent=11 // pred_check_branch
          %339 = sbr.rel (%p337) target = $region44
        $region43: #{code_discriminator_forward.1} parent=11 // pred_region
          _
        $region44: #{code_discriminator_forward.1} parent=11 // pred_fallthru
          _
      $region12: #{code_discriminator_forward.1} parent=5 // pred_fallthru
        _
      %p340 = scmp.lt.s32.totalorder %s21, 2
      // Predicated region
      $region45: #{code_discriminator_forward.1} parent=5 // pred_check
        %p341 = pneg %p340
      $region46: #{code_discriminator_forward.1} parent=5 // pred_check_branch
        %343 = sbr.rel (%p341) target = $region48
      $region47: #{code_discriminator_forward.1} parent=5 // pred_region
        // Predicated region
        $region49: #{code_discriminator_forward.1} parent=47 // pred_check
          %p344 = pneg %p41
        $region50: #{code_discriminator_forward.1} parent=47 // pred_check_branch
          %346 = sbr.rel (%p344) target = $region52
        $region51: #{code_discriminator_forward.1} parent=47 // pred_region
          %p347 = scmp.lt.s32.totalorder %s21, 1
          %s348 = scalar_select %p347, %s21, 1
          %s349 = smul.addr %s348, 2
          %s350 = smul.addr %s349, 8
          %s351 = scalar_lea.vmem %s0, %s350
        $region52: #{code_discriminator_forward.1} parent=47 // pred_fallthru
          _
      $region48: #{code_discriminator_forward.1} parent=5 // pred_fallthru
        _
      %p352 = scmp.le.s32.totalorder 1, %s21
      %p353 = scmp.lt.s32.totalorder %s21, 3
      %p354 = pnand %p352, %p353
      %p355 = pneg %p354
      // Predicated region
      $region53: #{code_discriminator_forward.1} parent=5 // pred_check
        _
      $region54: #{code_discriminator_forward.1} parent=5 // pred_check_branch
        %357 = sbr.rel (%p354) target = $region56
      $region55: #{code_discriminator_forward.1} parent=5 // pred_region
        %s358 = ssub.s32 %s21, 1
        // Predicated region
        $region57: #{code_discriminator_forward.1} parent=55 // pred_check
          %p359 = pneg %p68
        $region58: #{code_discriminator_forward.1} parent=55 // pred_check_branch
          %361 = sbr.rel (%p359) target = $region60
        $region59: #{code_discriminator_forward.1} parent=55 // pred_region
          %362 = dma.done [#allocation4], 6144
        $region60: #{code_discriminator_forward.1} parent=55 // pred_fallthru
          _
        // Predicated region
        $region61: #{code_discriminator_forward.1} parent=55 // pred_check
          %p363 = pneg %p89
        $region62: #{code_discriminator_forward.1} parent=55 // pred_check_branch
          %365 = sbr.rel (%p363) target = $region64
        $region63: #{code_discriminator_forward.1} parent=55 // pred_region
          %366 = dma.done [#allocation6], 96
        $region64: #{code_discriminator_forward.1} parent=55 // pred_fallthru
          _
        // Predicated region
        $region65: #{code_discriminator_forward.1} parent=55 // pred_check
          %p367 = pneg %p110
        $region66: #{code_discriminator_forward.1} parent=55 // pred_check_branch
          %369 = sbr.rel (%p367) target = $region68
        $region67: #{code_discriminator_forward.1} parent=55 // pred_region
          %370 = dma.done [#allocation6], 96
        $region68: #{code_discriminator_forward.1} parent=55 // pred_fallthru
          _
        // Predicated region
        $region69: #{code_discriminator_forward.1} parent=55 // pred_check
          %p371 = pneg %p131
        $region70: #{code_discriminator_forward.1} parent=55 // pred_check_branch
          %373 = sbr.rel (%p371) target = $region72
        $region71: #{code_discriminator_forward.1} parent=55 // pred_region
          %374 = dma.done [#allocation9], 36864
        $region72: #{code_discriminator_forward.1} parent=55 // pred_fallthru
          _
        // Predicated region
        $region73: #{code_discriminator_forward.1} parent=55 // pred_check
          %p375 = pneg %p152
        $region74: #{code_discriminator_forward.1} parent=55 // pred_check_branch
          %377 = sbr.rel (%p375) target = $region76
        $region75: #{code_discriminator_forward.1} parent=55 // pred_region
          %378 = dma.done [#allocation9], 96
        $region76: #{code_discriminator_forward.1} parent=55 // pred_fallthru
          _
        // Predicated region
        $region77: #{code_discriminator_forward.1} parent=55 // pred_check
          %p379 = pneg %p173
        $region78: #{code_discriminator_forward.1} parent=55 // pred_check_branch
          %381 = sbr.rel (%p379) target = $region80
        $region79: #{code_discriminator_forward.1} parent=55 // pred_region
          %382 = dma.done [#allocation12], 96
        $region80: #{code_discriminator_forward.1} parent=55 // pred_fallthru
          _
        // Predicated region
        $region81: #{code_discriminator_forward.1} parent=55 // pred_check
          %p383 = pneg %p194
        $region82: #{code_discriminator_forward.1} parent=55 // pred_check_branch
          %385 = sbr.rel (%p383) target = $region84
        $region83: #{code_discriminator_forward.1} parent=55 // pred_region
          %386 = dma.done [#allocation12], 96
        $region84: #{code_discriminator_forward.1} parent=55 // pred_fallthru
          _
        %p387 = scmp.lt.s32.totalorder %s26, 1
        %s388 = scalar_select %p387, %s26, 1
        %s389 = smul.addr %s388, 2
        %s390 = smul.addr %s389, 8
        %s391 = scalar_lea.vmem %s0, %s390
        %p392 = pneg %p47
        %p393 = pneg %p44
        %p394 = pneg %p68
        %p395 = pneg %p65
        %p396 = pneg %p89
        %p397 = pneg %p86
        %p398 = pneg %p110
        %p399 = pneg %p107
        %p400 = pneg %p131
        %p401 = pneg %p128
        %p402 = pneg %p152
        %p403 = pneg %p149
        %p404 = pneg %p173
        %p405 = pneg %p170
        %p406 = pneg %p194
        %p407 = pneg %p191
        %p408 = pneg %p215
        %p409 = pneg %p212
        %p410 = pneg %p241
        %p411 = pneg %p238
        %p412 = scmp.lt.s32.totalorder %s26, 1
        %s413 = scalar_select %p412, %s26, 1
        %s414 = smul.addr %s413, 2
        %s415 = smul.addr %s414, 8
        %s416 = scalar_lea.vmem %s9, %s415
        %p417 = scmp.lt.s32.totalorder %s26, 1
        %s418 = scalar_select %p417, %s26, 1
        %s419 = smul.addr %s418, 2
        %s420 = smul.addr %s419, 8
        %s421 = scalar_lea.vmem %s0, %s420
        %p422 = scmp.lt.s32.totalorder %s26, 1
        %s423 = scalar_select %p422, %s26, 1
        %s424 = smul.addr %s423, 2
        %s425 = smul.addr %s424, 8
        %s426 = scalar_lea.vmem %s9, %s425
        %v428 = vld [vmem:[%s421] sm:$0xff]
        %v429 = vld [vmem:[%s421 + $0x8] sm:$0xff]
        %v430 = vpack.c.bf16 %v429, %v428
        %v431 = vld [vmem:[#allocation3] sm:$0xff]
        %v432 = vld [vmem:[#allocation3 + $0x8] sm:$0xff]
        %v433 = vld [vmem:[#allocation3 + $0x10] sm:$0xff]
        %v434 = vld [vmem:[#allocation3 + $0x18] sm:$0xff]
        %v435 = vld [vmem:[#allocation3 + $0x20] sm:$0xff]
        %v436 = vld [vmem:[#allocation3 + $0x28] sm:$0xff]
        %v437 = vld [vmem:[#allocation3 + $0x30] sm:$0xff]
        %v438 = vld [vmem:[#allocation3 + $0x38] sm:$0xff]
        %v439 = vld [vmem:[#allocation3 + $0x40] sm:$0xff]
        %v440 = vld [vmem:[#allocation3 + $0x48] sm:$0xff]
        %v441 = vld [vmem:[#allocation3 + $0x50] sm:$0xff]
        %v442 = vld [vmem:[#allocation3 + $0x58] sm:$0xff]
        %v443 = vld [vmem:[#allocation3 + $0x60] sm:$0xff]
        %v444 = vld [vmem:[#allocation3 + $0x68] sm:$0xff]
        %v445 = vld [vmem:[#allocation3 + $0x70] sm:$0xff]
        %v446 = vld [vmem:[#allocation3 + $0x78] sm:$0xff]
        %v447 = vld [vmem:[#allocation3 + $0x80] sm:$0xff]
        %v448 = vld [vmem:[#allocation3 + $0x88] sm:$0xff]
        %v449 = vld [vmem:[#allocation3 + $0x90] sm:$0xff]
        %v450 = vld [vmem:[#allocation3 + $0x98] sm:$0xff]
        %v451 = vld [vmem:[#allocation3 + $0xa0] sm:$0xff]
        %v452 = vld [vmem:[#allocation3 + $0xa8] sm:$0xff]
        %v453 = vld [vmem:[#allocation3 + $0xb0] sm:$0xff]
        %v454 = vld [vmem:[#allocation3 + $0xb8] sm:$0xff]
        %v455 = vld [vmem:[#allocation3 + $0xc0] sm:$0xff]
        %v456 = vld [vmem:[#allocation3 + $0xc8] sm:$0xff]
        %v457 = vld [vmem:[#allocation3 + $0xd0] sm:$0xff]
        %v458 = vld [vmem:[#allocation3 + $0xd8] sm:$0xff]
        %v459 = vld [vmem:[#allocation3 + $0xe0] sm:$0xff]
        %v460 = vld [vmem:[#allocation3 + $0xe8] sm:$0xff]
        %v461 = vld [vmem:[#allocation3 + $0xf0] sm:$0xff]
        %v462 = vld [vmem:[#allocation3 + $0xf8] sm:$0xff]
        %v463 = vld [vmem:[#allocation3 + $0x100] sm:$0xff]
        %v464 = vld [vmem:[#allocation3 + $0x108] sm:$0xff]
        %v465 = vld [vmem:[#allocation3 + $0x110] sm:$0xff]
        %v466 = vld [vmem:[#allocation3 + $0x118] sm:$0xff]
        %v467 = vld [vmem:[#allocation3 + $0x120] sm:$0xff]
        %v468 = vld [vmem:[#allocation3 + $0x128] sm:$0xff]
        %v469 = vld [vmem:[#allocation3 + $0x130] sm:$0xff]
        %v470 = vld [vmem:[#allocation3 + $0x138] sm:$0xff]
        %v471 = vld [vmem:[#allocation3 + $0x140] sm:$0xff]
        %v472 = vld [vmem:[#allocation3 + $0x148] sm:$0xff]
        %v473 = vld [vmem:[#allocation3 + $0x150] sm:$0xff]
        %v474 = vld [vmem:[#allocation3 + $0x158] sm:$0xff]
        %v475 = vld [vmem:[#allocation3 + $0x160] sm:$0xff]
        %v476 = vld [vmem:[#allocation3 + $0x168] sm:$0xff]
        %v477 = vld [vmem:[#allocation3 + $0x170] sm:$0xff]
        %v478 = vld [vmem:[#allocation3 + $0x178] sm:$0xff]
        %v527 = vunpack.c.l.b16 %v431
        %v528 = vunpack.c.h.b16 %v431
        %v529 = vunpack.c.l.b16 %v432
        %v530 = vunpack.c.h.b16 %v432
        %v531 = vunpack.c.l.b16 %v433
        %v532 = vunpack.c.h.b16 %v433
        %v533 = vunpack.c.l.b16 %v434
        %v534 = vunpack.c.h.b16 %v434
        %v535 = vunpack.c.l.b16 %v435
        %v536 = vunpack.c.h.b16 %v435
        %v537 = vunpack.c.l.b16 %v436
        %v538 = vunpack.c.h.b16 %v436
        %v539 = vunpack.c.l.b16 %v437
        %v540 = vunpack.c.h.b16 %v437
        %v541 = vunpack.c.l.b16 %v438
        %v542 = vunpack.c.h.b16 %v438
        %v543 = vunpack.c.l.b16 %v439
        %v544 = vunpack.c.h.b16 %v439
        %v545 = vunpack.c.l.b16 %v440
        %v546 = vunpack.c.h.b16 %v440
        %v547 = vunpack.c.l.b16 %v441
        %v548 = vunpack.c.h.b16 %v441
        %v549 = vunpack.c.l.b16 %v442
        %v550 = vunpack.c.h.b16 %v442
        %v551 = vunpack.c.l.b16 %v443
        %v552 = vunpack.c.h.b16 %v443
        %v553 = vunpack.c.l.b16 %v444
        %v554 = vunpack.c.h.b16 %v444
        %v555 = vunpack.c.l.b16 %v445
        %v556 = vunpack.c.h.b16 %v445
        %v557 = vunpack.c.l.b16 %v446
        %v558 = vunpack.c.h.b16 %v446
        %v559 = vunpack.c.l.b16 %v447
        %v560 = vunpack.c.h.b16 %v447
        %v561 = vunpack.c.l.b16 %v448
        %v562 = vunpack.c.h.b16 %v448
        %v563 = vunpack.c.l.b16 %v449
        %v564 = vunpack.c.h.b16 %v449
        %v565 = vunpack.c.l.b16 %v450
        %v566 = vunpack.c.h.b16 %v450
        %v567 = vunpack.c.l.b16 %v451
        %v568 = vunpack.c.h.b16 %v451
        %v569 = vunpack.c.l.b16 %v452
        %v570 = vunpack.c.h.b16 %v452
        %v571 = vunpack.c.l.b16 %v453
        %v572 = vunpack.c.h.b16 %v453
        %v573 = vunpack.c.l.b16 %v454
        %v574 = vunpack.c.h.b16 %v454
        %v575 = vunpack.c.l.b16 %v455
        %v576 = vunpack.c.h.b16 %v455
        %v577 = vunpack.c.l.b16 %v456
        %v578 = vunpack.c.h.b16 %v456
        %v579 = vunpack.c.l.b16 %v457
        %v580 = vunpack.c.h.b16 %v457
        %v581 = vunpack.c.l.b16 %v458
        %v582 = vunpack.c.h.b16 %v458
        %v583 = vunpack.c.l.b16 %v459
        %v584 = vunpack.c.h.b16 %v459
        %v585 = vunpack.c.l.b16 %v460
        %v586 = vunpack.c.h.b16 %v460
        %v587 = vunpack.c.l.b16 %v461
        %v588 = vunpack.c.h.b16 %v461
        %v589 = vunpack.c.l.b16 %v462
        %v590 = vunpack.c.h.b16 %v462
        %v591 = vunpack.c.l.b16 %v463
        %v592 = vunpack.c.h.b16 %v463
        %v593 = vunpack.c.l.b16 %v464
        %v594 = vunpack.c.h.b16 %v464
        %v595 = vunpack.c.l.b16 %v465
        %v596 = vunpack.c.h.b16 %v465
        %v597 = vunpack.c.l.b16 %v466
        %v598 = vunpack.c.h.b16 %v466
        %v599 = vunpack.c.l.b16 %v467
        %v600 = vunpack.c.h.b16 %v467
        %v601 = vunpack.c.l.b16 %v468
        %v602 = vunpack.c.h.b16 %v468
        %v603 = vunpack.c.l.b16 %v469
        %v604 = vunpack.c.h.b16 %v469
        %v605 = vunpack.c.l.b16 %v470
        %v606 = vunpack.c.h.b16 %v470
        %v607 = vunpack.c.l.b16 %v471
        %v608 = vunpack.c.h.b16 %v471
        %v609 = vunpack.c.l.b16 %v472
        %v610 = vunpack.c.h.b16 %v472
        %v611 = vunpack.c.l.b16 %v473
        %v612 = vunpack.c.h.b16 %v473
        %v613 = vunpack.c.l.b16 %v474
        %v614 = vunpack.c.h.b16 %v474
        %v615 = vunpack.c.l.b16 %v475
        %v616 = vunpack.c.h.b16 %v475
        %v617 = vunpack.c.l.b16 %v476
        %v618 = vunpack.c.h.b16 %v476
        %v619 = vunpack.c.l.b16 %v477
        %v620 = vunpack.c.h.b16 %v477
        %v621 = vunpack.c.l.b16 %v478
        %v622 = vunpack.c.h.b16 %v478
        %v623 = vpack.c.b16 %v533, %v527
        %v624 = vpack.c.b16 %v534, %v528
        %v625 = vpack.c.b16 %v535, %v529
        %v626 = vpack.c.b16 %v536, %v530
        %v627 = vpack.c.b16 %v537, %v531
        %v628 = vpack.c.b16 %v538, %v532
        %v629 = vpack.c.b16 %v545, %v539
        %v630 = vpack.c.b16 %v546, %v540
        %v631 = vpack.c.b16 %v547, %v541
        %v632 = vpack.c.b16 %v548, %v542
        %v633 = vpack.c.b16 %v549, %v543
        %v634 = vpack.c.b16 %v550, %v544
        %v635 = vpack.c.b16 %v557, %v551
        %v636 = vpack.c.b16 %v558, %v552
        %v637 = vpack.c.b16 %v559, %v553
        %v638 = vpack.c.b16 %v560, %v554
        %v639 = vpack.c.b16 %v561, %v555
        %v640 = vpack.c.b16 %v562, %v556
        %v641 = vpack.c.b16 %v569, %v563
        %v642 = vpack.c.b16 %v570, %v564
        %v643 = vpack.c.b16 %v571, %v565
        %v644 = vpack.c.b16 %v572, %v566
        %v645 = vpack.c.b16 %v573, %v567
        %v646 = vpack.c.b16 %v574, %v568
        %v647 = vpack.c.b16 %v581, %v575
        %v648 = vpack.c.b16 %v582, %v576
        %v649 = vpack.c.b16 %v583, %v577
        %v650 = vpack.c.b16 %v584, %v578
        %v651 = vpack.c.b16 %v585, %v579
        %v652 = vpack.c.b16 %v586, %v580
        %v653 = vpack.c.b16 %v593, %v587
        %v654 = vpack.c.b16 %v594, %v588
        %v655 = vpack.c.b16 %v595, %v589
        %v656 = vpack.c.b16 %v596, %v590
        %v657 = vpack.c.b16 %v597, %v591
        %v658 = vpack.c.b16 %v598, %v592
        %v659 = vpack.c.b16 %v605, %v599
        %v660 = vpack.c.b16 %v606, %v600
        %v661 = vpack.c.b16 %v607, %v601
        %v662 = vpack.c.b16 %v608, %v602
        %v663 = vpack.c.b16 %v609, %v603
        %v664 = vpack.c.b16 %v610, %v604
        %v665 = vpack.c.b16 %v617, %v611
        %v666 = vpack.c.b16 %v618, %v612
        %v667 = vpack.c.b16 %v619, %v613
        %v668 = vpack.c.b16 %v620, %v614
        %v669 = vpack.c.b16 %v621, %v615
        %v670 = vpack.c.b16 %v622, %v616
        %719 = vmatprep.subr.bf16.mxu0 %v666
        %720 = vmatpush1.bf16.msra.mxu0 %v665
        %721 = vmatprep.subr.bf16.mxu0 %v660
        %722 = vmatpush1.bf16.msra.mxu0 %v659
        %723 = vmatprep.subr.bf16.mxu0 %v654
        %724 = vmatpush1.bf16.msra.mxu0 %v653
        %725 = vmatprep.subr.bf16.mxu0 %v648
        %726 = vmatpush1.bf16.msra.mxu0 %v647
        %727 = vmatprep.subr.bf16.mxu0 %v642
        %728 = vmatpush1.bf16.msra.mxu0 %v641
        %729 = vmatprep.subr.bf16.mxu0 %v636
        %730 = vmatpush1.bf16.msra.mxu0 %v635
        %731 = vmatprep.subr.bf16.mxu0 %v630
        %732 = vmatpush1.bf16.msra.mxu0 %v629
        %733 = vmatprep.subr.bf16.mxu0 %v624
        %734 = vmatpush1.bf16.msra.mxu0 %v623
        %735 = vmatprep.subr.bf16.mxu0 0
        %736 = vmatpush2.bf16.msra.mxu0 0
        %737 = vmatprep.subr.bf16.mxu0 0
        %738 = vmatpush2.bf16.msra.mxu0 0
        %739 = vmatprep.subr.bf16.mxu0 0
        %740 = vmatpush2.bf16.msra.mxu0 0
        %741 = vmatprep.subr.bf16.mxu0 0
        %742 = vmatpush2.bf16.msra.mxu0 0
        %743 = vmatprep.subr.bf16.mxu0 0
        %744 = vmatpush2.bf16.msra.mxu0 0
        %745 = vmatprep.subr.bf16.mxu0 0
        %746 = vmatpush2.bf16.msra.mxu0 0
        %747 = vmatprep.subr.bf16.mxu0 0
        %748 = vmatpush2.bf16.msra.mxu0 0
        %749 = vmatprep.subr.bf16.mxu0 0
        %750 = vmatpush2.bf16.msra.mxu0 0
        %751 = vmatprep.mubr.bf16.mxu0 0
        %752 = vmatmul.mubr.bf16.gmra.mxu0 %v430
        %v753 = vpop.f32.mrf.mxu0
        %v754 = vadd.f32 0.0, %v753
        %v755 = vpop.f32.mrf.mxu0
        %v756 = vadd.f32 0.0, %v755
        %v757 = vpop.f32.mrf.mxu0
        %v758 = vadd.f32 0.0, %v757
        %v759 = vpop.f32.mrf.mxu0
        %v760 = vadd.f32 0.0, %v759
        %761 = vdwg.mxu0
        %762 = vmatprep.subr.bf16.mxu0 %v668
        %763 = vmatpush1.bf16.msra.mxu0 %v667
        %764 = vmatprep.subr.bf16.mxu0 %v662
        %765 = vmatpush1.bf16.msra.mxu0 %v661
        %766 = vmatprep.subr.bf16.mxu0 %v656
        %767 = vmatpush1.bf16.msra.mxu0 %v655
        %768 = vmatprep.subr.bf16.mxu0 %v650
        %769 = vmatpush1.bf16.msra.mxu0 %v649
        %770 = vmatprep.subr.bf16.mxu0 %v644
        %771 = vmatpush1.bf16.msra.mxu0 %v643
        %772 = vmatprep.subr.bf16.mxu0 %v638
        %773 = vmatpush1.bf16.msra.mxu0 %v637
        %774 = vmatprep.subr.bf16.mxu0 %v632
        %775 = vmatpush1.bf16.msra.mxu0 %v631
        %776 = vmatprep.subr.bf16.mxu0 %v626
        %777 = vmatpush1.bf16.msra.mxu0 %v625
        %778 = vmatprep.subr.bf16.mxu0 0
        %779 = vmatpush2.bf16.msra.mxu0 0
        %780 = vmatprep.subr.bf16.mxu0 0
        %781 = vmatpush2.bf16.msra.mxu0 0
        %782 = vmatprep.subr.bf16.mxu0 0
        %783 = vmatpush2.bf16.msra.mxu0 0
        %784 = vmatprep.subr.bf16.mxu0 0
        %785 = vmatpush2.bf16.msra.mxu0 0
        %786 = vmatprep.subr.bf16.mxu0 0
        %787 = vmatpush2.bf16.msra.mxu0 0
        %788 = vmatprep.subr.bf16.mxu0 0
        %789 = vmatpush2.bf16.msra.mxu0 0
        %790 = vmatprep.subr.bf16.mxu0 0
        %791 = vmatpush2.bf16.msra.mxu0 0
        %792 = vmatprep.subr.bf16.mxu0 0
        %793 = vmatpush2.bf16.msra.mxu0 0
        %794 = vmatprep.mubr.bf16.mxu0 0
        %795 = vmatmul.mubr.bf16.gmra.mxu0 %v430
        %v796 = vpop.f32.mrf.mxu0
        %v797 = vadd.f32 0.0, %v796
        %v798 = vpop.f32.mrf.mxu0
        %v799 = vadd.f32 0.0, %v798
        %v800 = vpop.f32.mrf.mxu0
        %v801 = vadd.f32 0.0, %v800
        %v802 = vpop.f32.mrf.mxu0
        %v803 = vadd.f32 0.0, %v802
        %804 = vdwg.mxu0
        %805 = vmatprep.subr.bf16.mxu0 %v670
        %806 = vmatpush1.bf16.msra.mxu0 %v669
        %807 = vmatprep.subr.bf16.mxu0 %v664
        %808 = vmatpush1.bf16.msra.mxu0 %v663
        %809 = vmatprep.subr.bf16.mxu0 %v658
        %810 = vmatpush1.bf16.msra.mxu0 %v657
        %811 = vmatprep.subr.bf16.mxu0 %v652
        %812 = vmatpush1.bf16.msra.mxu0 %v651
        %813 = vmatprep.subr.bf16.mxu0 %v646
        %814 = vmatpush1.bf16.msra.mxu0 %v645
        %815 = vmatprep.subr.bf16.mxu0 %v640
        %816 = vmatpush1.bf16.msra.mxu0 %v639
        %817 = vmatprep.subr.bf16.mxu0 %v634
        %818 = vmatpush1.bf16.msra.mxu0 %v633
        %819 = vmatprep.subr.bf16.mxu0 %v628
        %820 = vmatpush1.bf16.msra.mxu0 %v627
        %821 = vmatprep.subr.bf16.mxu0 0
        %822 = vmatpush2.bf16.msra.mxu0 0
        %823 = vmatprep.subr.bf16.mxu0 0
        %824 = vmatpush2.bf16.msra.mxu0 0
        %825 = vmatprep.subr.bf16.mxu0 0
        %826 = vmatpush2.bf16.msra.mxu0 0
        %827 = vmatprep.subr.bf16.mxu0 0
        %828 = vmatpush2.bf16.msra.mxu0 0
        %829 = vmatprep.subr.bf16.mxu0 0
        %830 = vmatpush2.bf16.msra.mxu0 0
        %831 = vmatprep.subr.bf16.mxu0 0
        %832 = vmatpush2.bf16.msra.mxu0 0
        %833 = vmatprep.subr.bf16.mxu0 0
        %834 = vmatpush2.bf16.msra.mxu0 0
        %835 = vmatprep.subr.bf16.mxu0 0
        %836 = vmatpush2.bf16.msra.mxu0 0
        %837 = vmatprep.mubr.bf16.mxu0 0
        %838 = vmatmul.mubr.bf16.gmra.mxu0 %v430
        %v839 = vpop.f32.mrf.mxu0
        %v840 = vadd.f32 0.0, %v839
        %v841 = vpop.f32.mrf.mxu0
        %v842 = vadd.f32 0.0, %v841
        %v843 = vpop.f32.mrf.mxu0
        %v844 = vadd.f32 0.0, %v843
        %v845 = vpop.f32.mrf.mxu0
        %v846 = vadd.f32 0.0, %v845
        %847 = vdwg.mxu0
        %v848 = vld [vmem:[#allocation5] sm:$0x3f]
        %v849 = vld [vmem:[#allocation7] sm:$0x3f]
        %v850 = vadd.f32 %v754, %v758
        %v851 = vrot.slane %v850, 4
        %v852 = vadd.f32 %v850, %v851
        %v853 = vrot.slane %v852, 2
        %v854 = vadd.f32 %v852, %v853
        %v855 = vrot.slane %v854, 1
        %v856 = vadd.f32 %v854, %v855
        %v857 = vadd.f32 %v756, %v760
        %v858 = vrot.slane %v857, 4
        %v859 = vadd.f32 %v857, %v858
        %v860 = vrot.slane %v859, 2
        %v861 = vadd.f32 %v859, %v860
        %v862 = vrot.slane %v861, 1
        %v863 = vadd.f32 %v861, %v862
        %v864 = vadd.f32 %v797, %v801
        %v865 = vrot.slane %v864, 4
        %v866 = vadd.f32 %v864, %v865
        %v867 = vrot.slane %v866, 2
        %v868 = vadd.f32 %v866, %v867
        %v869 = vrot.slane %v868, 1
        %v870 = vadd.f32 %v868, %v869
        %v871 = vadd.f32 %v799, %v803
        %v872 = vrot.slane %v871, 4
        %v873 = vadd.f32 %v871, %v872
        %v874 = vrot.slane %v873, 2
        %v875 = vadd.f32 %v873, %v874
        %v876 = vrot.slane %v875, 1
        %v877 = vadd.f32 %v875, %v876
        %v878 = vadd.f32 %v840, %v844
        %v879 = vrot.slane %v878, 4
        %v880 = vadd.f32 %v878, %v879
        %v881 = vrot.slane %v880, 2
        %v882 = vadd.f32 %v880, %v881
        %v883 = vrot.slane %v882, 1
        %v884 = vadd.f32 %v882, %v883
        %v885 = vadd.f32 %v842, %v846
        %v886 = vrot.slane %v885, 4
        %v887 = vadd.f32 %v885, %v886
        %v888 = vrot.slane %v887, 2
        %v889 = vadd.f32 %v887, %v888
        %v890 = vrot.slane %v889, 1
        %v891 = vadd.f32 %v889, %v890
        %v892 = vmul.f32 %v754, %v754
        %v893 = vmul.f32 %v756, %v756
        %v894 = vmul.f32 %v797, %v797
        %v895 = vmul.f32 %v799, %v799
        %v896 = vmul.f32 %v840, %v840
        %v897 = vmul.f32 %v842, %v842
        %v898 = vmul.f32 %v758, %v758
        %v899 = vmul.f32 %v760, %v760
        %v900 = vmul.f32 %v801, %v801
        %v901 = vmul.f32 %v803, %v803
        %v902 = vmul.f32 %v844, %v844
        %v903 = vmul.f32 %v846, %v846
        %v904 = vadd.f32 %v892, %v898
        %v905 = vrot.slane %v904, 4
        %v906 = vadd.f32 %v904, %v905
        %v907 = vrot.slane %v906, 2
        %v908 = vadd.f32 %v906, %v907
        %v909 = vrot.slane %v908, 1
        %v910 = vadd.f32 %v908, %v909
        %v911 = vadd.f32 %v893, %v899
        %v912 = vrot.slane %v911, 4
        %v913 = vadd.f32 %v911, %v912
        %v914 = vrot.slane %v913, 2
        %v915 = vadd.f32 %v913, %v914
        %v916 = vrot.slane %v915, 1
        %v917 = vadd.f32 %v915, %v916
        %v918 = vadd.f32 %v894, %v900
        %v919 = vrot.slane %v918, 4
        %v920 = vadd.f32 %v918, %v919
        %v921 = vrot.slane %v920, 2
        %v922 = vadd.f32 %v920, %v921
        %v923 = vrot.slane %v922, 1
        %v924 = vadd.f32 %v922, %v923
        %v925 = vadd.f32 %v895, %v901
        %v926 = vrot.slane %v925, 4
        %v927 = vadd.f32 %v925, %v926
        %v928 = vrot.slane %v927, 2
        %v929 = vadd.f32 %v927, %v928
        %v930 = vrot.slane %v929, 1
        %v931 = vadd.f32 %v929, %v930
        %v932 = vadd.f32 %v896, %v902
        %v933 = vrot.slane %v932, 4
        %v934 = vadd.f32 %v932, %v933
        %v935 = vrot.slane %v934, 2
        %v936 = vadd.f32 %v934, %v935
        %v937 = vrot.slane %v936, 1
        %v938 = vadd.f32 %v936, %v937
        %v939 = vadd.f32 %v897, %v903
        %v940 = vrot.slane %v939, 4
        %v941 = vadd.f32 %v939, %v940
        %v942 = vrot.slane %v941, 2
        %v943 = vadd.f32 %v941, %v942
        %v944 = vrot.slane %v943, 1
        %v945 = vadd.f32 %v943, %v944
        %v946 = vmul.f32 %v856, 0.0625
        %v947 = vmul.f32 %v863, 0.0625
        %v948 = vmul.f32 %v870, 0.0625
        %v949 = vmul.f32 %v877, 0.0625
        %v950 = vmul.f32 %v884, 0.0625
        %v951 = vmul.f32 %v891, 0.0625
        %v952 = vmul.f32 %v910, 0.0625
        %v953 = vmul.f32 %v917, 0.0625
        %v954 = vmul.f32 %v924, 0.0625
        %v955 = vmul.f32 %v931, 0.0625
        %v956 = vmul.f32 %v938, 0.0625
        %v957 = vmul.f32 %v945, 0.0625
        %v958 = vmul.f32 %v946, %v946
        %v959 = vmul.f32 %v947, %v947
        %v960 = vmul.f32 %v948, %v948
        %v961 = vmul.f32 %v949, %v949
        %v962 = vmul.f32 %v950, %v950
        %v963 = vmul.f32 %v951, %v951
        %v964 = vsub.f32 %v952, %v958
        %v965 = vsub.f32 %v953, %v959
        %v966 = vsub.f32 %v954, %v960
        %v967 = vsub.f32 %v955, %v961
        %v968 = vsub.f32 %v956, %v962
        %v969 = vsub.f32 %v957, %v963
        %v970 = vmax.f32 %v964, 0.0
        %v971 = vmax.f32 %v965, 0.0
        %v972 = vmax.f32 %v966, 0.0
        %v973 = vmax.f32 %v967, 0.0
        %v974 = vmax.f32 %v968, 0.0
        %v975 = vmax.f32 %v969, 0.0
        %v976 = vadd.f32 %v970, 1e-05
        %v977 = vadd.f32 %v971, 1e-05
        %v978 = vadd.f32 %v972, 1e-05
        %v979 = vadd.f32 %v973, 1e-05
        %v980 = vadd.f32 %v974, 1e-05
        %v981 = vadd.f32 %v975, 1e-05
        %v982 = vrsqrt.pop %v976
        %v983 = vrsqrt.pop %v977
        %v984 = vrsqrt.pop %v978
        %v985 = vrsqrt.pop %v979
        %v986 = vrsqrt.pop %v980
        %v987 = vrsqrt.pop %v981
        %v994 = vcombine.low %v982, %v983
        %v995 = vcombine.low %v984, %v985
        %v996 = vcombine.low %v986, %v987
        %v998 = vunpack.c.l.s4 1966171168
        %v999 = vunpack.c.0.s8 %v998
        %v1000 = vlaneseq
        %v1001 = vshrl.u32 %v1000, 7
        %v1002 = vsub.s32 %v999, %v1001
        %v1003 = vrot.slane %v994, %v1002
        %v1005 = vunpack.c.l.s4 1966171168
        %v1006 = vunpack.c.0.s8 %v1005
        %v1007 = vlaneseq
        %v1008 = vshrl.u32 %v1007, 7
        %v1009 = vsub.s32 %v1006, %v1008
        %v1010 = vrot.slane %v995, %v1009
        %v1012 = vunpack.c.l.s4 1966171168
        %v1013 = vunpack.c.0.s8 %v1012
        %v1014 = vlaneseq
        %v1015 = vshrl.u32 %v1014, 7
        %v1016 = vsub.s32 %v1013, %v1015
        %v1017 = vrot.slane %v996, %v1016
        %v1018 = vcombine.low %v1003, %v1010
        %v1020 = vunpack.c.l.s4 1966171168
        %v1021 = vunpack.c.0.s8 %v1020
        %v1022 = vlaneseq
        %v1023 = vshrl.u32 %v1022, 7
        %v1024 = vsub.s32 %v1021, %v1023
        %v1025 = vrot.slane %v1018, %v1024
        %v1027 = vunpack.c.l.s4 1966171168
        %v1028 = vunpack.c.0.s8 %v1027
        %v1029 = vlaneseq
        %v1030 = vshrl.u32 %v1029, 7
        %v1031 = vsub.s32 %v1028, %v1030
        %v1032 = vrot.slane %v1017, %v1031
        %v1033 = vcombine.low %v1025, %v1032
        %v1035 = vmul.f32 %v848, %v1033
        %v1037 = vlaneseq
        %v1038 = vshrl.u32 %v1037, 7
        %v1039 = vsub.s32 0, %v1038
        %v1040 = vrot.slane %v1035, %v1039
        %v1041 = vlaneseq
        %v1042 = vshrl.u32 %v1041, 7
        %v1043 = vsub.s32 1, %v1042
        %v1044 = vrot.slane %v1035, %v1043
        %v1045 = vlaneseq
        %v1046 = vshrl.u32 %v1045, 7
        %v1047 = vsub.s32 2, %v1046
        %v1048 = vrot.slane %v1035, %v1047
        %v1049 = vlaneseq
        %v1050 = vshrl.u32 %v1049, 7
        %v1051 = vsub.s32 3, %v1050
        %v1052 = vrot.slane %v1035, %v1051
        %v1053 = vlaneseq
        %v1054 = vshrl.u32 %v1053, 7
        %v1055 = vsub.s32 4, %v1054
        %v1056 = vrot.slane %v1035, %v1055
        %v1057 = vlaneseq
        %v1058 = vshrl.u32 %v1057, 7
        %v1059 = vsub.s32 5, %v1058
        %v1060 = vrot.slane %v1035, %v1059
        %v1067 = vmul.f32 %v946, %v1040
        %v1068 = vmul.f32 %v947, %v1044
        %v1069 = vmul.f32 %v948, %v1048
        %v1070 = vmul.f32 %v949, %v1052
        %v1071 = vmul.f32 %v950, %v1056
        %v1072 = vmul.f32 %v951, %v1060
        %v1079 = vcombine.low %v1067, %v1068
        %v1080 = vcombine.low %v1069, %v1070
        %v1081 = vcombine.low %v1071, %v1072
        %v1083 = vunpack.c.l.s4 1966171168
        %v1084 = vunpack.c.0.s8 %v1083
        %v1085 = vlaneseq
        %v1086 = vshrl.u32 %v1085, 7
        %v1087 = vsub.s32 %v1084, %v1086
        %v1088 = vrot.slane %v1079, %v1087
        %v1090 = vunpack.c.l.s4 1966171168
        %v1091 = vunpack.c.0.s8 %v1090
        %v1092 = vlaneseq
        %v1093 = vshrl.u32 %v1092, 7
        %v1094 = vsub.s32 %v1091, %v1093
        %v1095 = vrot.slane %v1080, %v1094
        %v1097 = vunpack.c.l.s4 1966171168
        %v1098 = vunpack.c.0.s8 %v1097
        %v1099 = vlaneseq
        %v1100 = vshrl.u32 %v1099, 7
        %v1101 = vsub.s32 %v1098, %v1100
        %v1102 = vrot.slane %v1081, %v1101
        %v1103 = vcombine.low %v1088, %v1095
        %v1105 = vunpack.c.l.s4 1966171168
        %v1106 = vunpack.c.0.s8 %v1105
        %v1107 = vlaneseq
        %v1108 = vshrl.u32 %v1107, 7
        %v1109 = vsub.s32 %v1106, %v1108
        %v1110 = vrot.slane %v1103, %v1109
        %v1112 = vunpack.c.l.s4 1966171168
        %v1113 = vunpack.c.0.s8 %v1112
        %v1114 = vlaneseq
        %v1115 = vshrl.u32 %v1114, 7
        %v1116 = vsub.s32 %v1113, %v1115
        %v1117 = vrot.slane %v1102, %v1116
        %v1118 = vcombine.low %v1110, %v1117
        %v1120 = vsub.f32 %v849, %v1118
        %v1121 = vmul.f32 %v754, %v1040
        %v1122 = vmul.f32 %v756, %v1044
        %v1123 = vmul.f32 %v797, %v1048
        %v1124 = vmul.f32 %v799, %v1052
        %v1125 = vmul.f32 %v840, %v1056
        %v1126 = vmul.f32 %v842, %v1060
        %v1127 = vmul.f32 %v758, %v1040
        %v1128 = vmul.f32 %v760, %v1044
        %v1129 = vmul.f32 %v801, %v1048
        %v1130 = vmul.f32 %v803, %v1052
        %v1131 = vmul.f32 %v844, %v1056
        %v1132 = vmul.f32 %v846, %v1060
        %v1134 = vlaneseq
        %v1135 = vshrl.u32 %v1134, 7
        %v1136 = vsub.s32 0, %v1135
        %v1137 = vrot.slane %v1120, %v1136
        %v1138 = vlaneseq
        %v1139 = vshrl.u32 %v1138, 7
        %v1140 = vsub.s32 1, %v1139
        %v1141 = vrot.slane %v1120, %v1140
        %v1142 = vlaneseq
        %v1143 = vshrl.u32 %v1142, 7
        %v1144 = vsub.s32 2, %v1143
        %v1145 = vrot.slane %v1120, %v1144
        %v1146 = vlaneseq
        %v1147 = vshrl.u32 %v1146, 7
        %v1148 = vsub.s32 3, %v1147
        %v1149 = vrot.slane %v1120, %v1148
        %v1150 = vlaneseq
        %v1151 = vshrl.u32 %v1150, 7
        %v1152 = vsub.s32 4, %v1151
        %v1153 = vrot.slane %v1120, %v1152
        %v1154 = vlaneseq
        %v1155 = vshrl.u32 %v1154, 7
        %v1156 = vsub.s32 5, %v1155
        %v1157 = vrot.slane %v1120, %v1156
        %v1164 = vadd.f32 %v1121, %v1137
        %v1165 = vadd.f32 %v1122, %v1141
        %v1166 = vadd.f32 %v1123, %v1145
        %v1167 = vadd.f32 %v1124, %v1149
        %v1168 = vadd.f32 %v1125, %v1153
        %v1169 = vadd.f32 %v1126, %v1157
        %v1170 = vadd.f32 %v1127, %v1137
        %v1171 = vadd.f32 %v1128, %v1141
        %v1172 = vadd.f32 %v1129, %v1145
        %v1173 = vadd.f32 %v1130, %v1149
        %v1174 = vadd.f32 %v1131, %v1153
        %v1175 = vadd.f32 %v1132, %v1157
        %vm1176 = vcmp.ge.f32.partialorder %v1164, 0.0
        %vm1177 = vcmp.ge.f32.partialorder %v1165, 0.0
        %vm1178 = vcmp.ge.f32.partialorder %v1166, 0.0
        %vm1179 = vcmp.ge.f32.partialorder %v1167, 0.0
        %vm1180 = vcmp.ge.f32.partialorder %v1168, 0.0
        %vm1181 = vcmp.ge.f32.partialorder %v1169, 0.0
        %vm1182 = vcmp.ge.f32.partialorder %v1170, 0.0
        %vm1183 = vcmp.ge.f32.partialorder %v1171, 0.0
        %vm1184 = vcmp.ge.f32.partialorder %v1172, 0.0
        %vm1185 = vcmp.ge.f32.partialorder %v1173, 0.0
        %vm1186 = vcmp.ge.f32.partialorder %v1174, 0.0
        %vm1187 = vcmp.ge.f32.partialorder %v1175, 0.0
        %v1188 = vmul.f32 %v1164, 0.2
        %v1189 = vmul.f32 %v1165, 0.2
        %v1190 = vmul.f32 %v1166, 0.2
        %v1191 = vmul.f32 %v1167, 0.2
        %v1192 = vmul.f32 %v1168, 0.2
        %v1193 = vmul.f32 %v1169, 0.2
        %v1194 = vmul.f32 %v1170, 0.2
        %v1195 = vmul.f32 %v1171, 0.2
        %v1196 = vmul.f32 %v1172, 0.2
        %v1197 = vmul.f32 %v1173, 0.2
        %v1198 = vmul.f32 %v1174, 0.2
        %v1199 = vmul.f32 %v1175, 0.2
        %v1200 = vsel %vm1176, %v1164, %v1188
        %v1201 = vsel %vm1177, %v1165, %v1189
        %v1202 = vsel %vm1178, %v1166, %v1190
        %v1203 = vsel %vm1179, %v1167, %v1191
        %v1204 = vsel %vm1180, %v1168, %v1192
        %v1205 = vsel %vm1181, %v1169, %v1193
        %v1206 = vsel %vm1182, %v1170, %v1194
        %v1207 = vsel %vm1183, %v1171, %v1195
        %v1208 = vsel %vm1184, %v1172, %v1196
        %v1209 = vsel %vm1185, %v1173, %v1197
        %v1210 = vsel %vm1186, %v1174, %v1198
        %v1211 = vsel %vm1187, %v1175, %v1199
        %v1212 = vpack.c.bf16 %v1206, %v1200
        %v1213 = vpack.c.bf16 %v1207, %v1201
        %v1214 = vpack.c.bf16 %v1208, %v1202
        %v1215 = vpack.c.bf16 %v1209, %v1203
        %v1216 = vpack.c.bf16 %v1210, %v1204
        %v1217 = vpack.c.bf16 %v1211, %v1205
        %v1218 = vld [vmem:[#allocation8] sm:$0xff]
        %v1219 = vld [vmem:[#allocation8 + $0x8] sm:$0xff]
        %v1220 = vld [vmem:[#allocation8 + $0x10] sm:$0xff]
        %v1221 = vld [vmem:[#allocation8 + $0x18] sm:$0xff]
        %v1222 = vld [vmem:[#allocation8 + $0x20] sm:$0xff]
        %v1223 = vld [vmem:[#allocation8 + $0x28] sm:$0xff]
        %v1224 = vld [vmem:[#allocation8 + $0x30] sm:$0xff]
        %v1225 = vld [vmem:[#allocation8 + $0x38] sm:$0xff]
        %v1226 = vld [vmem:[#allocation8 + $0x40] sm:$0xff]
        %v1227 = vld [vmem:[#allocation8 + $0x48] sm:$0xff]
        %v1228 = vld [vmem:[#allocation8 + $0x50] sm:$0xff]
        %v1229 = vld [vmem:[#allocation8 + $0x58] sm:$0xff]
        %v1230 = vld [vmem:[#allocation8 + $0x60] sm:$0xff]
        %v1231 = vld [vmem:[#allocation8 + $0x68] sm:$0xff]
        %v1232 = vld [vmem:[#allocation8 + $0x70] sm:$0xff]
        %v1233 = vld [vmem:[#allocation8 + $0x78] sm:$0xff]
        %v1234 = vld [vmem:[#allocation8 + $0x80] sm:$0xff]
        %v1235 = vld [vmem:[#allocation8 + $0x88] sm:$0xff]
        %v1236 = vld [vmem:[#allocation8 + $0x90] sm:$0xff]
        %v1237 = vld [vmem:[#allocation8 + $0x98] sm:$0xff]
        %v1238 = vld [vmem:[#allocation8 + $0xa0] sm:$0xff]
        %v1239 = vld [vmem:[#allocation8 + $0xa8] sm:$0xff]
        %v1240 = vld [vmem:[#allocation8 + $0xb0] sm:$0xff]
        %v1241 = vld [vmem:[#allocation8 + $0xb8] sm:$0xff]
        %v1242 = vld [vmem:[#allocation8 + $0xc0] sm:$0xff]
        %v1243 = vld [vmem:[#allocation8 + $0xc8] sm:$0xff]
        %v1244 = vld [vmem:[#allocation8 + $0xd0] sm:$0xff]
        %v1245 = vld [vmem:[#allocation8 + $0xd8] sm:$0xff]
        %v1246 = vld [vmem:[#allocation8 + $0xe0] sm:$0xff]
        %v1247 = vld [vmem:[#allocation8 + $0xe8] sm:$0xff]
        %v1248 = vld [vmem:[#allocation8 + $0xf0] sm:$0xff]
        %v1249 = vld [vmem:[#allocation8 + $0xf8] sm:$0xff]
        %v1250 = vld [vmem:[#allocation8 + $0x100] sm:$0xff]
        %v1251 = vld [vmem:[#allocation8 + $0x108] sm:$0xff]
        %v1252 = vld [vmem:[#allocation8 + $0x110] sm:$0xff]
        %v1253 = vld [vmem:[#allocation8 + $0x118] sm:$0xff]
        %v1254 = vld [vmem:[#allocation8 + $0x120] sm:$0xff]
        %v1255 = vld [vmem:[#allocation8 + $0x128] sm:$0xff]
        %v1256 = vld [vmem:[#allocation8 + $0x130] sm:$0xff]
        %v1257 = vld [vmem:[#allocation8 + $0x138] sm:$0xff]
        %v1258 = vld [vmem:[#allocation8 + $0x140] sm:$0xff]
        %v1259 = vld [vmem:[#allocation8 + $0x148] sm:$0xff]
        %v1260 = vld [vmem:[#allocation8 + $0x150] sm:$0xff]
        %v1261 = vld [vmem:[#allocation8 + $0x158] sm:$0xff]
        %v1262 = vld [vmem:[#allocation8 + $0x160] sm:$0xff]
        %v1263 = vld [vmem:[#allocation8 + $0x168] sm:$0xff]
        %v1264 = vld [vmem:[#allocation8 + $0x170] sm:$0xff]
        %v1265 = vld [vmem:[#allocation8 + $0x178] sm:$0xff]
        %v1266 = vld [vmem:[#allocation8 + $0x180] sm:$0xff]
        %v1267 = vld [vmem:[#allocation8 + $0x188] sm:$0xff]
        %v1268 = vld [vmem:[#allocation8 + $0x190] sm:$0xff]
        %v1269 = vld [vmem:[#allocation8 + $0x198] sm:$0xff]
        %v1270 = vld [vmem:[#allocation8 + $0x1a0] sm:$0xff]
        %v1271 = vld [vmem:[#allocation8 + $0x1a8] sm:$0xff]
        %v1272 = vld [vmem:[#allocation8 + $0x1b0] sm:$0xff]
        %v1273 = vld [vmem:[#allocation8 + $0x1b8] sm:$0xff]
        %v1274 = vld [vmem:[#allocation8 + $0x1c0] sm:$0xff]
        %v1275 = vld [vmem:[#allocation8 + $0x1c8] sm:$0xff]
        %v1276 = vld [vmem:[#allocation8 + $0x1d0] sm:$0xff]
        %v1277 = vld [vmem:[#allocation8 + $0x1d8] sm:$0xff]
        %v1278 = vld [vmem:[#allocation8 + $0x1e0] sm:$0xff]
        %v1279 = vld [vmem:[#allocation8 + $0x1e8] sm:$0xff]
        %v1280 = vld [vmem:[#allocation8 + $0x1f0] sm:$0xff]
        %v1281 = vld [vmem:[#allocation8 + $0x1f8] sm:$0xff]
        %v1282 = vld [vmem:[#allocation8 + $0x200] sm:$0xff]
        %v1283 = vld [vmem:[#allocation8 + $0x208] sm:$0xff]
        %v1284 = vld [vmem:[#allocation8 + $0x210] sm:$0xff]
        %v1285 = vld [vmem:[#allocation8 + $0x218] sm:$0xff]
        %v1286 = vld [vmem:[#allocation8 + $0x220] sm:$0xff]
        %v1287 = vld [vmem:[#allocation8 + $0x228] sm:$0xff]
        %v1288 = vld [vmem:[#allocation8 + $0x230] sm:$0xff]
        %v1289 = vld [vmem:[#allocation8 + $0x238] sm:$0xff]
        %v1290 = vld [vmem:[#allocation8 + $0x240] sm:$0xff]
        %v1291 = vld [vmem:[#allocation8 + $0x248] sm:$0xff]
        %v1292 = vld [vmem:[#allocation8 + $0x250] sm:$0xff]
        %v1293 = vld [vmem:[#allocation8 + $0x258] sm:$0xff]
        %v1294 = vld [vmem:[#allocation8 + $0x260] sm:$0xff]
        %v1295 = vld [vmem:[#allocation8 + $0x268] sm:$0xff]
        %v1296 = vld [vmem:[#allocation8 + $0x270] sm:$0xff]
        %v1297 = vld [vmem:[#allocation8 + $0x278] sm:$0xff]
        %v1298 = vld [vmem:[#allocation8 + $0x280] sm:$0xff]
        %v1299 = vld [vmem:[#allocation8 + $0x288] sm:$0xff]
        %v1300 = vld [vmem:[#allocation8 + $0x290] sm:$0xff]
        %v1301 = vld [vmem:[#allocation8 + $0x298] sm:$0xff]
        %v1302 = vld [vmem:[#allocation8 + $0x2a0] sm:$0xff]
        %v1303 = vld [vmem:[#allocation8 + $0x2a8] sm:$0xff]
        %v1304 = vld [vmem:[#allocation8 + $0x2b0] sm:$0xff]
        %v1305 = vld [vmem:[#allocation8 + $0x2b8] sm:$0xff]
        %v1306 = vld [vmem:[#allocation8 + $0x2c0] sm:$0xff]
        %v1307 = vld [vmem:[#allocation8 + $0x2c8] sm:$0xff]
        %v1308 = vld [vmem:[#allocation8 + $0x2d0] sm:$0xff]
        %v1309 = vld [vmem:[#allocation8 + $0x2d8] sm:$0xff]
        %v1310 = vld [vmem:[#allocation8 + $0x2e0] sm:$0xff]
        %v1311 = vld [vmem:[#allocation8 + $0x2e8] sm:$0xff]
        %v1312 = vld [vmem:[#allocation8 + $0x2f0] sm:$0xff]
        %v1313 = vld [vmem:[#allocation8 + $0x2f8] sm:$0xff]
        %v1314 = vld [vmem:[#allocation8 + $0x300] sm:$0xff]
        %v1315 = vld [vmem:[#allocation8 + $0x308] sm:$0xff]
        %v1316 = vld [vmem:[#allocation8 + $0x310] sm:$0xff]
        %v1317 = vld [vmem:[#allocation8 + $0x318] sm:$0xff]
        %v1318 = vld [vmem:[#allocation8 + $0x320] sm:$0xff]
        %v1319 = vld [vmem:[#allocation8 + $0x328] sm:$0xff]
        %v1320 = vld [vmem:[#allocation8 + $0x330] sm:$0xff]
        %v1321 = vld [vmem:[#allocation8 + $0x338] sm:$0xff]
        %v1322 = vld [vmem:[#allocation8 + $0x340] sm:$0xff]
        %v1323 = vld [vmem:[#allocation8 + $0x348] sm:$0xff]
        %v1324 = vld [vmem:[#allocation8 + $0x350] sm:$0xff]
        %v1325 = vld [vmem:[#allocation8 + $0x358] sm:$0xff]
        %v1326 = vld [vmem:[#allocation8 + $0x360] sm:$0xff]
        %v1327 = vld [vmem:[#allocation8 + $0x368] sm:$0xff]
        %v1328 = vld [vmem:[#allocation8 + $0x370] sm:$0xff]
        %v1329 = vld [vmem:[#allocation8 + $0x378] sm:$0xff]
        %v1330 = vld [vmem:[#allocation8 + $0x380] sm:$0xff]
        %v1331 = vld [vmem:[#allocation8 + $0x388] sm:$0xff]
        %v1332 = vld [vmem:[#allocation8 + $0x390] sm:$0xff]
        %v1333 = vld [vmem:[#allocation8 + $0x398] sm:$0xff]
        %v1334 = vld [vmem:[#allocation8 + $0x3a0] sm:$0xff]
        %v1335 = vld [vmem:[#allocation8 + $0x3a8] sm:$0xff]
        %v1336 = vld [vmem:[#allocation8 + $0x3b0] sm:$0xff]
        %v1337 = vld [vmem:[#allocation8 + $0x3b8] sm:$0xff]
        %v1338 = vld [vmem:[#allocation8 + $0x3c0] sm:$0xff]
        %v1339 = vld [vmem:[#allocation8 + $0x3c8] sm:$0xff]
        %v1340 = vld [vmem:[#allocation8 + $0x3d0] sm:$0xff]
        %v1341 = vld [vmem:[#allocation8 + $0x3d8] sm:$0xff]
        %v1342 = vld [vmem:[#allocation8 + $0x3e0] sm:$0xff]
        %v1343 = vld [vmem:[#allocation8 + $0x3e8] sm:$0xff]
        %v1344 = vld [vmem:[#allocation8 + $0x3f0] sm:$0xff]
        %v1345 = vld [vmem:[#allocation8 + $0x3f8] sm:$0xff]
        %v1346 = vld [vmem:[#allocation8 + $0x400] sm:$0xff]
        %v1347 = vld [vmem:[#allocation8 + $0x408] sm:$0xff]
        %v1348 = vld [vmem:[#allocation8 + $0x410] sm:$0xff]
        %v1349 = vld [vmem:[#allocation8 + $0x418] sm:$0xff]
        %v1350 = vld [vmem:[#allocation8 + $0x420] sm:$0xff]
        %v1351 = vld [vmem:[#allocation8 + $0x428] sm:$0xff]
        %v1352 = vld [vmem:[#allocation8 + $0x430] sm:$0xff]
        %v1353 = vld [vmem:[#allocation8 + $0x438] sm:$0xff]
        %v1354 = vld [vmem:[#allocation8 + $0x440] sm:$0xff]
        %v1355 = vld [vmem:[#allocation8 + $0x448] sm:$0xff]
        %v1356 = vld [vmem:[#allocation8 + $0x450] sm:$0xff]
        %v1357 = vld [vmem:[#allocation8 + $0x458] sm:$0xff]
        %v1358 = vld [vmem:[#allocation8 + $0x460] sm:$0xff]
        %v1359 = vld [vmem:[#allocation8 + $0x468] sm:$0xff]
        %v1360 = vld [vmem:[#allocation8 + $0x470] sm:$0xff]
        %v1361 = vld [vmem:[#allocation8 + $0x478] sm:$0xff]
        %v1362 = vld [vmem:[#allocation8 + $0x480] sm:$0xff]
        %v1363 = vld [vmem:[#allocation8 + $0x488] sm:$0xff]
        %v1364 = vld [vmem:[#allocation8 + $0x490] sm:$0xff]
        %v1365 = vld [vmem:[#allocation8 + $0x498] sm:$0xff]
        %v1366 = vld [vmem:[#allocation8 + $0x4a0] sm:$0xff]
        %v1367 = vld [vmem:[#allocation8 + $0x4a8] sm:$0xff]
        %v1368 = vld [vmem:[#allocation8 + $0x4b0] sm:$0xff]
        %v1369 = vld [vmem:[#allocation8 + $0x4b8] sm:$0xff]
        %v1370 = vld [vmem:[#allocation8 + $0x4c0] sm:$0xff]
        %v1371 = vld [vmem:[#allocation8 + $0x4c8] sm:$0xff]
        %v1372 = vld [vmem:[#allocation8 + $0x4d0] sm:$0xff]
        %v1373 = vld [vmem:[#allocation8 + $0x4d8] sm:$0xff]
        %v1374 = vld [vmem:[#allocation8 + $0x4e0] sm:$0xff]
        %v1375 = vld [vmem:[#allocation8 + $0x4e8] sm:$0xff]
        %v1376 = vld [vmem:[#allocation8 + $0x4f0] sm:$0xff]
        %v1377 = vld [vmem:[#allocation8 + $0x4f8] sm:$0xff]
        %v1378 = vld [vmem:[#allocation8 + $0x500] sm:$0xff]
        %v1379 = vld [vmem:[#allocation8 + $0x508] sm:$0xff]
        %v1380 = vld [vmem:[#allocation8 + $0x510] sm:$0xff]
        %v1381 = vld [vmem:[#allocation8 + $0x518] sm:$0xff]
        %v1382 = vld [vmem:[#allocation8 + $0x520] sm:$0xff]
        %v1383 = vld [vmem:[#allocation8 + $0x528] sm:$0xff]
        %v1384 = vld [vmem:[#allocation8 + $0x530] sm:$0xff]
        %v1385 = vld [vmem:[#allocation8 + $0x538] sm:$0xff]
        %v1386 = vld [vmem:[#allocation8 + $0x540] sm:$0xff]
        %v1387 = vld [vmem:[#allocation8 + $0x548] sm:$0xff]
        %v1388 = vld [vmem:[#allocation8 + $0x550] sm:$0xff]
        %v1389 = vld [vmem:[#allocation8 + $0x558] sm:$0xff]
        %v1390 = vld [vmem:[#allocation8 + $0x560] sm:$0xff]
        %v1391 = vld [vmem:[#allocation8 + $0x568] sm:$0xff]
        %v1392 = vld [vmem:[#allocation8 + $0x570] sm:$0xff]
        %v1393 = vld [vmem:[#allocation8 + $0x578] sm:$0xff]
        %v1394 = vld [vmem:[#allocation8 + $0x580] sm:$0xff]
        %v1395 = vld [vmem:[#allocation8 + $0x588] sm:$0xff]
        %v1396 = vld [vmem:[#allocation8 + $0x590] sm:$0xff]
        %v1397 = vld [vmem:[#allocation8 + $0x598] sm:$0xff]
        %v1398 = vld [vmem:[#allocation8 + $0x5a0] sm:$0xff]
        %v1399 = vld [vmem:[#allocation8 + $0x5a8] sm:$0xff]
        %v1400 = vld [vmem:[#allocation8 + $0x5b0] sm:$0xff]
        %v1401 = vld [vmem:[#allocation8 + $0x5b8] sm:$0xff]
        %v1402 = vld [vmem:[#allocation8 + $0x5c0] sm:$0xff]
        %v1403 = vld [vmem:[#allocation8 + $0x5c8] sm:$0xff]
        %v1404 = vld [vmem:[#allocation8 + $0x5d0] sm:$0xff]
        %v1405 = vld [vmem:[#allocation8 + $0x5d8] sm:$0xff]
        %v1406 = vld [vmem:[#allocation8 + $0x5e0] sm:$0xff]
        %v1407 = vld [vmem:[#allocation8 + $0x5e8] sm:$0xff]
        %v1408 = vld [vmem:[#allocation8 + $0x5f0] sm:$0xff]
        %v1409 = vld [vmem:[#allocation8 + $0x5f8] sm:$0xff]
        %v1410 = vld [vmem:[#allocation8 + $0x600] sm:$0xff]
        %v1411 = vld [vmem:[#allocation8 + $0x608] sm:$0xff]
        %v1412 = vld [vmem:[#allocation8 + $0x610] sm:$0xff]
        %v1413 = vld [vmem:[#allocation8 + $0x618] sm:$0xff]
        %v1414 = vld [vmem:[#allocation8 + $0x620] sm:$0xff]
        %v1415 = vld [vmem:[#allocation8 + $0x628] sm:$0xff]
        %v1416 = vld [vmem:[#allocation8 + $0x630] sm:$0xff]
        %v1417 = vld [vmem:[#allocation8 + $0x638] sm:$0xff]
        %v1418 = vld [vmem:[#allocation8 + $0x640] sm:$0xff]
        %v1419 = vld [vmem:[#allocation8 + $0x648] sm:$0xff]
        %v1420 = vld [vmem:[#allocation8 + $0x650] sm:$0xff]
        %v1421 = vld [vmem:[#allocation8 + $0x658] sm:$0xff]
        %v1422 = vld [vmem:[#allocation8 + $0x660] sm:$0xff]
        %v1423 = vld [vmem:[#allocation8 + $0x668] sm:$0xff]
        %v1424 = vld [vmem:[#allocation8 + $0x670] sm:$0xff]
        %v1425 = vld [vmem:[#allocation8 + $0x678] sm:$0xff]
        %v1426 = vld [vmem:[#allocation8 + $0x680] sm:$0xff]
        %v1427 = vld [vmem:[#allocation8 + $0x688] sm:$0xff]
        %v1428 = vld [vmem:[#allocation8 + $0x690] sm:$0xff]
        %v1429 = vld [vmem:[#allocation8 + $0x698] sm:$0xff]
        %v1430 = vld [vmem:[#allocation8 + $0x6a0] sm:$0xff]
        %v1431 = vld [vmem:[#allocation8 + $0x6a8] sm:$0xff]
        %v1432 = vld [vmem:[#allocation8 + $0x6b0] sm:$0xff]
        %v1433 = vld [vmem:[#allocation8 + $0x6b8] sm:$0xff]
        %v1434 = vld [vmem:[#allocation8 + $0x6c0] sm:$0xff]
        %v1435 = vld [vmem:[#allocation8 + $0x6c8] sm:$0xff]
        %v1436 = vld [vmem:[#allocation8 + $0x6d0] sm:$0xff]
        %v1437 = vld [vmem:[#allocation8 + $0x6d8] sm:$0xff]
        %v1438 = vld [vmem:[#allocation8 + $0x6e0] sm:$0xff]
        %v1439 = vld [vmem:[#allocation8 + $0x6e8] sm:$0xff]
        %v1440 = vld [vmem:[#allocation8 + $0x6f0] sm:$0xff]
        %v1441 = vld [vmem:[#allocation8 + $0x6f8] sm:$0xff]
        %v1442 = vld [vmem:[#allocation8 + $0x700] sm:$0xff]
        %v1443 = vld [vmem:[#allocation8 + $0x708] sm:$0xff]
        %v1444 = vld [vmem:[#allocation8 + $0x710] sm:$0xff]
        %v1445 = vld [vmem:[#allocation8 + $0x718] sm:$0xff]
        %v1446 = vld [vmem:[#allocation8 + $0x720] sm:$0xff]
        %v1447 = vld [vmem:[#allocation8 + $0x728] sm:$0xff]
        %v1448 = vld [vmem:[#allocation8 + $0x730] sm:$0xff]
        %v1449 = vld [vmem:[#allocation8 + $0x738] sm:$0xff]
        %v1450 = vld [vmem:[#allocation8 + $0x740] sm:$0xff]
        %v1451 = vld [vmem:[#allocation8 + $0x748] sm:$0xff]
        %v1452 = vld [vmem:[#allocation8 + $0x750] sm:$0xff]
        %v1453 = vld [vmem:[#allocation8 + $0x758] sm:$0xff]
        %v1454 = vld [vmem:[#allocation8 + $0x760] sm:$0xff]
        %v1455 = vld [vmem:[#allocation8 + $0x768] sm:$0xff]
        %v1456 = vld [vmem:[#allocation8 + $0x770] sm:$0xff]
        %v1457 = vld [vmem:[#allocation8 + $0x778] sm:$0xff]
        %v1458 = vld [vmem:[#allocation8 + $0x780] sm:$0xff]
        %v1459 = vld [vmem:[#allocation8 + $0x788] sm:$0xff]
        %v1460 = vld [vmem:[#allocation8 + $0x790] sm:$0xff]
        %v1461 = vld [vmem:[#allocation8 + $0x798] sm:$0xff]
        %v1462 = vld [vmem:[#allocation8 + $0x7a0] sm:$0xff]
        %v1463 = vld [vmem:[#allocation8 + $0x7a8] sm:$0xff]
        %v1464 = vld [vmem:[#allocation8 + $0x7b0] sm:$0xff]
        %v1465 = vld [vmem:[#allocation8 + $0x7b8] sm:$0xff]
        %v1466 = vld [vmem:[#allocation8 + $0x7c0] sm:$0xff]
        %v1467 = vld [vmem:[#allocation8 + $0x7c8] sm:$0xff]
        %v1468 = vld [vmem:[#allocation8 + $0x7d0] sm:$0xff]
        %v1469 = vld [vmem:[#allocation8 + $0x7d8] sm:$0xff]
        %v1470 = vld [vmem:[#allocation8 + $0x7e0] sm:$0xff]
        %v1471 = vld [vmem:[#allocation8 + $0x7e8] sm:$0xff]
        %v1472 = vld [vmem:[#allocation8 + $0x7f0] sm:$0xff]
        %v1473 = vld [vmem:[#allocation8 + $0x7f8] sm:$0xff]
        %v1474 = vld [vmem:[#allocation8 + $0x800] sm:$0xff]
        %v1475 = vld [vmem:[#allocation8 + $0x808] sm:$0xff]
        %v1476 = vld [vmem:[#allocation8 + $0x810] sm:$0xff]
        %v1477 = vld [vmem:[#allocation8 + $0x818] sm:$0xff]
        %v1478 = vld [vmem:[#allocation8 + $0x820] sm:$0xff]
        %v1479 = vld [vmem:[#allocation8 + $0x828] sm:$0xff]
        %v1480 = vld [vmem:[#allocation8 + $0x830] sm:$0xff]
        %v1481 = vld [vmem:[#allocation8 + $0x838] sm:$0xff]
        %v1482 = vld [vmem:[#allocation8 + $0x840] sm:$0xff]
        %v1483 = vld [vmem:[#allocation8 + $0x848] sm:$0xff]
        %v1484 = vld [vmem:[#allocation8 + $0x850] sm:$0xff]
        %v1485 = vld [vmem:[#allocation8 + $0x858] sm:$0xff]
        %v1486 = vld [vmem:[#allocation8 + $0x860] sm:$0xff]
        %v1487 = vld [vmem:[#allocation8 + $0x868] sm:$0xff]
        %v1488 = vld [vmem:[#allocation8 + $0x870] sm:$0xff]
        %v1489 = vld [vmem:[#allocation8 + $0x878] sm:$0xff]
        %v1490 = vld [vmem:[#allocation8 + $0x880] sm:$0xff]
        %v1491 = vld [vmem:[#allocation8 + $0x888] sm:$0xff]
        %v1492 = vld [vmem:[#allocation8 + $0x890] sm:$0xff]
        %v1493 = vld [vmem:[#allocation8 + $0x898] sm:$0xff]
        %v1494 = vld [vmem:[#allocation8 + $0x8a0] sm:$0xff]
        %v1495 = vld [vmem:[#allocation8 + $0x8a8] sm:$0xff]
        %v1496 = vld [vmem:[#allocation8 + $0x8b0] sm:$0xff]
        %v1497 = vld [vmem:[#allocation8 + $0x8b8] sm:$0xff]
        %v1498 = vld [vmem:[#allocation8 + $0x8c0] sm:$0xff]
        %v1499 = vld [vmem:[#allocation8 + $0x8c8] sm:$0xff]
        %v1500 = vld [vmem:[#allocation8 + $0x8d0] sm:$0xff]
        %v1501 = vld [vmem:[#allocation8 + $0x8d8] sm:$0xff]
        %v1502 = vld [vmem:[#allocation8 + $0x8e0] sm:$0xff]
        %v1503 = vld [vmem:[#allocation8 + $0x8e8] sm:$0xff]
        %v1504 = vld [vmem:[#allocation8 + $0x8f0] sm:$0xff]
        %v1505 = vld [vmem:[#allocation8 + $0x8f8] sm:$0xff]
        %v1794 = vunpack.c.l.b16 %v1218
        %v1795 = vunpack.c.h.b16 %v1218
        %v1796 = vunpack.c.l.b16 %v1219
        %v1797 = vunpack.c.h.b16 %v1219
        %v1798 = vunpack.c.l.b16 %v1220
        %v1799 = vunpack.c.h.b16 %v1220
        %v1800 = vunpack.c.l.b16 %v1221
        %v1801 = vunpack.c.h.b16 %v1221
        %v1802 = vunpack.c.l.b16 %v1222
        %v1803 = vunpack.c.h.b16 %v1222
        %v1804 = vunpack.c.l.b16 %v1223
        %v1805 = vunpack.c.h.b16 %v1223
        %v1806 = vunpack.c.l.b16 %v1224
        %v1807 = vunpack.c.h.b16 %v1224
        %v1808 = vunpack.c.l.b16 %v1225
        %v1809 = vunpack.c.h.b16 %v1225
        %v1810 = vunpack.c.l.b16 %v1226
        %v1811 = vunpack.c.h.b16 %v1226
        %v1812 = vunpack.c.l.b16 %v1227
        %v1813 = vunpack.c.h.b16 %v1227
        %v1814 = vunpack.c.l.b16 %v1228
        %v1815 = vunpack.c.h.b16 %v1228
        %v1816 = vunpack.c.l.b16 %v1229
        %v1817 = vunpack.c.h.b16 %v1229
        %v1818 = vunpack.c.l.b16 %v1230
        %v1819 = vunpack.c.h.b16 %v1230
        %v1820 = vunpack.c.l.b16 %v1231
        %v1821 = vunpack.c.h.b16 %v1231
        %v1822 = vunpack.c.l.b16 %v1232
        %v1823 = vunpack.c.h.b16 %v1232
        %v1824 = vunpack.c.l.b16 %v1233
        %v1825 = vunpack.c.h.b16 %v1233
        %v1826 = vunpack.c.l.b16 %v1234
        %v1827 = vunpack.c.h.b16 %v1234
        %v1828 = vunpack.c.l.b16 %v1235
        %v1829 = vunpack.c.h.b16 %v1235
        %v1830 = vunpack.c.l.b16 %v1236
        %v1831 = vunpack.c.h.b16 %v1236
        %v1832 = vunpack.c.l.b16 %v1237
        %v1833 = vunpack.c.h.b16 %v1237
        %v1834 = vunpack.c.l.b16 %v1238
        %v1835 = vunpack.c.h.b16 %v1238
        %v1836 = vunpack.c.l.b16 %v1239
        %v1837 = vunpack.c.h.b16 %v1239
        %v1838 = vunpack.c.l.b16 %v1240
        %v1839 = vunpack.c.h.b16 %v1240
        %v1840 = vunpack.c.l.b16 %v1241
        %v1841 = vunpack.c.h.b16 %v1241
        %v1842 = vunpack.c.l.b16 %v1242
        %v1843 = vunpack.c.h.b16 %v1242
        %v1844 = vunpack.c.l.b16 %v1243
        %v1845 = vunpack.c.h.b16 %v1243
        %v1846 = vunpack.c.l.b16 %v1244
        %v1847 = vunpack.c.h.b16 %v1244
        %v1848 = vunpack.c.l.b16 %v1245
        %v1849 = vunpack.c.h.b16 %v1245
        %v1850 = vunpack.c.l.b16 %v1246
        %v1851 = vunpack.c.h.b16 %v1246
        %v1852 = vunpack.c.l.b16 %v1247
        %v1853 = vunpack.c.h.b16 %v1247
        %v1854 = vunpack.c.l.b16 %v1248
        %v1855 = vunpack.c.h.b16 %v1248
        %v1856 = vunpack.c.l.b16 %v1249
        %v1857 = vunpack.c.h.b16 %v1249
        %v1858 = vunpack.c.l.b16 %v1250
        %v1859 = vunpack.c.h.b16 %v1250
        %v1860 = vunpack.c.l.b16 %v1251
        %v1861 = vunpack.c.h.b16 %v1251
        %v1862 = vunpack.c.l.b16 %v1252
        %v1863 = vunpack.c.h.b16 %v1252
        %v1864 = vunpack.c.l.b16 %v1253
        %v1865 = vunpack.c.h.b16 %v1253
        %v1866 = vunpack.c.l.b16 %v1254
        %v1867 = vunpack.c.h.b16 %v1254
        %v1868 = vunpack.c.l.b16 %v1255
        %v1869 = vunpack.c.h.b16 %v1255
        %v1870 = vunpack.c.l.b16 %v1256
        %v1871 = vunpack.c.h.b16 %v1256
        %v1872 = vunpack.c.l.b16 %v1257
        %v1873 = vunpack.c.h.b16 %v1257
        %v1874 = vunpack.c.l.b16 %v1258
        %v1875 = vunpack.c.h.b16 %v1258
        %v1876 = vunpack.c.l.b16 %v1259
        %v1877 = vunpack.c.h.b16 %v1259
        %v1878 = vunpack.c.l.b16 %v1260
        %v1879 = vunpack.c.h.b16 %v1260
        %v1880 = vunpack.c.l.b16 %v1261
        %v1881 = vunpack.c.h.b16 %v1261
        %v1882 = vunpack.c.l.b16 %v1262
        %v1883 = vunpack.c.h.b16 %v1262
        %v1884 = vunpack.c.l.b16 %v1263
        %v1885 = vunpack.c.h.b16 %v1263
        %v1886 = vunpack.c.l.b16 %v1264
        %v1887 = vunpack.c.h.b16 %v1264
        %v1888 = vunpack.c.l.b16 %v1265
        %v1889 = vunpack.c.h.b16 %v1265
        %v1890 = vunpack.c.l.b16 %v1266
        %v1891 = vunpack.c.h.b16 %v1266
        %v1892 = vunpack.c.l.b16 %v1267
        %v1893 = vunpack.c.h.b16 %v1267
        %v1894 = vunpack.c.l.b16 %v1268
        %v1895 = vunpack.c.h.b16 %v1268
        %v1896 = vunpack.c.l.b16 %v1269
        %v1897 = vunpack.c.h.b16 %v1269
        %v1898 = vunpack.c.l.b16 %v1270
        %v1899 = vunpack.c.h.b16 %v1270
        %v1900 = vunpack.c.l.b16 %v1271
        %v1901 = vunpack.c.h.b16 %v1271
        %v1902 = vunpack.c.l.b16 %v1272
        %v1903 = vunpack.c.h.b16 %v1272
        %v1904 = vunpack.c.l.b16 %v1273
        %v1905 = vunpack.c.h.b16 %v1273
        %v1906 = vunpack.c.l.b16 %v1274
        %v1907 = vunpack.c.h.b16 %v1274
        %v1908 = vunpack.c.l.b16 %v1275
        %v1909 = vunpack.c.h.b16 %v1275
        %v1910 = vunpack.c.l.b16 %v1276
        %v1911 = vunpack.c.h.b16 %v1276
        %v1912 = vunpack.c.l.b16 %v1277
        %v1913 = vunpack.c.h.b16 %v1277
        %v1914 = vunpack.c.l.b16 %v1278
        %v1915 = vunpack.c.h.b16 %v1278
        %v1916 = vunpack.c.l.b16 %v1279
        %v1917 = vunpack.c.h.b16 %v1279
        %v1918 = vunpack.c.l.b16 %v1280
        %v1919 = vunpack.c.h.b16 %v1280
        %v1920 = vunpack.c.l.b16 %v1281
        %v1921 = vunpack.c.h.b16 %v1281
        %v1922 = vunpack.c.l.b16 %v1282
        %v1923 = vunpack.c.h.b16 %v1282
        %v1924 = vunpack.c.l.b16 %v1283
        %v1925 = vunpack.c.h.b16 %v1283
        %v1926 = vunpack.c.l.b16 %v1284
        %v1927 = vunpack.c.h.b16 %v1284
        %v1928 = vunpack.c.l.b16 %v1285
        %v1929 = vunpack.c.h.b16 %v1285
        %v1930 = vunpack.c.l.b16 %v1286
        %v1931 = vunpack.c.h.b16 %v1286
        %v1932 = vunpack.c.l.b16 %v1287
        %v1933 = vunpack.c.h.b16 %v1287
        %v1934 = vunpack.c.l.b16 %v1288
        %v1935 = vunpack.c.h.b16 %v1288
        %v1936 = vunpack.c.l.b16 %v1289
        %v1937 = vunpack.c.h.b16 %v1289
        %v1938 = vunpack.c.l.b16 %v1290
        %v1939 = vunpack.c.h.b16 %v1290
        %v1940 = vunpack.c.l.b16 %v1291
        %v1941 = vunpack.c.h.b16 %v1291
        %v1942 = vunpack.c.l.b16 %v1292
        %v1943 = vunpack.c.h.b16 %v1292
        %v1944 = vunpack.c.l.b16 %v1293
        %v1945 = vunpack.c.h.b16 %v1293
        %v1946 = vunpack.c.l.b16 %v1294
        %v1947 = vunpack.c.h.b16 %v1294
        %v1948 = vunpack.c.l.b16 %v1295
        %v1949 = vunpack.c.h.b16 %v1295
        %v1950 = vunpack.c.l.b16 %v1296
        %v1951 = vunpack.c.h.b16 %v1296
        %v1952 = vunpack.c.l.b16 %v1297
        %v1953 = vunpack.c.h.b16 %v1297
        %v1954 = vunpack.c.l.b16 %v1298
        %v1955 = vunpack.c.h.b16 %v1298
        %v1956 = vunpack.c.l.b16 %v1299
        %v1957 = vunpack.c.h.b16 %v1299
        %v1958 = vunpack.c.l.b16 %v1300
        %v1959 = vunpack.c.h.b16 %v1300
        %v1960 = vunpack.c.l.b16 %v1301
        %v1961 = vunpack.c.h.b16 %v1301
        %v1962 = vunpack.c.l.b16 %v1302
        %v1963 = vunpack.c.h.b16 %v1302
        %v1964 = vunpack.c.l.b16 %v1303
        %v1965 = vunpack.c.h.b16 %v1303
        %v1966 = vunpack.c.l.b16 %v1304
        %v1967 = vunpack.c.h.b16 %v1304
        %v1968 = vunpack.c.l.b16 %v1305
        %v1969 = vunpack.c.h.b16 %v1305
        %v1970 = vunpack.c.l.b16 %v1306
        %v1971 = vunpack.c.h.b16 %v1306
        %v1972 = vunpack.c.l.b16 %v1307
        %v1973 = vunpack.c.h.b16 %v1307
        %v1974 = vunpack.c.l.b16 %v1308
        %v1975 = vunpack.c.h.b16 %v1308
        %v1976 = vunpack.c.l.b16 %v1309
        %v1977 = vunpack.c.h.b16 %v1309
        %v1978 = vunpack.c.l.b16 %v1310
        %v1979 = vunpack.c.h.b16 %v1310
        %v1980 = vunpack.c.l.b16 %v1311
        %v1981 = vunpack.c.h.b16 %v1311
        %v1982 = vunpack.c.l.b16 %v1312
        %v1983 = vunpack.c.h.b16 %v1312
        %v1984 = vunpack.c.l.b16 %v1313
        %v1985 = vunpack.c.h.b16 %v1313
        %v1986 = vunpack.c.l.b16 %v1314
        %v1987 = vunpack.c.h.b16 %v1314
        %v1988 = vunpack.c.l.b16 %v1315
        %v1989 = vunpack.c.h.b16 %v1315
        %v1990 = vunpack.c.l.b16 %v1316
        %v1991 = vunpack.c.h.b16 %v1316
        %v1992 = vunpack.c.l.b16 %v1317
        %v1993 = vunpack.c.h.b16 %v1317
        %v1994 = vunpack.c.l.b16 %v1318
        %v1995 = vunpack.c.h.b16 %v1318
        %v1996 = vunpack.c.l.b16 %v1319
        %v1997 = vunpack.c.h.b16 %v1319
        %v1998 = vunpack.c.l.b16 %v1320
        %v1999 = vunpack.c.h.b16 %v1320
        %v2000 = vunpack.c.l.b16 %v1321
        %v2001 = vunpack.c.h.b16 %v1321
        %v2002 = vunpack.c.l.b16 %v1322
        %v2003 = vunpack.c.h.b16 %v1322
        %v2004 = vunpack.c.l.b16 %v1323
        %v2005 = vunpack.c.h.b16 %v1323
        %v2006 = vunpack.c.l.b16 %v1324
        %v2007 = vunpack.c.h.b16 %v1324
        %v2008 = vunpack.c.l.b16 %v1325
        %v2009 = vunpack.c.h.b16 %v1325
        %v2010 = vunpack.c.l.b16 %v1326
        %v2011 = vunpack.c.h.b16 %v1326
        %v2012 = vunpack.c.l.b16 %v1327
        %v2013 = vunpack.c.h.b16 %v1327
        %v2014 = vunpack.c.l.b16 %v1328
        %v2015 = vunpack.c.h.b16 %v1328
        %v2016 = vunpack.c.l.b16 %v1329
        %v2017 = vunpack.c.h.b16 %v1329
        %v2018 = vunpack.c.l.b16 %v1330
        %v2019 = vunpack.c.h.b16 %v1330
        %v2020 = vunpack.c.l.b16 %v1331
        %v2021 = vunpack.c.h.b16 %v1331
        %v2022 = vunpack.c.l.b16 %v1332
        %v2023 = vunpack.c.h.b16 %v1332
        %v2024 = vunpack.c.l.b16 %v1333
        %v2025 = vunpack.c.h.b16 %v1333
        %v2026 = vunpack.c.l.b16 %v1334
        %v2027 = vunpack.c.h.b16 %v1334
        %v2028 = vunpack.c.l.b16 %v1335
        %v2029 = vunpack.c.h.b16 %v1335
        %v2030 = vunpack.c.l.b16 %v1336
        %v2031 = vunpack.c.h.b16 %v1336
        %v2032 = vunpack.c.l.b16 %v1337
        %v2033 = vunpack.c.h.b16 %v1337
        %v2034 = vunpack.c.l.b16 %v1338
        %v2035 = vunpack.c.h.b16 %v1338
        %v2036 = vunpack.c.l.b16 %v1339
        %v2037 = vunpack.c.h.b16 %v1339
        %v2038 = vunpack.c.l.b16 %v1340
        %v2039 = vunpack.c.h.b16 %v1340
        %v2040 = vunpack.c.l.b16 %v1341
        %v2041 = vunpack.c.h.b16 %v1341
        %v2042 = vunpack.c.l.b16 %v1342
        %v2043 = vunpack.c.h.b16 %v1342
        %v2044 = vunpack.c.l.b16 %v1343
        %v2045 = vunpack.c.h.b16 %v1343
        %v2046 = vunpack.c.l.b16 %v1344
        %v2047 = vunpack.c.h.b16 %v1344
        %v2048 = vunpack.c.l.b16 %v1345
        %v2049 = vunpack.c.h.b16 %v1345
        %v2050 = vunpack.c.l.b16 %v1346
        %v2051 = vunpack.c.h.b16 %v1346
        %v2052 = vunpack.c.l.b16 %v1347
        %v2053 = vunpack.c.h.b16 %v1347
        %v2054 = vunpack.c.l.b16 %v1348
        %v2055 = vunpack.c.h.b16 %v1348
        %v2056 = vunpack.c.l.b16 %v1349
        %v2057 = vunpack.c.h.b16 %v1349
        %v2058 = vunpack.c.l.b16 %v1350
        %v2059 = vunpack.c.h.b16 %v1350
        %v2060 = vunpack.c.l.b16 %v1351
        %v2061 = vunpack.c.h.b16 %v1351
        %v2062 = vunpack.c.l.b16 %v1352
        %v2063 = vunpack.c.h.b16 %v1352
        %v2064 = vunpack.c.l.b16 %v1353
        %v2065 = vunpack.c.h.b16 %v1353
        %v2066 = vunpack.c.l.b16 %v1354
        %v2067 = vunpack.c.h.b16 %v1354
        %v2068 = vunpack.c.l.b16 %v1355
        %v2069 = vunpack.c.h.b16 %v1355
        %v2070 = vunpack.c.l.b16 %v1356
        %v2071 = vunpack.c.h.b16 %v1356
        %v2072 = vunpack.c.l.b16 %v1357
        %v2073 = vunpack.c.h.b16 %v1357
        %v2074 = vunpack.c.l.b16 %v1358
        %v2075 = vunpack.c.h.b16 %v1358
        %v2076 = vunpack.c.l.b16 %v1359
        %v2077 = vunpack.c.h.b16 %v1359
        %v2078 = vunpack.c.l.b16 %v1360
        %v2079 = vunpack.c.h.b16 %v1360
        %v2080 = vunpack.c.l.b16 %v1361
        %v2081 = vunpack.c.h.b16 %v1361
        %v2082 = vunpack.c.l.b16 %v1362
        %v2083 = vunpack.c.h.b16 %v1362
        %v2084 = vunpack.c.l.b16 %v1363
        %v2085 = vunpack.c.h.b16 %v1363
        %v2086 = vunpack.c.l.b16 %v1364
        %v2087 = vunpack.c.h.b16 %v1364
        %v2088 = vunpack.c.l.b16 %v1365
        %v2089 = vunpack.c.h.b16 %v1365
        %v2090 = vunpack.c.l.b16 %v1366
        %v2091 = vunpack.c.h.b16 %v1366
        %v2092 = vunpack.c.l.b16 %v1367
        %v2093 = vunpack.c.h.b16 %v1367
        %v2094 = vunpack.c.l.b16 %v1368
        %v2095 = vunpack.c.h.b16 %v1368
        %v2096 = vunpack.c.l.b16 %v1369
        %v2097 = vunpack.c.h.b16 %v1369
        %v2098 = vunpack.c.l.b16 %v1370
        %v2099 = vunpack.c.h.b16 %v1370
        %v2100 = vunpack.c.l.b16 %v1371
        %v2101 = vunpack.c.h.b16 %v1371
        %v2102 = vunpack.c.l.b16 %v1372
        %v2103 = vunpack.c.h.b16 %v1372
        %v2104 = vunpack.c.l.b16 %v1373
        %v2105 = vunpack.c.h.b16 %v1373
        %v2106 = vunpack.c.l.b16 %v1374
        %v2107 = vunpack.c.h.b16 %v1374
        %v2108 = vunpack.c.l.b16 %v1375
        %v2109 = vunpack.c.h.b16 %v1375
        %v2110 = vunpack.c.l.b16 %v1376
        %v2111 = vunpack.c.h.b16 %v1376
        %v2112 = vunpack.c.l.b16 %v1377
        %v2113 = vunpack.c.h.b16 %v1377
        %v2114 = vunpack.c.l.b16 %v1378
        %v2115 = vunpack.c.h.b16 %v1378
        %v2116 = vunpack.c.l.b16 %v1379
        %v2117 = vunpack.c.h.b16 %v1379
        %v2118 = vunpack.c.l.b16 %v1380
        %v2119 = vunpack.c.h.b16 %v1380
        %v2120 = vunpack.c.l.b16 %v1381
        %v2121 = vunpack.c.h.b16 %v1381
        %v2122 = vunpack.c.l.b16 %v1382
        %v2123 = vunpack.c.h.b16 %v1382
        %v2124 = vunpack.c.l.b16 %v1383
        %v2125 = vunpack.c.h.b16 %v1383
        %v2126 = vunpack.c.l.b16 %v1384
        %v2127 = vunpack.c.h.b16 %v1384
        %v2128 = vunpack.c.l.b16 %v1385
        %v2129 = vunpack.c.h.b16 %v1385
        %v2130 = vunpack.c.l.b16 %v1386
        %v2131 = vunpack.c.h.b16 %v1386
        %v2132 = vunpack.c.l.b16 %v1387
        %v2133 = vunpack.c.h.b16 %v1387
        %v2134 = vunpack.c.l.b16 %v1388
        %v2135 = vunpack.c.h.b16 %v1388
        %v2136 = vunpack.c.l.b16 %v1389
        %v2137 = vunpack.c.h.b16 %v1389
        %v2138 = vunpack.c.l.b16 %v1390
        %v2139 = vunpack.c.h.b16 %v1390
        %v2140 = vunpack.c.l.b16 %v1391
        %v2141 = vunpack.c.h.b16 %v1391
        %v2142 = vunpack.c.l.b16 %v1392
        %v2143 = vunpack.c.h.b16 %v1392
        %v2144 = vunpack.c.l.b16 %v1393
        %v2145 = vunpack.c.h.b16 %v1393
        %v2146 = vunpack.c.l.b16 %v1394
        %v2147 = vunpack.c.h.b16 %v1394
        %v2148 = vunpack.c.l.b16 %v1395
        %v2149 = vunpack.c.h.b16 %v1395
        %v2150 = vunpack.c.l.b16 %v1396
        %v2151 = vunpack.c.h.b16 %v1396
        %v2152 = vunpack.c.l.b16 %v1397
        %v2153 = vunpack.c.h.b16 %v1397
        %v2154 = vunpack.c.l.b16 %v1398
        %v2155 = vunpack.c.h.b16 %v1398
        %v2156 = vunpack.c.l.b16 %v1399
        %v2157 = vunpack.c.h.b16 %v1399
        %v2158 = vunpack.c.l.b16 %v1400
        %v2159 = vunpack.c.h.b16 %v1400
        %v2160 = vunpack.c.l.b16 %v1401
        %v2161 = vunpack.c.h.b16 %v1401
        %v2162 = vunpack.c.l.b16 %v1402
        %v2163 = vunpack.c.h.b16 %v1402
        %v2164 = vunpack.c.l.b16 %v1403
        %v2165 = vunpack.c.h.b16 %v1403
        %v2166 = vunpack.c.l.b16 %v1404
        %v2167 = vunpack.c.h.b16 %v1404
        %v2168 = vunpack.c.l.b16 %v1405
        %v2169 = vunpack.c.h.b16 %v1405
        %v2170 = vunpack.c.l.b16 %v1406
        %v2171 = vunpack.c.h.b16 %v1406
        %v2172 = vunpack.c.l.b16 %v1407
        %v2173 = vunpack.c.h.b16 %v1407
        %v2174 = vunpack.c.l.b16 %v1408
        %v2175 = vunpack.c.h.b16 %v1408
        %v2176 = vunpack.c.l.b16 %v1409
        %v2177 = vunpack.c.h.b16 %v1409
        %v2178 = vunpack.c.l.b16 %v1410
        %v2179 = vunpack.c.h.b16 %v1410
        %v2180 = vunpack.c.l.b16 %v1411
        %v2181 = vunpack.c.h.b16 %v1411
        %v2182 = vunpack.c.l.b16 %v1412
        %v2183 = vunpack.c.h.b16 %v1412
        %v2184 = vunpack.c.l.b16 %v1413
        %v2185 = vunpack.c.h.b16 %v1413
        %v2186 = vunpack.c.l.b16 %v1414
        %v2187 = vunpack.c.h.b16 %v1414
        %v2188 = vunpack.c.l.b16 %v1415
        %v2189 = vunpack.c.h.b16 %v1415
        %v2190 = vunpack.c.l.b16 %v1416
        %v2191 = vunpack.c.h.b16 %v1416
        %v2192 = vunpack.c.l.b16 %v1417
        %v2193 = vunpack.c.h.b16 %v1417
        %v2194 = vunpack.c.l.b16 %v1418
        %v2195 = vunpack.c.h.b16 %v1418
        %v2196 = vunpack.c.l.b16 %v1419
        %v2197 = vunpack.c.h.b16 %v1419
        %v2198 = vunpack.c.l.b16 %v1420
        %v2199 = vunpack.c.h.b16 %v1420
        %v2200 = vunpack.c.l.b16 %v1421
        %v2201 = vunpack.c.h.b16 %v1421
        %v2202 = vunpack.c.l.b16 %v1422
        %v2203 = vunpack.c.h.b16 %v1422
        %v2204 = vunpack.c.l.b16 %v1423
        %v2205 = vunpack.c.h.b16 %v1423
        %v2206 = vunpack.c.l.b16 %v1424
        %v2207 = vunpack.c.h.b16 %v1424
        %v2208 = vunpack.c.l.b16 %v1425
        %v2209 = vunpack.c.h.b16 %v1425
        %v2210 = vunpack.c.l.b16 %v1426
        %v2211 = vunpack.c.h.b16 %v1426
        %v2212 = vunpack.c.l.b16 %v1427
        %v2213 = vunpack.c.h.b16 %v1427
        %v2214 = vunpack.c.l.b16 %v1428
        %v2215 = vunpack.c.h.b16 %v1428
        %v2216 = vunpack.c.l.b16 %v1429
        %v2217 = vunpack.c.h.b16 %v1429
        %v2218 = vunpack.c.l.b16 %v1430
        %v2219 = vunpack.c.h.b16 %v1430
        %v2220 = vunpack.c.l.b16 %v1431
        %v2221 = vunpack.c.h.b16 %v1431
        %v2222 = vunpack.c.l.b16 %v1432
        %v2223 = vunpack.c.h.b16 %v1432
        %v2224 = vunpack.c.l.b16 %v1433
        %v2225 = vunpack.c.h.b16 %v1433
        %v2226 = vunpack.c.l.b16 %v1434
        %v2227 = vunpack.c.h.b16 %v1434
        %v2228 = vunpack.c.l.b16 %v1435
        %v2229 = vunpack.c.h.b16 %v1435
        %v2230 = vunpack.c.l.b16 %v1436
        %v2231 = vunpack.c.h.b16 %v1436
        %v2232 = vunpack.c.l.b16 %v1437
        %v2233 = vunpack.c.h.b16 %v1437
        %v2234 = vunpack.c.l.b16 %v1438
        %v2235 = vunpack.c.h.b16 %v1438
        %v2236 = vunpack.c.l.b16 %v1439
        %v2237 = vunpack.c.h.b16 %v1439
        %v2238 = vunpack.c.l.b16 %v1440
        %v2239 = vunpack.c.h.b16 %v1440
        %v2240 = vunpack.c.l.b16 %v1441
        %v2241 = vunpack.c.h.b16 %v1441
        %v2242 = vunpack.c.l.b16 %v1442
        %v2243 = vunpack.c.h.b16 %v1442
        %v2244 = vunpack.c.l.b16 %v1443
        %v2245 = vunpack.c.h.b16 %v1443
        %v2246 = vunpack.c.l.b16 %v1444
        %v2247 = vunpack.c.h.b16 %v1444
        %v2248 = vunpack.c.l.b16 %v1445
        %v2249 = vunpack.c.h.b16 %v1445
        %v2250 = vunpack.c.l.b16 %v1446
        %v2251 = vunpack.c.h.b16 %v1446
        %v2252 = vunpack.c.l.b16 %v1447
        %v2253 = vunpack.c.h.b16 %v1447
        %v2254 = vunpack.c.l.b16 %v1448
        %v2255 = vunpack.c.h.b16 %v1448
        %v2256 = vunpack.c.l.b16 %v1449
        %v2257 = vunpack.c.h.b16 %v1449
        %v2258 = vunpack.c.l.b16 %v1450
        %v2259 = vunpack.c.h.b16 %v1450
        %v2260 = vunpack.c.l.b16 %v1451
        %v2261 = vunpack.c.h.b16 %v1451
        %v2262 = vunpack.c.l.b16 %v1452
        %v2263 = vunpack.c.h.b16 %v1452
        %v2264 = vunpack.c.l.b16 %v1453
        %v2265 = vunpack.c.h.b16 %v1453
        %v2266 = vunpack.c.l.b16 %v1454
        %v2267 = vunpack.c.h.b16 %v1454
        %v2268 = vunpack.c.l.b16 %v1455
        %v2269 = vunpack.c.h.b16 %v1455
        %v2270 = vunpack.c.l.b16 %v1456
        %v2271 = vunpack.c.h.b16 %v1456
        %v2272 = vunpack.c.l.b16 %v1457
        %v2273 = vunpack.c.h.b16 %v1457
        %v2274 = vunpack.c.l.b16 %v1458
        %v2275 = vunpack.c.h.b16 %v1458
        %v2276 = vunpack.c.l.b16 %v1459
        %v2277 = vunpack.c.h.b16 %v1459
        %v2278 = vunpack.c.l.b16 %v1460
        %v2279 = vunpack.c.h.b16 %v1460
        %v2280 = vunpack.c.l.b16 %v1461
        %v2281 = vunpack.c.h.b16 %v1461
        %v2282 = vunpack.c.l.b16 %v1462
        %v2283 = vunpack.c.h.b16 %v1462
        %v2284 = vunpack.c.l.b16 %v1463
        %v2285 = vunpack.c.h.b16 %v1463
        %v2286 = vunpack.c.l.b16 %v1464
        %v2287 = vunpack.c.h.b16 %v1464
        %v2288 = vunpack.c.l.b16 %v1465
        %v2289 = vunpack.c.h.b16 %v1465
        %v2290 = vunpack.c.l.b16 %v1466
        %v2291 = vunpack.c.h.b16 %v1466
        %v2292 = vunpack.c.l.b16 %v1467
        %v2293 = vunpack.c.h.b16 %v1467
        %v2294 = vunpack.c.l.b16 %v1468
        %v2295 = vunpack.c.h.b16 %v1468
        %v2296 = vunpack.c.l.b16 %v1469
        %v2297 = vunpack.c.h.b16 %v1469
        %v2298 = vunpack.c.l.b16 %v1470
        %v2299 = vunpack.c.h.b16 %v1470
        %v2300 = vunpack.c.l.b16 %v1471
        %v2301 = vunpack.c.h.b16 %v1471
        %v2302 = vunpack.c.l.b16 %v1472
        %v2303 = vunpack.c.h.b16 %v1472
        %v2304 = vunpack.c.l.b16 %v1473
        %v2305 = vunpack.c.h.b16 %v1473
        %v2306 = vunpack.c.l.b16 %v1474
        %v2307 = vunpack.c.h.b16 %v1474
        %v2308 = vunpack.c.l.b16 %v1475
        %v2309 = vunpack.c.h.b16 %v1475
        %v2310 = vunpack.c.l.b16 %v1476
        %v2311 = vunpack.c.h.b16 %v1476
        %v2312 = vunpack.c.l.b16 %v1477
        %v2313 = vunpack.c.h.b16 %v1477
        %v2314 = vunpack.c.l.b16 %v1478
        %v2315 = vunpack.c.h.b16 %v1478
        %v2316 = vunpack.c.l.b16 %v1479
        %v2317 = vunpack.c.h.b16 %v1479
        %v2318 = vunpack.c.l.b16 %v1480
        %v2319 = vunpack.c.h.b16 %v1480
        %v2320 = vunpack.c.l.b16 %v1481
        %v2321 = vunpack.c.h.b16 %v1481
        %v2322 = vunpack.c.l.b16 %v1482
        %v2323 = vunpack.c.h.b16 %v1482
        %v2324 = vunpack.c.l.b16 %v1483
        %v2325 = vunpack.c.h.b16 %v1483
        %v2326 = vunpack.c.l.b16 %v1484
        %v2327 = vunpack.c.h.b16 %v1484
        %v2328 = vunpack.c.l.b16 %v1485
        %v2329 = vunpack.c.h.b16 %v1485
        %v2330 = vunpack.c.l.b16 %v1486
        %v2331 = vunpack.c.h.b16 %v1486
        %v2332 = vunpack.c.l.b16 %v1487
        %v2333 = vunpack.c.h.b16 %v1487
        %v2334 = vunpack.c.l.b16 %v1488
        %v2335 = vunpack.c.h.b16 %v1488
        %v2336 = vunpack.c.l.b16 %v1489
        %v2337 = vunpack.c.h.b16 %v1489
        %v2338 = vunpack.c.l.b16 %v1490
        %v2339 = vunpack.c.h.b16 %v1490
        %v2340 = vunpack.c.l.b16 %v1491
        %v2341 = vunpack.c.h.b16 %v1491
        %v2342 = vunpack.c.l.b16 %v1492
        %v2343 = vunpack.c.h.b16 %v1492
        %v2344 = vunpack.c.l.b16 %v1493
        %v2345 = vunpack.c.h.b16 %v1493
        %v2346 = vunpack.c.l.b16 %v1494
        %v2347 = vunpack.c.h.b16 %v1494
        %v2348 = vunpack.c.l.b16 %v1495
        %v2349 = vunpack.c.h.b16 %v1495
        %v2350 = vunpack.c.l.b16 %v1496
        %v2351 = vunpack.c.h.b16 %v1496
        %v2352 = vunpack.c.l.b16 %v1497
        %v2353 = vunpack.c.h.b16 %v1497
        %v2354 = vunpack.c.l.b16 %v1498
        %v2355 = vunpack.c.h.b16 %v1498
        %v2356 = vunpack.c.l.b16 %v1499
        %v2357 = vunpack.c.h.b16 %v1499
        %v2358 = vunpack.c.l.b16 %v1500
        %v2359 = vunpack.c.h.b16 %v1500
        %v2360 = vunpack.c.l.b16 %v1501
        %v2361 = vunpack.c.h.b16 %v1501
        %v2362 = vunpack.c.l.b16 %v1502
        %v2363 = vunpack.c.h.b16 %v1502
        %v2364 = vunpack.c.l.b16 %v1503
        %v2365 = vunpack.c.h.b16 %v1503
        %v2366 = vunpack.c.l.b16 %v1504
        %v2367 = vunpack.c.h.b16 %v1504
        %v2368 = vunpack.c.l.b16 %v1505
        %v2369 = vunpack.c.h.b16 %v1505
        %v2370 = vpack.c.b16 %v1800, %v1794
        %v2371 = vpack.c.b16 %v1801, %v1795
        %v2372 = vpack.c.b16 %v1802, %v1796
        %v2373 = vpack.c.b16 %v1803, %v1797
        %v2374 = vpack.c.b16 %v1804, %v1798
        %v2375 = vpack.c.b16 %v1805, %v1799
        %v2376 = vpack.c.b16 %v1812, %v1806
        %v2377 = vpack.c.b16 %v1813, %v1807
        %v2378 = vpack.c.b16 %v1814, %v1808
        %v2379 = vpack.c.b16 %v1815, %v1809
        %v2380 = vpack.c.b16 %v1816, %v1810
        %v2381 = vpack.c.b16 %v1817, %v1811
        %v2382 = vpack.c.b16 %v1824, %v1818
        %v2383 = vpack.c.b16 %v1825, %v1819
        %v2384 = vpack.c.b16 %v1826, %v1820
        %v2385 = vpack.c.b16 %v1827, %v1821
        %v2386 = vpack.c.b16 %v1828, %v1822
        %v2387 = vpack.c.b16 %v1829, %v1823
        %v2388 = vpack.c.b16 %v1836, %v1830
        %v2389 = vpack.c.b16 %v1837, %v1831
        %v2390 = vpack.c.b16 %v1838, %v1832
        %v2391 = vpack.c.b16 %v1839, %v1833
        %v2392 = vpack.c.b16 %v1840, %v1834
        %v2393 = vpack.c.b16 %v1841, %v1835
        %v2394 = vpack.c.b16 %v1848, %v1842
        %v2395 = vpack.c.b16 %v1849, %v1843
        %v2396 = vpack.c.b16 %v1850, %v1844
        %v2397 = vpack.c.b16 %v1851, %v1845
        %v2398 = vpack.c.b16 %v1852, %v1846
        %v2399 = vpack.c.b16 %v1853, %v1847
        %v2400 = vpack.c.b16 %v1860, %v1854
        %v2401 = vpack.c.b16 %v1861, %v1855
        %v2402 = vpack.c.b16 %v1862, %v1856
        %v2403 = vpack.c.b16 %v1863, %v1857
        %v2404 = vpack.c.b16 %v1864, %v1858
        %v2405 = vpack.c.b16 %v1865, %v1859
        %v2406 = vpack.c.b16 %v1872, %v1866
        %v2407 = vpack.c.b16 %v1873, %v1867
        %v2408 = vpack.c.b16 %v1874, %v1868
        %v2409 = vpack.c.b16 %v1875, %v1869
        %v2410 = vpack.c.b16 %v1876, %v1870
        %v2411 = vpack.c.b16 %v1877, %v1871
        %v2412 = vpack.c.b16 %v1884, %v1878
        %v2413 = vpack.c.b16 %v1885, %v1879
        %v2414 = vpack.c.b16 %v1886, %v1880
        %v2415 = vpack.c.b16 %v1887, %v1881
        %v2416 = vpack.c.b16 %v1888, %v1882
        %v2417 = vpack.c.b16 %v1889, %v1883
        %v2418 = vpack.c.b16 %v1896, %v1890
        %v2419 = vpack.c.b16 %v1897, %v1891
        %v2420 = vpack.c.b16 %v1898, %v1892
        %v2421 = vpack.c.b16 %v1899, %v1893
        %v2422 = vpack.c.b16 %v1900, %v1894
        %v2423 = vpack.c.b16 %v1901, %v1895
        %v2424 = vpack.c.b16 %v1908, %v1902
        %v2425 = vpack.c.b16 %v1909, %v1903
        %v2426 = vpack.c.b16 %v1910, %v1904
        %v2427 = vpack.c.b16 %v1911, %v1905
        %v2428 = vpack.c.b16 %v1912, %v1906
        %v2429 = vpack.c.b16 %v1913, %v1907
        %v2430 = vpack.c.b16 %v1920, %v1914
        %v2431 = vpack.c.b16 %v1921, %v1915
        %v2432 = vpack.c.b16 %v1922, %v1916
        %v2433 = vpack.c.b16 %v1923, %v1917
        %v2434 = vpack.c.b16 %v1924, %v1918
        %v2435 = vpack.c.b16 %v1925, %v1919
        %v2436 = vpack.c.b16 %v1932, %v1926
        %v2437 = vpack.c.b16 %v1933, %v1927
        %v2438 = vpack.c.b16 %v1934, %v1928
        %v2439 = vpack.c.b16 %v1935, %v1929
        %v2440 = vpack.c.b16 %v1936, %v1930
        %v2441 = vpack.c.b16 %v1937, %v1931
        %v2442 = vpack.c.b16 %v1944, %v1938
        %v2443 = vpack.c.b16 %v1945, %v1939
        %v2444 = vpack.c.b16 %v1946, %v1940
        %v2445 = vpack.c.b16 %v1947, %v1941
        %v2446 = vpack.c.b16 %v1948, %v1942
        %v2447 = vpack.c.b16 %v1949, %v1943
        %v2448 = vpack.c.b16 %v1956, %v1950
        %v2449 = vpack.c.b16 %v1957, %v1951
        %v2450 = vpack.c.b16 %v1958, %v1952
        %v2451 = vpack.c.b16 %v1959, %v1953
        %v2452 = vpack.c.b16 %v1960, %v1954
        %v2453 = vpack.c.b16 %v1961, %v1955
        %v2454 = vpack.c.b16 %v1968, %v1962
        %v2455 = vpack.c.b16 %v1969, %v1963
        %v2456 = vpack.c.b16 %v1970, %v1964
        %v2457 = vpack.c.b16 %v1971, %v1965
        %v2458 = vpack.c.b16 %v1972, %v1966
        %v2459 = vpack.c.b16 %v1973, %v1967
        %v2460 = vpack.c.b16 %v1980, %v1974
        %v2461 = vpack.c.b16 %v1981, %v1975
        %v2462 = vpack.c.b16 %v1982, %v1976
        %v2463 = vpack.c.b16 %v1983, %v1977
        %v2464 = vpack.c.b16 %v1984, %v1978
        %v2465 = vpack.c.b16 %v1985, %v1979
        %v2466 = vpack.c.b16 %v1992, %v1986
        %v2467 = vpack.c.b16 %v1993, %v1987
        %v2468 = vpack.c.b16 %v1994, %v1988
        %v2469 = vpack.c.b16 %v1995, %v1989
        %v2470 = vpack.c.b16 %v1996, %v1990
        %v2471 = vpack.c.b16 %v1997, %v1991
        %v2472 = vpack.c.b16 %v2004, %v1998
        %v2473 = vpack.c.b16 %v2005, %v1999
        %v2474 = vpack.c.b16 %v2006, %v2000
        %v2475 = vpack.c.b16 %v2007, %v2001
        %v2476 = vpack.c.b16 %v2008, %v2002
        %v2477 = vpack.c.b16 %v2009, %v2003
        %v2478 = vpack.c.b16 %v2016, %v2010
        %v2479 = vpack.c.b16 %v2017, %v2011
        %v2480 = vpack.c.b16 %v2018, %v2012
        %v2481 = vpack.c.b16 %v2019, %v2013
        %v2482 = vpack.c.b16 %v2020, %v2014
        %v2483 = vpack.c.b16 %v2021, %v2015
        %v2484 = vpack.c.b16 %v2028, %v2022
        %v2485 = vpack.c.b16 %v2029, %v2023
        %v2486 = vpack.c.b16 %v2030, %v2024
        %v2487 = vpack.c.b16 %v2031, %v2025
        %v2488 = vpack.c.b16 %v2032, %v2026
        %v2489 = vpack.c.b16 %v2033, %v2027
        %v2490 = vpack.c.b16 %v2040, %v2034
        %v2491 = vpack.c.b16 %v2041, %v2035
        %v2492 = vpack.c.b16 %v2042, %v2036
        %v2493 = vpack.c.b16 %v2043, %v2037
        %v2494 = vpack.c.b16 %v2044, %v2038
        %v2495 = vpack.c.b16 %v2045, %v2039
        %v2496 = vpack.c.b16 %v2052, %v2046
        %v2497 = vpack.c.b16 %v2053, %v2047
        %v2498 = vpack.c.b16 %v2054, %v2048
        %v2499 = vpack.c.b16 %v2055, %v2049
        %v2500 = vpack.c.b16 %v2056, %v2050
        %v2501 = vpack.c.b16 %v2057, %v2051
        %v2502 = vpack.c.b16 %v2064, %v2058
        %v2503 = vpack.c.b16 %v2065, %v2059
        %v2504 = vpack.c.b16 %v2066, %v2060
        %v2505 = vpack.c.b16 %v2067, %v2061
        %v2506 = vpack.c.b16 %v2068, %v2062
        %v2507 = vpack.c.b16 %v2069, %v2063
        %v2508 = vpack.c.b16 %v2076, %v2070
        %v2509 = vpack.c.b16 %v2077, %v2071
        %v2510 = vpack.c.b16 %v2078, %v2072
        %v2511 = vpack.c.b16 %v2079, %v2073
        %v2512 = vpack.c.b16 %v2080, %v2074
        %v2513 = vpack.c.b16 %v2081, %v2075
        %v2514 = vpack.c.b16 %v2088, %v2082
        %v2515 = vpack.c.b16 %v2089, %v2083
        %v2516 = vpack.c.b16 %v2090, %v2084
        %v2517 = vpack.c.b16 %v2091, %v2085
        %v2518 = vpack.c.b16 %v2092, %v2086
        %v2519 = vpack.c.b16 %v2093, %v2087
        %v2520 = vpack.c.b16 %v2100, %v2094
        %v2521 = vpack.c.b16 %v2101, %v2095
        %v2522 = vpack.c.b16 %v2102, %v2096
        %v2523 = vpack.c.b16 %v2103, %v2097
        %v2524 = vpack.c.b16 %v2104, %v2098
        %v2525 = vpack.c.b16 %v2105, %v2099
        %v2526 = vpack.c.b16 %v2112, %v2106
        %v2527 = vpack.c.b16 %v2113, %v2107
        %v2528 = vpack.c.b16 %v2114, %v2108
        %v2529 = vpack.c.b16 %v2115, %v2109
        %v2530 = vpack.c.b16 %v2116, %v2110
        %v2531 = vpack.c.b16 %v2117, %v2111
        %v2532 = vpack.c.b16 %v2124, %v2118
        %v2533 = vpack.c.b16 %v2125, %v2119
        %v2534 = vpack.c.b16 %v2126, %v2120
        %v2535 = vpack.c.b16 %v2127, %v2121
        %v2536 = vpack.c.b16 %v2128, %v2122
        %v2537 = vpack.c.b16 %v2129, %v2123
        %v2538 = vpack.c.b16 %v2136, %v2130
        %v2539 = vpack.c.b16 %v2137, %v2131
        %v2540 = vpack.c.b16 %v2138, %v2132
        %v2541 = vpack.c.b16 %v2139, %v2133
        %v2542 = vpack.c.b16 %v2140, %v2134
        %v2543 = vpack.c.b16 %v2141, %v2135
        %v2544 = vpack.c.b16 %v2148, %v2142
        %v2545 = vpack.c.b16 %v2149, %v2143
        %v2546 = vpack.c.b16 %v2150, %v2144
        %v2547 = vpack.c.b16 %v2151, %v2145
        %v2548 = vpack.c.b16 %v2152, %v2146
        %v2549 = vpack.c.b16 %v2153, %v2147
        %v2550 = vpack.c.b16 %v2160, %v2154
        %v2551 = vpack.c.b16 %v2161, %v2155
        %v2552 = vpack.c.b16 %v2162, %v2156
        %v2553 = vpack.c.b16 %v2163, %v2157
        %v2554 = vpack.c.b16 %v2164, %v2158
        %v2555 = vpack.c.b16 %v2165, %v2159
        %v2556 = vpack.c.b16 %v2172, %v2166
        %v2557 = vpack.c.b16 %v2173, %v2167
        %v2558 = vpack.c.b16 %v2174, %v2168
        %v2559 = vpack.c.b16 %v2175, %v2169
        %v2560 = vpack.c.b16 %v2176, %v2170
        %v2561 = vpack.c.b16 %v2177, %v2171
        %v2562 = vpack.c.b16 %v2184, %v2178
        %v2563 = vpack.c.b16 %v2185, %v2179
        %v2564 = vpack.c.b16 %v2186, %v2180
        %v2565 = vpack.c.b16 %v2187, %v2181
        %v2566 = vpack.c.b16 %v2188, %v2182
        %v2567 = vpack.c.b16 %v2189, %v2183
        %v2568 = vpack.c.b16 %v2196, %v2190
        %v2569 = vpack.c.b16 %v2197, %v2191
        %v2570 = vpack.c.b16 %v2198, %v2192
        %v2571 = vpack.c.b16 %v2199, %v2193
        %v2572 = vpack.c.b16 %v2200, %v2194
        %v2573 = vpack.c.b16 %v2201, %v2195
        %v2574 = vpack.c.b16 %v2208, %v2202
        %v2575 = vpack.c.b16 %v2209, %v2203
        %v2576 = vpack.c.b16 %v2210, %v2204
        %v2577 = vpack.c.b16 %v2211, %v2205
        %v2578 = vpack.c.b16 %v2212, %v2206
        %v2579 = vpack.c.b16 %v2213, %v2207
        %v2580 = vpack.c.b16 %v2220, %v2214
        %v2581 = vpack.c.b16 %v2221, %v2215
        %v2582 = vpack.c.b16 %v2222, %v2216
        %v2583 = vpack.c.b16 %v2223, %v2217
        %v2584 = vpack.c.b16 %v2224, %v2218
        %v2585 = vpack.c.b16 %v2225, %v2219
        %v2586 = vpack.c.b16 %v2232, %v2226
        %v2587 = vpack.c.b16 %v2233, %v2227
        %v2588 = vpack.c.b16 %v2234, %v2228
        %v2589 = vpack.c.b16 %v2235, %v2229
        %v2590 = vpack.c.b16 %v2236, %v2230
        %v2591 = vpack.c.b16 %v2237, %v2231
        %v2592 = vpack.c.b16 %v2244, %v2238
        %v2593 = vpack.c.b16 %v2245, %v2239
        %v2594 = vpack.c.b16 %v2246, %v2240
        %v2595 = vpack.c.b16 %v2247, %v2241
        %v2596 = vpack.c.b16 %v2248, %v2242
        %v2597 = vpack.c.b16 %v2249, %v2243
        %v2598 = vpack.c.b16 %v2256, %v2250
        %v2599 = vpack.c.b16 %v2257, %v2251
        %v2600 = vpack.c.b16 %v2258, %v2252
        %v2601 = vpack.c.b16 %v2259, %v2253
        %v2602 = vpack.c.b16 %v2260, %v2254
        %v2603 = vpack.c.b16 %v2261, %v2255
        %v2604 = vpack.c.b16 %v2268, %v2262
        %v2605 = vpack.c.b16 %v2269, %v2263
        %v2606 = vpack.c.b16 %v2270, %v2264
        %v2607 = vpack.c.b16 %v2271, %v2265
        %v2608 = vpack.c.b16 %v2272, %v2266
        %v2609 = vpack.c.b16 %v2273, %v2267
        %v2610 = vpack.c.b16 %v2280, %v2274
        %v2611 = vpack.c.b16 %v2281, %v2275
        %v2612 = vpack.c.b16 %v2282, %v2276
        %v2613 = vpack.c.b16 %v2283, %v2277
        %v2614 = vpack.c.b16 %v2284, %v2278
        %v2615 = vpack.c.b16 %v2285, %v2279
        %v2616 = vpack.c.b16 %v2292, %v2286
        %v2617 = vpack.c.b16 %v2293, %v2287
        %v2618 = vpack.c.b16 %v2294, %v2288
        %v2619 = vpack.c.b16 %v2295, %v2289
        %v2620 = vpack.c.b16 %v2296, %v2290
        %v2621 = vpack.c.b16 %v2297, %v2291
        %v2622 = vpack.c.b16 %v2304, %v2298
        %v2623 = vpack.c.b16 %v2305, %v2299
        %v2624 = vpack.c.b16 %v2306, %v2300
        %v2625 = vpack.c.b16 %v2307, %v2301
        %v2626 = vpack.c.b16 %v2308, %v2302
        %v2627 = vpack.c.b16 %v2309, %v2303
        %v2628 = vpack.c.b16 %v2316, %v2310
        %v2629 = vpack.c.b16 %v2317, %v2311
        %v2630 = vpack.c.b16 %v2318, %v2312
        %v2631 = vpack.c.b16 %v2319, %v2313
        %v2632 = vpack.c.b16 %v2320, %v2314
        %v2633 = vpack.c.b16 %v2321, %v2315
        %v2634 = vpack.c.b16 %v2328, %v2322
        %v2635 = vpack.c.b16 %v2329, %v2323
        %v2636 = vpack.c.b16 %v2330, %v2324
        %v2637 = vpack.c.b16 %v2331, %v2325
        %v2638 = vpack.c.b16 %v2332, %v2326
        %v2639 = vpack.c.b16 %v2333, %v2327
        %v2640 = vpack.c.b16 %v2340, %v2334
        %v2641 = vpack.c.b16 %v2341, %v2335
        %v2642 = vpack.c.b16 %v2342, %v2336
        %v2643 = vpack.c.b16 %v2343, %v2337
        %v2644 = vpack.c.b16 %v2344, %v2338
        %v2645 = vpack.c.b16 %v2345, %v2339
        %v2646 = vpack.c.b16 %v2352, %v2346
        %v2647 = vpack.c.b16 %v2353, %v2347
        %v2648 = vpack.c.b16 %v2354, %v2348
        %v2649 = vpack.c.b16 %v2355, %v2349
        %v2650 = vpack.c.b16 %v2356, %v2350
        %v2651 = vpack.c.b16 %v2357, %v2351
        %v2652 = vpack.c.b16 %v2364, %v2358
        %v2653 = vpack.c.b16 %v2365, %v2359
        %v2654 = vpack.c.b16 %v2366, %v2360
        %v2655 = vpack.c.b16 %v2367, %v2361
        %v2656 = vpack.c.b16 %v2368, %v2362
        %v2657 = vpack.c.b16 %v2369, %v2363
        %2946 = vmatprep.subr.bf16.mxu0 %v2413
        %2947 = vmatpush1.bf16.msra.mxu0 %v2412
        %2948 = vmatprep.subr.bf16.mxu0 %v2407
        %2949 = vmatpush1.bf16.msra.mxu0 %v2406
        %2950 = vmatprep.subr.bf16.mxu0 %v2401
        %2951 = vmatpush1.bf16.msra.mxu0 %v2400
        %2952 = vmatprep.subr.bf16.mxu0 %v2395
        %2953 = vmatpush1.bf16.msra.mxu0 %v2394
        %2954 = vmatprep.subr.bf16.mxu0 %v2389
        %2955 = vmatpush1.bf16.msra.mxu0 %v2388
        %2956 = vmatprep.subr.bf16.mxu0 %v2383
        %2957 = vmatpush1.bf16.msra.mxu0 %v2382
        %2958 = vmatprep.subr.bf16.mxu0 %v2377
        %2959 = vmatpush1.bf16.msra.mxu0 %v2376
        %2960 = vmatprep.subr.bf16.mxu0 %v2371
        %2961 = vmatpush1.bf16.msra.mxu0 %v2370
        %2962 = vmatprep.subr.bf16.mxu0 %v2461
        %2963 = vmatpush2.bf16.msra.mxu0 %v2460
        %2964 = vmatprep.subr.bf16.mxu0 %v2455
        %2965 = vmatpush2.bf16.msra.mxu0 %v2454
        %2966 = vmatprep.subr.bf16.mxu0 %v2449
        %2967 = vmatpush2.bf16.msra.mxu0 %v2448
        %2968 = vmatprep.subr.bf16.mxu0 %v2443
        %2969 = vmatpush2.bf16.msra.mxu0 %v2442
        %2970 = vmatprep.subr.bf16.mxu0 %v2437
        %2971 = vmatpush2.bf16.msra.mxu0 %v2436
        %2972 = vmatprep.subr.bf16.mxu0 %v2431
        %2973 = vmatpush2.bf16.msra.mxu0 %v2430
        %2974 = vmatprep.subr.bf16.mxu0 %v2425
        %2975 = vmatpush2.bf16.msra.mxu0 %v2424
        %2976 = vmatprep.subr.bf16.mxu0 %v2419
        %2977 = vmatpush2.bf16.msra.mxu0 %v2418
        %2978 = vmatprep.mubr.bf16.mxu0 %v1213
        %2979 = vmatmul.mubr.bf16.gmra.mxu0 %v1212
        %v2980 = vpop.f32.mrf.mxu0
        %v2981 = vadd.f32 0.0, %v2980
        %v2982 = vpop.f32.mrf.mxu0
        %v2983 = vadd.f32 0.0, %v2982
        %v2984 = vpop.f32.mrf.mxu0
        %v2985 = vadd.f32 0.0, %v2984
        %v2986 = vpop.f32.mrf.mxu0
        %v2987 = vadd.f32 0.0, %v2986
        %2988 = vdwg.mxu0
        %2989 = vmatprep.subr.bf16.mxu0 %v2509
        %2990 = vmatpush1.bf16.msra.mxu0 %v2508
        %2991 = vmatprep.subr.bf16.mxu0 %v2503
        %2992 = vmatpush1.bf16.msra.mxu0 %v2502
        %2993 = vmatprep.subr.bf16.mxu0 %v2497
        %2994 = vmatpush1.bf16.msra.mxu0 %v2496
        %2995 = vmatprep.subr.bf16.mxu0 %v2491
        %2996 = vmatpush1.bf16.msra.mxu0 %v2490
        %2997 = vmatprep.subr.bf16.mxu0 %v2485
        %2998 = vmatpush1.bf16.msra.mxu0 %v2484
        %2999 = vmatprep.subr.bf16.mxu0 %v2479
        %3000 = vmatpush1.bf16.msra.mxu0 %v2478
        %3001 = vmatprep.subr.bf16.mxu0 %v2473
        %3002 = vmatpush1.bf16.msra.mxu0 %v2472
        %3003 = vmatprep.subr.bf16.mxu0 %v2467
        %3004 = vmatpush1.bf16.msra.mxu0 %v2466
        %3005 = vmatprep.subr.bf16.mxu0 %v2557
        %3006 = vmatpush2.bf16.msra.mxu0 %v2556
        %3007 = vmatprep.subr.bf16.mxu0 %v2551
        %3008 = vmatpush2.bf16.msra.mxu0 %v2550
        %3009 = vmatprep.subr.bf16.mxu0 %v2545
        %3010 = vmatpush2.bf16.msra.mxu0 %v2544
        %3011 = vmatprep.subr.bf16.mxu0 %v2539
        %3012 = vmatpush2.bf16.msra.mxu0 %v2538
        %3013 = vmatprep.subr.bf16.mxu0 %v2533
        %3014 = vmatpush2.bf16.msra.mxu0 %v2532
        %3015 = vmatprep.subr.bf16.mxu0 %v2527
        %3016 = vmatpush2.bf16.msra.mxu0 %v2526
        %3017 = vmatprep.subr.bf16.mxu0 %v2521
        %3018 = vmatpush2.bf16.msra.mxu0 %v2520
        %3019 = vmatprep.subr.bf16.mxu0 %v2515
        %3020 = vmatpush2.bf16.msra.mxu0 %v2514
        %3021 = vmatprep.mubr.bf16.mxu0 %v1215
        %3022 = vmatmul.mubr.bf16.gmra.mxu0 %v1214
        %v3023 = vpop.f32.mrf.mxu0
        %v3024 = vadd.f32 %v2981, %v3023
        %v3025 = vpop.f32.mrf.mxu0
        %v3026 = vadd.f32 %v2983, %v3025
        %v3027 = vpop.f32.mrf.mxu0
        %v3028 = vadd.f32 %v2985, %v3027
        %v3029 = vpop.f32.mrf.mxu0
        %v3030 = vadd.f32 %v2987, %v3029
        %3031 = vdwg.mxu0
        %3032 = vmatprep.subr.bf16.mxu0 %v2605
        %3033 = vmatpush1.bf16.msra.mxu0 %v2604
        %3034 = vmatprep.subr.bf16.mxu0 %v2599
        %3035 = vmatpush1.bf16.msra.mxu0 %v2598
        %3036 = vmatprep.subr.bf16.mxu0 %v2593
        %3037 = vmatpush1.bf16.msra.mxu0 %v2592
        %3038 = vmatprep.subr.bf16.mxu0 %v2587
        %3039 = vmatpush1.bf16.msra.mxu0 %v2586
        %3040 = vmatprep.subr.bf16.mxu0 %v2581
        %3041 = vmatpush1.bf16.msra.mxu0 %v2580
        %3042 = vmatprep.subr.bf16.mxu0 %v2575
        %3043 = vmatpush1.bf16.msra.mxu0 %v2574
        %3044 = vmatprep.subr.bf16.mxu0 %v2569
        %3045 = vmatpush1.bf16.msra.mxu0 %v2568
        %3046 = vmatprep.subr.bf16.mxu0 %v2563
        %3047 = vmatpush1.bf16.msra.mxu0 %v2562
        %3048 = vmatprep.subr.bf16.mxu0 %v2653
        %3049 = vmatpush2.bf16.msra.mxu0 %v2652
        %3050 = vmatprep.subr.bf16.mxu0 %v2647
        %3051 = vmatpush2.bf16.msra.mxu0 %v2646
        %3052 = vmatprep.subr.bf16.mxu0 %v2641
        %3053 = vmatpush2.bf16.msra.mxu0 %v2640
        %3054 = vmatprep.subr.bf16.mxu0 %v2635
        %3055 = vmatpush2.bf16.msra.mxu0 %v2634
        %3056 = vmatprep.subr.bf16.mxu0 %v2629
        %3057 = vmatpush2.bf16.msra.mxu0 %v2628
        %3058 = vmatprep.subr.bf16.mxu0 %v2623
        %3059 = vmatpush2.bf16.msra.mxu0 %v2622
        %3060 = vmatprep.subr.bf16.mxu0 %v2617
        %3061 = vmatpush2.bf16.msra.mxu0 %v2616
        %3062 = vmatprep.subr.bf16.mxu0 %v2611
        %3063 = vmatpush2.bf16.msra.mxu0 %v2610
        %3064 = vmatprep.mubr.bf16.mxu0 %v1217
        %3065 = vmatmul.mubr.bf16.gmra.mxu0 %v1216
        %v3066 = vpop.f32.mrf.mxu0
        %v3067 = vadd.f32 %v3024, %v3066
        %v3068 = vpop.f32.mrf.mxu0
        %v3069 = vadd.f32 %v3026, %v3068
        %v3070 = vpop.f32.mrf.mxu0
        %v3071 = vadd.f32 %v3028, %v3070
        %v3072 = vpop.f32.mrf.mxu0
        %v3073 = vadd.f32 %v3030, %v3072
        %3074 = vdwg.mxu0
        %3075 = vmatprep.subr.bf16.mxu0 %v2415
        %3076 = vmatpush1.bf16.msra.mxu0 %v2414
        %3077 = vmatprep.subr.bf16.mxu0 %v2409
        %3078 = vmatpush1.bf16.msra.mxu0 %v2408
        %3079 = vmatprep.subr.bf16.mxu0 %v2403
        %3080 = vmatpush1.bf16.msra.mxu0 %v2402
        %3081 = vmatprep.subr.bf16.mxu0 %v2397
        %3082 = vmatpush1.bf16.msra.mxu0 %v2396
        %3083 = vmatprep.subr.bf16.mxu0 %v2391
        %3084 = vmatpush1.bf16.msra.mxu0 %v2390
        %3085 = vmatprep.subr.bf16.mxu0 %v2385
        %3086 = vmatpush1.bf16.msra.mxu0 %v2384
        %3087 = vmatprep.subr.bf16.mxu0 %v2379
        %3088 = vmatpush1.bf16.msra.mxu0 %v2378
        %3089 = vmatprep.subr.bf16.mxu0 %v2373
        %3090 = vmatpush1.bf16.msra.mxu0 %v2372
        %3091 = vmatprep.subr.bf16.mxu0 %v2463
        %3092 = vmatpush2.bf16.msra.mxu0 %v2462
        %3093 = vmatprep.subr.bf16.mxu0 %v2457
        %3094 = vmatpush2.bf16.msra.mxu0 %v2456
        %3095 = vmatprep.subr.bf16.mxu0 %v2451
        %3096 = vmatpush2.bf16.msra.mxu0 %v2450
        %3097 = vmatprep.subr.bf16.mxu0 %v2445
        %3098 = vmatpush2.bf16.msra.mxu0 %v2444
        %3099 = vmatprep.subr.bf16.mxu0 %v2439
        %3100 = vmatpush2.bf16.msra.mxu0 %v2438
        %3101 = vmatprep.subr.bf16.mxu0 %v2433
        %3102 = vmatpush2.bf16.msra.mxu0 %v2432
        %3103 = vmatprep.subr.bf16.mxu0 %v2427
        %3104 = vmatpush2.bf16.msra.mxu0 %v2426
        %3105 = vmatprep.subr.bf16.mxu0 %v2421
        %3106 = vmatpush2.bf16.msra.mxu0 %v2420
        %3107 = vmatprep.mubr.bf16.mxu0 %v1213
        %3108 = vmatmul.mubr.bf16.gmra.mxu0 %v1212
        %v3109 = vpop.f32.mrf.mxu0
        %v3110 = vadd.f32 0.0, %v3109
        %v3111 = vpop.f32.mrf.mxu0
        %v3112 = vadd.f32 0.0, %v3111
        %v3113 = vpop.f32.mrf.mxu0
        %v3114 = vadd.f32 0.0, %v3113
        %v3115 = vpop.f32.mrf.mxu0
        %v3116 = vadd.f32 0.0, %v3115
        %3117 = vdwg.mxu0
        %3118 = vmatprep.subr.bf16.mxu0 %v2511
        %3119 = vmatpush1.bf16.msra.mxu0 %v2510
        %3120 = vmatprep.subr.bf16.mxu0 %v2505
        %3121 = vmatpush1.bf16.msra.mxu0 %v2504
        %3122 = vmatprep.subr.bf16.mxu0 %v2499
        %3123 = vmatpush1.bf16.msra.mxu0 %v2498
        %3124 = vmatprep.subr.bf16.mxu0 %v2493
        %3125 = vmatpush1.bf16.msra.mxu0 %v2492
        %3126 = vmatprep.subr.bf16.mxu0 %v2487
        %3127 = vmatpush1.bf16.msra.mxu0 %v2486
        %3128 = vmatprep.subr.bf16.mxu0 %v2481
        %3129 = vmatpush1.bf16.msra.mxu0 %v2480
        %3130 = vmatprep.subr.bf16.mxu0 %v2475
        %3131 = vmatpush1.bf16.msra.mxu0 %v2474
        %3132 = vmatprep.subr.bf16.mxu0 %v2469
        %3133 = vmatpush1.bf16.msra.mxu0 %v2468
        %3134 = vmatprep.subr.bf16.mxu0 %v2559
        %3135 = vmatpush2.bf16.msra.mxu0 %v2558
        %3136 = vmatprep.subr.bf16.mxu0 %v2553
        %3137 = vmatpush2.bf16.msra.mxu0 %v2552
        %3138 = vmatprep.subr.bf16.mxu0 %v2547
        %3139 = vmatpush2.bf16.msra.mxu0 %v2546
        %3140 = vmatprep.subr.bf16.mxu0 %v2541
        %3141 = vmatpush2.bf16.msra.mxu0 %v2540
        %3142 = vmatprep.subr.bf16.mxu0 %v2535
        %3143 = vmatpush2.bf16.msra.mxu0 %v2534
        %3144 = vmatprep.subr.bf16.mxu0 %v2529
        %3145 = vmatpush2.bf16.msra.mxu0 %v2528
        %3146 = vmatprep.subr.bf16.mxu0 %v2523
        %3147 = vmatpush2.bf16.msra.mxu0 %v2522
        %3148 = vmatprep.subr.bf16.mxu0 %v2517
        %3149 = vmatpush2.bf16.msra.mxu0 %v2516
        %3150 = vmatprep.mubr.bf16.mxu0 %v1215
        %3151 = vmatmul.mubr.bf16.gmra.mxu0 %v1214
        %v3152 = vpop.f32.mrf.mxu0
        %v3153 = vadd.f32 %v3110, %v3152
        %v3154 = vpop.f32.mrf.mxu0
        %v3155 = vadd.f32 %v3112, %v3154
        %v3156 = vpop.f32.mrf.mxu0
        %v3157 = vadd.f32 %v3114, %v3156
        %v3158 = vpop.f32.mrf.mxu0
        %v3159 = vadd.f32 %v3116, %v3158
        %3160 = vdwg.mxu0
        %3161 = vmatprep.subr.bf16.mxu0 %v2607
        %3162 = vmatpush1.bf16.msra.mxu0 %v2606
        %3163 = vmatprep.subr.bf16.mxu0 %v2601
        %3164 = vmatpush1.bf16.msra.mxu0 %v2600
        %3165 = vmatprep.subr.bf16.mxu0 %v2595
        %3166 = vmatpush1.bf16.msra.mxu0 %v2594
        %3167 = vmatprep.subr.bf16.mxu0 %v2589
        %3168 = vmatpush1.bf16.msra.mxu0 %v2588
        %3169 = vmatprep.subr.bf16.mxu0 %v2583
        %3170 = vmatpush1.bf16.msra.mxu0 %v2582
        %3171 = vmatprep.subr.bf16.mxu0 %v2577
        %3172 = vmatpush1.bf16.msra.mxu0 %v2576
        %3173 = vmatprep.subr.bf16.mxu0 %v2571
        %3174 = vmatpush1.bf16.msra.mxu0 %v2570
        %3175 = vmatprep.subr.bf16.mxu0 %v2565
        %3176 = vmatpush1.bf16.msra.mxu0 %v2564
        %3177 = vmatprep.subr.bf16.mxu0 %v2655
        %3178 = vmatpush2.bf16.msra.mxu0 %v2654
        %3179 = vmatprep.subr.bf16.mxu0 %v2649
        %3180 = vmatpush2.bf16.msra.mxu0 %v2648
        %3181 = vmatprep.subr.bf16.mxu0 %v2643
        %3182 = vmatpush2.bf16.msra.mxu0 %v2642
        %3183 = vmatprep.subr.bf16.mxu0 %v2637
        %3184 = vmatpush2.bf16.msra.mxu0 %v2636
        %3185 = vmatprep.subr.bf16.mxu0 %v2631
        %3186 = vmatpush2.bf16.msra.mxu0 %v2630
        %3187 = vmatprep.subr.bf16.mxu0 %v2625
        %3188 = vmatpush2.bf16.msra.mxu0 %v2624
        %3189 = vmatprep.subr.bf16.mxu0 %v2619
        %3190 = vmatpush2.bf16.msra.mxu0 %v2618
        %3191 = vmatprep.subr.bf16.mxu0 %v2613
        %3192 = vmatpush2.bf16.msra.mxu0 %v2612
        %3193 = vmatprep.mubr.bf16.mxu0 %v1217
        %3194 = vmatmul.mubr.bf16.gmra.mxu0 %v1216
        %v3195 = vpop.f32.mrf.mxu0
        %v3196 = vadd.f32 %v3153, %v3195
        %v3197 = vpop.f32.mrf.mxu0
        %v3198 = vadd.f32 %v3155, %v3197
        %v3199 = vpop.f32.mrf.mxu0
        %v3200 = vadd.f32 %v3157, %v3199
        %v3201 = vpop.f32.mrf.mxu0
        %v3202 = vadd.f32 %v3159, %v3201
        %3203 = vdwg.mxu0
        %3204 = vmatprep.subr.bf16.mxu0 %v2417
        %3205 = vmatpush1.bf16.msra.mxu0 %v2416
        %3206 = vmatprep.subr.bf16.mxu0 %v2411
        %3207 = vmatpush1.bf16.msra.mxu0 %v2410
        %3208 = vmatprep.subr.bf16.mxu0 %v2405
        %3209 = vmatpush1.bf16.msra.mxu0 %v2404
        %3210 = vmatprep.subr.bf16.mxu0 %v2399
        %3211 = vmatpush1.bf16.msra.mxu0 %v2398
        %3212 = vmatprep.subr.bf16.mxu0 %v2393
        %3213 = vmatpush1.bf16.msra.mxu0 %v2392
        %3214 = vmatprep.subr.bf16.mxu0 %v2387
        %3215 = vmatpush1.bf16.msra.mxu0 %v2386
        %3216 = vmatprep.subr.bf16.mxu0 %v2381
        %3217 = vmatpush1.bf16.msra.mxu0 %v2380
        %3218 = vmatprep.subr.bf16.mxu0 %v2375
        %3219 = vmatpush1.bf16.msra.mxu0 %v2374
        %3220 = vmatprep.subr.bf16.mxu0 %v2465
        %3221 = vmatpush2.bf16.msra.mxu0 %v2464
        %3222 = vmatprep.subr.bf16.mxu0 %v2459
        %3223 = vmatpush2.bf16.msra.mxu0 %v2458
        %3224 = vmatprep.subr.bf16.mxu0 %v2453
        %3225 = vmatpush2.bf16.msra.mxu0 %v2452
        %3226 = vmatprep.subr.bf16.mxu0 %v2447
        %3227 = vmatpush2.bf16.msra.mxu0 %v2446
        %3228 = vmatprep.subr.bf16.mxu0 %v2441
        %3229 = vmatpush2.bf16.msra.mxu0 %v2440
        %3230 = vmatprep.subr.bf16.mxu0 %v2435
        %3231 = vmatpush2.bf16.msra.mxu0 %v2434
        %3232 = vmatprep.subr.bf16.mxu0 %v2429
        %3233 = vmatpush2.bf16.msra.mxu0 %v2428
        %3234 = vmatprep.subr.bf16.mxu0 %v2423
        %3235 = vmatpush2.bf16.msra.mxu0 %v2422
        %3236 = vmatprep.mubr.bf16.mxu0 %v1213
        %3237 = vmatmul.mubr.bf16.gmra.mxu0 %v1212
        %v3238 = vpop.f32.mrf.mxu0
        %v3239 = vadd.f32 0.0, %v3238
        %v3240 = vpop.f32.mrf.mxu0
        %v3241 = vadd.f32 0.0, %v3240
        %v3242 = vpop.f32.mrf.mxu0
        %v3243 = vadd.f32 0.0, %v3242
        %v3244 = vpop.f32.mrf.mxu0
        %v3245 = vadd.f32 0.0, %v3244
        %3246 = vdwg.mxu0
        %3247 = vmatprep.subr.bf16.mxu0 %v2513
        %3248 = vmatpush1.bf16.msra.mxu0 %v2512
        %3249 = vmatprep.subr.bf16.mxu0 %v2507
        %3250 = vmatpush1.bf16.msra.mxu0 %v2506
        %3251 = vmatprep.subr.bf16.mxu0 %v2501
        %3252 = vmatpush1.bf16.msra.mxu0 %v2500
        %3253 = vmatprep.subr.bf16.mxu0 %v2495
        %3254 = vmatpush1.bf16.msra.mxu0 %v2494
        %3255 = vmatprep.subr.bf16.mxu0 %v2489
        %3256 = vmatpush1.bf16.msra.mxu0 %v2488
        %3257 = vmatprep.subr.bf16.mxu0 %v2483
        %3258 = vmatpush1.bf16.msra.mxu0 %v2482
        %3259 = vmatprep.subr.bf16.mxu0 %v2477
        %3260 = vmatpush1.bf16.msra.mxu0 %v2476
        %3261 = vmatprep.subr.bf16.mxu0 %v2471
        %3262 = vmatpush1.bf16.msra.mxu0 %v2470
        %3263 = vmatprep.subr.bf16.mxu0 %v2561
        %3264 = vmatpush2.bf16.msra.mxu0 %v2560
        %3265 = vmatprep.subr.bf16.mxu0 %v2555
        %3266 = vmatpush2.bf16.msra.mxu0 %v2554
        %3267 = vmatprep.subr.bf16.mxu0 %v2549
        %3268 = vmatpush2.bf16.msra.mxu0 %v2548
        %3269 = vmatprep.subr.bf16.mxu0 %v2543
        %3270 = vmatpush2.bf16.msra.mxu0 %v2542
        %3271 = vmatprep.subr.bf16.mxu0 %v2537
        %3272 = vmatpush2.bf16.msra.mxu0 %v2536
        %3273 = vmatprep.subr.bf16.mxu0 %v2531
        %3274 = vmatpush2.bf16.msra.mxu0 %v2530
        %3275 = vmatprep.subr.bf16.mxu0 %v2525
        %3276 = vmatpush2.bf16.msra.mxu0 %v2524
        %3277 = vmatprep.subr.bf16.mxu0 %v2519
        %3278 = vmatpush2.bf16.msra.mxu0 %v2518
        %3279 = vmatprep.mubr.bf16.mxu0 %v1215
        %3280 = vmatmul.mubr.bf16.gmra.mxu0 %v1214
        %v3281 = vpop.f32.mrf.mxu0
        %v3282 = vadd.f32 %v3239, %v3281
        %v3283 = vpop.f32.mrf.mxu0
        %v3284 = vadd.f32 %v3241, %v3283
        %v3285 = vpop.f32.mrf.mxu0
        %v3286 = vadd.f32 %v3243, %v3285
        %v3287 = vpop.f32.mrf.mxu0
        %v3288 = vadd.f32 %v3245, %v3287
        %3289 = vdwg.mxu0
        %3290 = vmatprep.subr.bf16.mxu0 %v2609
        %3291 = vmatpush1.bf16.msra.mxu0 %v2608
        %3292 = vmatprep.subr.bf16.mxu0 %v2603
        %3293 = vmatpush1.bf16.msra.mxu0 %v2602
        %3294 = vmatprep.subr.bf16.mxu0 %v2597
        %3295 = vmatpush1.bf16.msra.mxu0 %v2596
        %3296 = vmatprep.subr.bf16.mxu0 %v2591
        %3297 = vmatpush1.bf16.msra.mxu0 %v2590
        %3298 = vmatprep.subr.bf16.mxu0 %v2585
        %3299 = vmatpush1.bf16.msra.mxu0 %v2584
        %3300 = vmatprep.subr.bf16.mxu0 %v2579
        %3301 = vmatpush1.bf16.msra.mxu0 %v2578
        %3302 = vmatprep.subr.bf16.mxu0 %v2573
        %3303 = vmatpush1.bf16.msra.mxu0 %v2572
        %3304 = vmatprep.subr.bf16.mxu0 %v2567
        %3305 = vmatpush1.bf16.msra.mxu0 %v2566
        %3306 = vmatprep.subr.bf16.mxu0 %v2657
        %3307 = vmatpush2.bf16.msra.mxu0 %v2656
        %3308 = vmatprep.subr.bf16.mxu0 %v2651
        %3309 = vmatpush2.bf16.msra.mxu0 %v2650
        %3310 = vmatprep.subr.bf16.mxu0 %v2645
        %3311 = vmatpush2.bf16.msra.mxu0 %v2644
        %3312 = vmatprep.subr.bf16.mxu0 %v2639
        %3313 = vmatpush2.bf16.msra.mxu0 %v2638
        %3314 = vmatprep.subr.bf16.mxu0 %v2633
        %3315 = vmatpush2.bf16.msra.mxu0 %v2632
        %3316 = vmatprep.subr.bf16.mxu0 %v2627
        %3317 = vmatpush2.bf16.msra.mxu0 %v2626
        %3318 = vmatprep.subr.bf16.mxu0 %v2621
        %3319 = vmatpush2.bf16.msra.mxu0 %v2620
        %3320 = vmatprep.subr.bf16.mxu0 %v2615
        %3321 = vmatpush2.bf16.msra.mxu0 %v2614
        %3322 = vmatprep.mubr.bf16.mxu0 %v1217
        %3323 = vmatmul.mubr.bf16.gmra.mxu0 %v1216
        %v3324 = vpop.f32.mrf.mxu0
        %v3325 = vadd.f32 %v3282, %v3324
        %v3326 = vpop.f32.mrf.mxu0
        %v3327 = vadd.f32 %v3284, %v3326
        %v3328 = vpop.f32.mrf.mxu0
        %v3329 = vadd.f32 %v3286, %v3328
        %v3330 = vpop.f32.mrf.mxu0
        %v3331 = vadd.f32 %v3288, %v3330
        %3332 = vdwg.mxu0
        %v3333 = vld [vmem:[#allocation10] sm:$0x3f]
        %v3334 = vld [vmem:[#allocation11] sm:$0x3f]
        %v3335 = vadd.f32 %v3067, %v3071
        %v3336 = vrot.slane %v3335, 4
        %v3337 = vadd.f32 %v3335, %v3336
        %v3338 = vrot.slane %v3337, 2
        %v3339 = vadd.f32 %v3337, %v3338
        %v3340 = vrot.slane %v3339, 1
        %v3341 = vadd.f32 %v3339, %v3340
        %v3342 = vadd.f32 %v3069, %v3073
        %v3343 = vrot.slane %v3342, 4
        %v3344 = vadd.f32 %v3342, %v3343
        %v3345 = vrot.slane %v3344, 2
        %v3346 = vadd.f32 %v3344, %v3345
        %v3347 = vrot.slane %v3346, 1
        %v3348 = vadd.f32 %v3346, %v3347
        %v3349 = vadd.f32 %v3196, %v3200
        %v3350 = vrot.slane %v3349, 4
        %v3351 = vadd.f32 %v3349, %v3350
        %v3352 = vrot.slane %v3351, 2
        %v3353 = vadd.f32 %v3351, %v3352
        %v3354 = vrot.slane %v3353, 1
        %v3355 = vadd.f32 %v3353, %v3354
        %v3356 = vadd.f32 %v3198, %v3202
        %v3357 = vrot.slane %v3356, 4
        %v3358 = vadd.f32 %v3356, %v3357
        %v3359 = vrot.slane %v3358, 2
        %v3360 = vadd.f32 %v3358, %v3359
        %v3361 = vrot.slane %v3360, 1
        %v3362 = vadd.f32 %v3360, %v3361
        %v3363 = vadd.f32 %v3325, %v3329
        %v3364 = vrot.slane %v3363, 4
        %v3365 = vadd.f32 %v3363, %v3364
        %v3366 = vrot.slane %v3365, 2
        %v3367 = vadd.f32 %v3365, %v3366
        %v3368 = vrot.slane %v3367, 1
        %v3369 = vadd.f32 %v3367, %v3368
        %v3370 = vadd.f32 %v3327, %v3331
        %v3371 = vrot.slane %v3370, 4
        %v3372 = vadd.f32 %v3370, %v3371
        %v3373 = vrot.slane %v3372, 2
        %v3374 = vadd.f32 %v3372, %v3373
        %v3375 = vrot.slane %v3374, 1
        %v3376 = vadd.f32 %v3374, %v3375
        %v3377 = vmul.f32 %v3067, %v3067
        %v3378 = vmul.f32 %v3069, %v3069
        %v3379 = vmul.f32 %v3196, %v3196
        %v3380 = vmul.f32 %v3198, %v3198
        %v3381 = vmul.f32 %v3325, %v3325
        %v3382 = vmul.f32 %v3327, %v3327
        %v3383 = vmul.f32 %v3071, %v3071
        %v3384 = vmul.f32 %v3073, %v3073
        %v3385 = vmul.f32 %v3200, %v3200
        %v3386 = vmul.f32 %v3202, %v3202
        %v3387 = vmul.f32 %v3329, %v3329
        %v3388 = vmul.f32 %v3331, %v3331
        %v3389 = vadd.f32 %v3377, %v3383
        %v3390 = vrot.slane %v3389, 4
        %v3391 = vadd.f32 %v3389, %v3390
        %v3392 = vrot.slane %v3391, 2
        %v3393 = vadd.f32 %v3391, %v3392
        %v3394 = vrot.slane %v3393, 1
        %v3395 = vadd.f32 %v3393, %v3394
        %v3396 = vadd.f32 %v3378, %v3384
        %v3397 = vrot.slane %v3396, 4
        %v3398 = vadd.f32 %v3396, %v3397
        %v3399 = vrot.slane %v3398, 2
        %v3400 = vadd.f32 %v3398, %v3399
        %v3401 = vrot.slane %v3400, 1
        %v3402 = vadd.f32 %v3400, %v3401
        %v3403 = vadd.f32 %v3379, %v3385
        %v3404 = vrot.slane %v3403, 4
        %v3405 = vadd.f32 %v3403, %v3404
        %v3406 = vrot.slane %v3405, 2
        %v3407 = vadd.f32 %v3405, %v3406
        %v3408 = vrot.slane %v3407, 1
        %v3409 = vadd.f32 %v3407, %v3408
        %v3410 = vadd.f32 %v3380, %v3386
        %v3411 = vrot.slane %v3410, 4
        %v3412 = vadd.f32 %v3410, %v3411
        %v3413 = vrot.slane %v3412, 2
        %v3414 = vadd.f32 %v3412, %v3413
        %v3415 = vrot.slane %v3414, 1
        %v3416 = vadd.f32 %v3414, %v3415
        %v3417 = vadd.f32 %v3381, %v3387
        %v3418 = vrot.slane %v3417, 4
        %v3419 = vadd.f32 %v3417, %v3418
        %v3420 = vrot.slane %v3419, 2
        %v3421 = vadd.f32 %v3419, %v3420
        %v3422 = vrot.slane %v3421, 1
        %v3423 = vadd.f32 %v3421, %v3422
        %v3424 = vadd.f32 %v3382, %v3388
        %v3425 = vrot.slane %v3424, 4
        %v3426 = vadd.f32 %v3424, %v3425
        %v3427 = vrot.slane %v3426, 2
        %v3428 = vadd.f32 %v3426, %v3427
        %v3429 = vrot.slane %v3428, 1
        %v3430 = vadd.f32 %v3428, %v3429
        %v3431 = vmul.f32 %v3341, 0.0625
        %v3432 = vmul.f32 %v3348, 0.0625
        %v3433 = vmul.f32 %v3355, 0.0625
        %v3434 = vmul.f32 %v3362, 0.0625
        %v3435 = vmul.f32 %v3369, 0.0625
        %v3436 = vmul.f32 %v3376, 0.0625
        %v3437 = vmul.f32 %v3395, 0.0625
        %v3438 = vmul.f32 %v3402, 0.0625
        %v3439 = vmul.f32 %v3409, 0.0625
        %v3440 = vmul.f32 %v3416, 0.0625
        %v3441 = vmul.f32 %v3423, 0.0625
        %v3442 = vmul.f32 %v3430, 0.0625
        %v3443 = vmul.f32 %v3431, %v3431
        %v3444 = vmul.f32 %v3432, %v3432
        %v3445 = vmul.f32 %v3433, %v3433
        %v3446 = vmul.f32 %v3434, %v3434
        %v3447 = vmul.f32 %v3435, %v3435
        %v3448 = vmul.f32 %v3436, %v3436
        %v3449 = vsub.f32 %v3437, %v3443
        %v3450 = vsub.f32 %v3438, %v3444
        %v3451 = vsub.f32 %v3439, %v3445
        %v3452 = vsub.f32 %v3440, %v3446
        %v3453 = vsub.f32 %v3441, %v3447
        %v3454 = vsub.f32 %v3442, %v3448
        %v3455 = vmax.f32 %v3449, 0.0
        %v3456 = vmax.f32 %v3450, 0.0
        %v3457 = vmax.f32 %v3451, 0.0
        %v3458 = vmax.f32 %v3452, 0.0
        %v3459 = vmax.f32 %v3453, 0.0
        %v3460 = vmax.f32 %v3454, 0.0
        %v3461 = vadd.f32 %v3455, 1e-05
        %v3462 = vadd.f32 %v3456, 1e-05
        %v3463 = vadd.f32 %v3457, 1e-05
        %v3464 = vadd.f32 %v3458, 1e-05
        %v3465 = vadd.f32 %v3459, 1e-05
        %v3466 = vadd.f32 %v3460, 1e-05
        %v3467 = vrsqrt.pop %v3461
        %v3468 = vrsqrt.pop %v3462
        %v3469 = vrsqrt.pop %v3463
        %v3470 = vrsqrt.pop %v3464
        %v3471 = vrsqrt.pop %v3465
        %v3472 = vrsqrt.pop %v3466
        %v3479 = vcombine.low %v3467, %v3468
        %v3480 = vcombine.low %v3469, %v3470
        %v3481 = vcombine.low %v3471, %v3472
        %v3483 = vunpack.c.l.s4 1966171168
        %v3484 = vunpack.c.0.s8 %v3483
        %v3485 = vlaneseq
        %v3486 = vshrl.u32 %v3485, 7
        %v3487 = vsub.s32 %v3484, %v3486
        %v3488 = vrot.slane %v3479, %v3487
        %v3490 = vunpack.c.l.s4 1966171168
        %v3491 = vunpack.c.0.s8 %v3490
        %v3492 = vlaneseq
        %v3493 = vshrl.u32 %v3492, 7
        %v3494 = vsub.s32 %v3491, %v3493
        %v3495 = vrot.slane %v3480, %v3494
        %v3497 = vunpack.c.l.s4 1966171168
        %v3498 = vunpack.c.0.s8 %v3497
        %v3499 = vlaneseq
        %v3500 = vshrl.u32 %v3499, 7
        %v3501 = vsub.s32 %v3498, %v3500
        %v3502 = vrot.slane %v3481, %v3501
        %v3503 = vcombine.low %v3488, %v3495
        %v3505 = vunpack.c.l.s4 1966171168
        %v3506 = vunpack.c.0.s8 %v3505
        %v3507 = vlaneseq
        %v3508 = vshrl.u32 %v3507, 7
        %v3509 = vsub.s32 %v3506, %v3508
        %v3510 = vrot.slane %v3503, %v3509
        %v3512 = vunpack.c.l.s4 1966171168
        %v3513 = vunpack.c.0.s8 %v3512
        %v3514 = vlaneseq
        %v3515 = vshrl.u32 %v3514, 7
        %v3516 = vsub.s32 %v3513, %v3515
        %v3517 = vrot.slane %v3502, %v3516
        %v3518 = vcombine.low %v3510, %v3517
        %v3520 = vmul.f32 %v3333, %v3518
        %v3522 = vlaneseq
        %v3523 = vshrl.u32 %v3522, 7
        %v3524 = vsub.s32 0, %v3523
        %v3525 = vrot.slane %v3520, %v3524
        %v3526 = vlaneseq
        %v3527 = vshrl.u32 %v3526, 7
        %v3528 = vsub.s32 1, %v3527
        %v3529 = vrot.slane %v3520, %v3528
        %v3530 = vlaneseq
        %v3531 = vshrl.u32 %v3530, 7
        %v3532 = vsub.s32 2, %v3531
        %v3533 = vrot.slane %v3520, %v3532
        %v3534 = vlaneseq
        %v3535 = vshrl.u32 %v3534, 7
        %v3536 = vsub.s32 3, %v3535
        %v3537 = vrot.slane %v3520, %v3536
        %v3538 = vlaneseq
        %v3539 = vshrl.u32 %v3538, 7
        %v3540 = vsub.s32 4, %v3539
        %v3541 = vrot.slane %v3520, %v3540
        %v3542 = vlaneseq
        %v3543 = vshrl.u32 %v3542, 7
        %v3544 = vsub.s32 5, %v3543
        %v3545 = vrot.slane %v3520, %v3544
        %v3552 = vmul.f32 %v3431, %v3525
        %v3553 = vmul.f32 %v3432, %v3529
        %v3554 = vmul.f32 %v3433, %v3533
        %v3555 = vmul.f32 %v3434, %v3537
        %v3556 = vmul.f32 %v3435, %v3541
        %v3557 = vmul.f32 %v3436, %v3545
        %v3564 = vcombine.low %v3552, %v3553
        %v3565 = vcombine.low %v3554, %v3555
        %v3566 = vcombine.low %v3556, %v3557
        %v3568 = vunpack.c.l.s4 1966171168
        %v3569 = vunpack.c.0.s8 %v3568
        %v3570 = vlaneseq
        %v3571 = vshrl.u32 %v3570, 7
        %v3572 = vsub.s32 %v3569, %v3571
        %v3573 = vrot.slane %v3564, %v3572
        %v3575 = vunpack.c.l.s4 1966171168
        %v3576 = vunpack.c.0.s8 %v3575
        %v3577 = vlaneseq
        %v3578 = vshrl.u32 %v3577, 7
        %v3579 = vsub.s32 %v3576, %v3578
        %v3580 = vrot.slane %v3565, %v3579
        %v3582 = vunpack.c.l.s4 1966171168
        %v3583 = vunpack.c.0.s8 %v3582
        %v3584 = vlaneseq
        %v3585 = vshrl.u32 %v3584, 7
        %v3586 = vsub.s32 %v3583, %v3585
        %v3587 = vrot.slane %v3566, %v3586
        %v3588 = vcombine.low %v3573, %v3580
        %v3590 = vunpack.c.l.s4 1966171168
        %v3591 = vunpack.c.0.s8 %v3590
        %v3592 = vlaneseq
        %v3593 = vshrl.u32 %v3592, 7
        %v3594 = vsub.s32 %v3591, %v3593
        %v3595 = vrot.slane %v3588, %v3594
        %v3597 = vunpack.c.l.s4 1966171168
        %v3598 = vunpack.c.0.s8 %v3597
        %v3599 = vlaneseq
        %v3600 = vshrl.u32 %v3599, 7
        %v3601 = vsub.s32 %v3598, %v3600
        %v3602 = vrot.slane %v3587, %v3601
        %v3603 = vcombine.low %v3595, %v3602
        %v3605 = vsub.f32 %v3334, %v3603
        %v3606 = vmul.f32 %v3067, %v3525
        %v3607 = vmul.f32 %v3069, %v3529
        %v3608 = vmul.f32 %v3196, %v3533
        %v3609 = vmul.f32 %v3198, %v3537
        %v3610 = vmul.f32 %v3325, %v3541
        %v3611 = vmul.f32 %v3327, %v3545
        %v3612 = vmul.f32 %v3071, %v3525
        %v3613 = vmul.f32 %v3073, %v3529
        %v3614 = vmul.f32 %v3200, %v3533
        %v3615 = vmul.f32 %v3202, %v3537
        %v3616 = vmul.f32 %v3329, %v3541
        %v3617 = vmul.f32 %v3331, %v3545
        %v3619 = vlaneseq
        %v3620 = vshrl.u32 %v3619, 7
        %v3621 = vsub.s32 0, %v3620
        %v3622 = vrot.slane %v3605, %v3621
        %v3623 = vlaneseq
        %v3624 = vshrl.u32 %v3623, 7
        %v3625 = vsub.s32 1, %v3624
        %v3626 = vrot.slane %v3605, %v3625
        %v3627 = vlaneseq
        %v3628 = vshrl.u32 %v3627, 7
        %v3629 = vsub.s32 2, %v3628
        %v3630 = vrot.slane %v3605, %v3629
        %v3631 = vlaneseq
        %v3632 = vshrl.u32 %v3631, 7
        %v3633 = vsub.s32 3, %v3632
        %v3634 = vrot.slane %v3605, %v3633
        %v3635 = vlaneseq
        %v3636 = vshrl.u32 %v3635, 7
        %v3637 = vsub.s32 4, %v3636
        %v3638 = vrot.slane %v3605, %v3637
        %v3639 = vlaneseq
        %v3640 = vshrl.u32 %v3639, 7
        %v3641 = vsub.s32 5, %v3640
        %v3642 = vrot.slane %v3605, %v3641
        %v3649 = vadd.f32 %v3606, %v3622
        %v3650 = vadd.f32 %v3607, %v3626
        %v3651 = vadd.f32 %v3608, %v3630
        %v3652 = vadd.f32 %v3609, %v3634
        %v3653 = vadd.f32 %v3610, %v3638
        %v3654 = vadd.f32 %v3611, %v3642
        %v3655 = vadd.f32 %v3612, %v3622
        %v3656 = vadd.f32 %v3613, %v3626
        %v3657 = vadd.f32 %v3614, %v3630
        %v3658 = vadd.f32 %v3615, %v3634
        %v3659 = vadd.f32 %v3616, %v3638
        %v3660 = vadd.f32 %v3617, %v3642
        %vm3661 = vcmp.ge.f32.partialorder %v3649, 0.0
        %vm3662 = vcmp.ge.f32.partialorder %v3650, 0.0
        %vm3663 = vcmp.ge.f32.partialorder %v3651, 0.0
        %vm3664 = vcmp.ge.f32.partialorder %v3652, 0.0
        %vm3665 = vcmp.ge.f32.partialorder %v3653, 0.0
        %vm3666 = vcmp.ge.f32.partialorder %v3654, 0.0
        %vm3667 = vcmp.ge.f32.partialorder %v3655, 0.0
        %vm3668 = vcmp.ge.f32.partialorder %v3656, 0.0
        %vm3669 = vcmp.ge.f32.partialorder %v3657, 0.0
        %vm3670 = vcmp.ge.f32.partialorder %v3658, 0.0
        %vm3671 = vcmp.ge.f32.partialorder %v3659, 0.0
        %vm3672 = vcmp.ge.f32.partialorder %v3660, 0.0
        %v3673 = vmul.f32 %v3649, 0.2
        %v3674 = vmul.f32 %v3650, 0.2
        %v3675 = vmul.f32 %v3651, 0.2
        %v3676 = vmul.f32 %v3652, 0.2
        %v3677 = vmul.f32 %v3653, 0.2
        %v3678 = vmul.f32 %v3654, 0.2
        %v3679 = vmul.f32 %v3655, 0.2
        %v3680 = vmul.f32 %v3656, 0.2
        %v3681 = vmul.f32 %v3657, 0.2
        %v3682 = vmul.f32 %v3658, 0.2
        %v3683 = vmul.f32 %v3659, 0.2
        %v3684 = vmul.f32 %v3660, 0.2
        %v3685 = vsel %vm3661, %v3649, %v3673
        %v3686 = vsel %vm3662, %v3650, %v3674
        %v3687 = vsel %vm3663, %v3651, %v3675
        %v3688 = vsel %vm3664, %v3652, %v3676
        %v3689 = vsel %vm3665, %v3653, %v3677
        %v3690 = vsel %vm3666, %v3654, %v3678
        %v3691 = vsel %vm3667, %v3655, %v3679
        %v3692 = vsel %vm3668, %v3656, %v3680
        %v3693 = vsel %vm3669, %v3657, %v3681
        %v3694 = vsel %vm3670, %v3658, %v3682
        %v3695 = vsel %vm3671, %v3659, %v3683
        %v3696 = vsel %vm3672, %v3660, %v3684
        %v3697 = vld [vmem:[#allocation13] sm:$0x3f]
        %v3699 = vlaneseq
        %v3700 = vshrl.u32 %v3699, 7
        %v3701 = vsub.s32 0, %v3700
        %v3702 = vrot.slane %v3697, %v3701
        %v3703 = vlaneseq
        %v3704 = vshrl.u32 %v3703, 7
        %v3705 = vsub.s32 1, %v3704
        %v3706 = vrot.slane %v3697, %v3705
        %v3707 = vlaneseq
        %v3708 = vshrl.u32 %v3707, 7
        %v3709 = vsub.s32 2, %v3708
        %v3710 = vrot.slane %v3697, %v3709
        %v3711 = vlaneseq
        %v3712 = vshrl.u32 %v3711, 7
        %v3713 = vsub.s32 3, %v3712
        %v3714 = vrot.slane %v3697, %v3713
        %v3715 = vlaneseq
        %v3716 = vshrl.u32 %v3715, 7
        %v3717 = vsub.s32 4, %v3716
        %v3718 = vrot.slane %v3697, %v3717
        %v3719 = vlaneseq
        %v3720 = vshrl.u32 %v3719, 7
        %v3721 = vsub.s32 5, %v3720
        %v3722 = vrot.slane %v3697, %v3721
        %v3729 = vmul.f32 %v3685, %v3702
        %v3730 = vmul.f32 %v3686, %v3706
        %v3731 = vmul.f32 %v3687, %v3710
        %v3732 = vmul.f32 %v3688, %v3714
        %v3733 = vmul.f32 %v3689, %v3718
        %v3734 = vmul.f32 %v3690, %v3722
        %v3735 = vmul.f32 %v3691, %v3702
        %v3736 = vmul.f32 %v3692, %v3706
        %v3737 = vmul.f32 %v3693, %v3710
        %v3738 = vmul.f32 %v3694, %v3714
        %v3739 = vmul.f32 %v3695, %v3718
        %v3740 = vmul.f32 %v3696, %v3722
        %v3741 = vadd.f32 %v3729, %v3730
        %v3742 = vadd.f32 %v3741, %v3731
        %v3743 = vadd.f32 %v3742, %v3732
        %v3744 = vadd.f32 %v3743, %v3733
        %v3745 = vadd.f32 %v3744, %v3734
        %3746 = vadd.xlane.f32.xlu0 %v3745
        %v3747 = vpop.xlane.xlu0 %3746
        %v3748 = vadd.f32 %v3735, %v3736
        %v3749 = vadd.f32 %v3748, %v3737
        %v3750 = vadd.f32 %v3749, %v3738
        %v3751 = vadd.f32 %v3750, %v3739
        %v3752 = vadd.f32 %v3751, %v3740
        %3753 = vadd.xlane.f32.xlu0 %v3752
        %v3754 = vpop.xlane.xlu0 %3753
        %v3755 = vld [vmem:[#allocation2] sm:$0x1]
        %v3757 = vlaneseq
        %v3758 = vshrl.u32 %v3757, 7
        %v3759 = vsub.s32 0, %v3758
        %v3760 = vrot.slane %v3755, %v3759
        %v3762 = vadd.f32 %v3747, %v3760
        %v3763 = vadd.f32 %v3754, %v3760
        %vm3764 = vcmask 7168
        %3765 = vst.msk [vmem:[%s426] sm:$0xff] %vm3764, %v3762
        %3766 = vst.msk [vmem:[%s426 + $0x8] sm:$0xff] %vm3764, %v3763
        %p3767 = scmp.lt.s32.totalorder %s26, 1
        %s3768 = scalar_select %p3767, %s26, 1
        %s3769 = smul.addr %s3768, 2
        %s3770 = smul.addr %s3769, 8
        %s3771 = scalar_lea.vmem %s9, %s3770
        // Predicated region
        $region85: #{code_discriminator_forward.1} parent=55 // pred_check
          %p3772 = pneg %p238
        $region86: #{code_discriminator_forward.1} parent=55 // pred_check_branch
          %3774 = sbr.rel (%p3772) target = $region88
        $region87: #{code_discriminator_forward.1} parent=55 // pred_region
          _
        $region88: #{code_discriminator_forward.1} parent=55 // pred_fallthru
          _
      $region56: #{code_discriminator_forward.1} parent=5 // pred_fallthru
        _
      %p3775 = scmp.le.s32.totalorder 2, %s21
      // Predicated region
      $region89: #{code_discriminator_forward.1} parent=5 // pred_check
        %p3776 = pneg %p3775
      $region90: #{code_discriminator_forward.1} parent=5 // pred_check_branch
        %3778 = sbr.rel (%p3776) target = $region92
      $region91: #{code_discriminator_forward.1} parent=5 // pred_region
        %s3779 = ssub.s32 %s21, 2
        // Predicated region
        $region93: #{code_discriminator_forward.1} parent=91 // pred_check
          %p3780 = pneg %p244
        $region94: #{code_discriminator_forward.1} parent=91 // pred_check_branch
          %3782 = sbr.rel (%p3780) target = $region96
        $region95: #{code_discriminator_forward.1} parent=91 // pred_region
          %p3783 = scmp.lt.s32.totalorder %s27, 1
          %s3784 = scalar_select %p3783, %s27, 1
          %s3785 = smul.addr %s3784, 2
          %s3786 = smul.addr %s3785, 8
          %s3787 = scalar_lea.vmem %s9, %s3786
        $region96: #{code_discriminator_forward.1} parent=91 // pred_fallthru
          _
      $region92: #{code_discriminator_forward.1} parent=5 // pred_fallthru
        _
    $region6: #{code_discriminator_forward.1} parent=1 // loop_footer
      %s25 = sadd.s32 1, %s21
    $region7: #{code_discriminator_forward.1} parent=1 // loop_footer_branch
      %20 = sbr.rel target = $region3
    $region8: #{code_discriminator_forward.1} parent=1 // loop_exit
      _
    %3788 = vsyncpa [#allocation4], 1
    %s3789 = scalar_lea.sflag [#allocation4], 1
    %3790 = vsyncpa %s3789, 1
    %3791 = vsyncpa [#allocation6], 1
    %3792 = vsyncpa [#allocation9], 1
    %3793 = vsyncpa [#allocation12], 1

</llo_original>
